<compile_context>
chip_gen: v5e
topology: v5e:2x2
jax: 0.10.0
libtpu: 0.0.40
codegen_flags: <defaults>
</compile_context>

<pallas_src>
import functools

import jax
import jax.numpy as jnp
from jax.experimental import pallas as pl
from jax.experimental.pallas import tpu as pltpu


def _bev_pool_kernel(vt_ref, pb_ref, first_ref, valid_ref,   # scalar prefetch (SMEM)
                     idx_ref, x_ref, o_ref, *, tv):
    """One work item: accumulate one point block into one voxel tile.

    out[v, :] += sum_p [sorted_idx[p] == v] * x[p, :]  for v in this voxel tile.
    """
    del pb_ref  # only used by the index_maps
    w = pl.program_id(0)

    # First work item of a new voxel tile: zero the (resident) output block.
    @pl.when(first_ref[w] == 1)
    def _():
        o_ref[...] = jnp.zeros_like(o_ref)

    # Real (non-padding) work item: one-hot matmul on the MXU, f32 accumulation.
    @pl.when(valid_ref[w] == 1)
    def _():
        vstart = vt_ref[w] * tv
        rel = idx_ref[...] - vstart                              # (1, tp) int32
        rows = jax.lax.broadcasted_iota(jnp.int32, (tv, 1), 0)   # (tv, 1)
        onehot = (rows == rel).astype(x_ref.dtype)               # (tv, tp) 0/1 exact
        o_ref[...] += jnp.dot(onehot, x_ref[...],
                              preferred_element_type=jnp.float32)


def _build_work_items(idx_sorted, n_vtiles, n_pblocks, tv, tp):
    """CSR-style (voxel-tile, point-block) work list from sorted voxel ids.

    Every voxel tile gets >=1 work item (so its output block is zeroed); the
    total number of work items is statically bounded by n_vtiles + n_pblocks.
    Padding items have valid=0 and keep the last voxel tile / last point block
    so output writeback stays consecutive and the input DMA is deduplicated.
    """
    v = jnp.arange(n_vtiles, dtype=jnp.int32)
    lo = jnp.searchsorted(idx_sorted, v * tv, side='left').astype(jnp.int32)
    hi = jnp.searchsorted(idx_sorted, (v + 1) * tv, side='left').astype(jnp.int32)
    nblk = jnp.where(hi > lo, (hi - 1) // tp - lo // tp + 1, 0).astype(jnp.int32)
    per_tile = jnp.maximum(nblk, 1)
    start = (jnp.cumsum(per_tile) - per_tile).astype(jnp.int32)

    n_work = n_vtiles + n_pblocks                              # static upper bound
    w = jnp.arange(n_work, dtype=jnp.int32)
    vt = (jnp.searchsorted(start, w, side='right') - 1).astype(jnp.int32)
    vt = jnp.clip(vt, 0, n_vtiles - 1)
    j = w - start[vt]
    valid = (j < nblk[vt]).astype(jnp.int32)                   # 0 => padding/empty tile
    first = (j == 0).astype(jnp.int32)                         # 1 => zero output block
    pblk = jnp.clip(lo[vt] // tp + j, 0, n_pblocks - 1).astype(jnp.int32)
    return vt, pblk, first, valid


def bev_pool_scatter_sum(x_flat, flat_idx, n_vox, *, tv=512, tp=1024,
                         compute_dtype=jnp.bfloat16):
    """Sum x_flat (Np, C) into n_vox voxels keyed by flat_idx (Np,); idx<0 dropped."""
    np_, c = x_flat.shape
    nv_pad = pl.cdiv(n_vox, tv) * tv
    np_pad = pl.cdiv(max(np_, 1), tp) * tp
    n_vtiles = nv_pad // tv
    n_pblocks = np_pad // tp

    # Dropped points -> sentinel nv_pad: they sort to the end, never match any
    # voxel tile's one-hot, and are excluded by the searchsorted ranges.
    sentinel = jnp.int32(nv_pad)
    idx = jnp.where(flat_idx >= 0, flat_idx.astype(jnp.int32), sentinel)
    order = jnp.argsort(idx)
    idx_sorted = idx[order]
    # Zero dropped-point features (guards 0*NaN) and cast once for the MXU;
    # gather + mask + cast fuse into a single pass over x.
    x_sorted = jnp.where((idx_sorted < sentinel)[:, None],
                         x_flat[order], 0.0).astype(compute_dtype)

    # Pad only the remainder (no full-array copy just for padding).
    pad_p = np_pad - np_
    idx_sorted = jnp.pad(idx_sorted, (0, pad_p), constant_values=nv_pad)
    x_sorted = jnp.pad(x_sorted, ((0, pad_p), (0, 0)))

    vt, pblk, first, valid = _build_work_items(idx_sorted, n_vtiles, n_pblocks, tv, tp)
    idx2d = idx_sorted[None, :]                                # (1, np_pad)
    n_work = n_vtiles + n_pblocks

    kernel = functools.partial(_bev_pool_kernel, tv=tv)
    out = pl.pallas_call(
        kernel,
        out_shape=jax.ShapeDtypeStruct((nv_pad, c), jnp.float32),
        grid_spec=pltpu.PrefetchScalarGridSpec(
            num_scalar_prefetch=4,
            grid=(n_work,),
            in_specs=[
                pl.BlockSpec((1, tp), lambda w, vt_r, pb_r, fr_r, vl_r: (0, pb_r[w])),
                pl.BlockSpec((tp, c), lambda w, vt_r, pb_r, fr_r, vl_r: (pb_r[w], 0)),
            ],
            out_specs=pl.BlockSpec((tv, c), lambda w, vt_r, pb_r, fr_r, vl_r: (vt_r[w], 0)),
        ),
        compiler_params=pltpu.CompilerParams(
            dimension_semantics=("arbitrary",)),
    )(vt, pblk, first, valid, idx2d, x_sorted)
    # The [:n_vox] slice fuses with the reshape/transpose that follows in the
    # caller, so padding the output to a tile multiple costs ~nothing.
    return out[:n_vox]


class BEVPool:
    """JAX/Pallas port of the PyTorch BEVPool module (forward only)."""

    def __init__(self,
                 xbound=(-54.0, 54.0, 0.3),
                 ybound=(-54.0, 54.0, 0.3),
                 zbound=(-10.0, 10.0, 20.0),
                 dbound=(1.0, 60.0, 0.5),
                 compute_dtype=jnp.bfloat16,
                 tv=512, tp=1024):
        rows = [xbound, ybound, zbound]
        self.dx = jnp.array([r[2] for r in rows], jnp.float32)
        self.bx = jnp.array([r[0] + r[2] / 2.0 for r in rows], jnp.float32)
        # torch.LongTensor([...]) truncates the float division toward zero
        self.nx = tuple(int((r[1] - r[0]) / r[2]) for r in rows)
        self.dbound = dbound  # unused in forward (as in the PyTorch module)
        self.compute_dtype = compute_dtype
        self.tv = tv
        self.tp = tp

    def __call__(self, geom_feats, x):
        B, N, D, H, W, C = x.shape
        Nprime = B * N * D * H * W
        x = x.reshape(Nprime, C)

        # voxelize geometry; .astype(int32) truncates toward zero like .long()
        geom = (geom_feats - (self.bx - self.dx / 2.0)) / self.dx
        geom = geom.reshape(Nprime, 3).astype(jnp.int32)
        batch_ix = jnp.repeat(jnp.arange(B, dtype=jnp.int32), Nprime // B)

        nx0, nx1, nx2 = self.nx
        kept = ((geom[:, 0] >= 0) & (geom[:, 0] < nx0) &
                (geom[:, 1] >= 0) & (geom[:, 1] < nx1) &
                (geom[:, 2] >= 0) & (geom[:, 2] < nx2))

        # bev_pool_forward scatters into out[b, iz, ix, iy, c] of shape
        # (B, D=nx2, H=nx0, W=nx1, C); dropped points get flat index -1
        # (sentinel masking instead of PyTorch's dynamic-shape boolean filter).
        Dv, Hv, Wv = nx2, nx0, nx1
        flat = ((batch_ix * Dv + geom[:, 2]) * Hv + geom[:, 0]) * Wv + geom[:, 1]
        flat = jnp.where(kept, flat, -1)

        out = bev_pool_scatter_sum(x, flat, B * Dv * Hv * Wv,
                                   tv=self.tv, tp=self.tp,
                                   compute_dtype=self.compute_dtype)
        out = out.reshape(B, Dv, Hv, Wv, C)

        # permute(0,4,1,2,3) -> (B,C,D,H,W); cat(unbind(dim=2),1) -> (B, D*C, H, W)
        # TODO(synk): fold this permute into the kernel output layout (out^T
        # blocks (C, tv)) to make the kernel's output lane-dense and lift MXU
        # N-dim utilization when C < 128.
        final = out.transpose(0, 1, 4, 2, 3).reshape(B, Dv * C, Hv, Wv)
        return final


def _reference_forward(mod, geom_feats, x, quantize_dtype=None):
    """Pure-JAX reference (scatter-add) for validation."""
    B, N, D, H, W, C = x.shape
    Nprime = B * N * D * H * W
    xf = x.reshape(Nprime, C)
    if quantize_dtype is not None:
        xf = xf.astype(quantize_dtype).astype(jnp.float32)
    geom = ((geom_feats - (mod.bx - mod.dx / 2.0)) / mod.dx)
    geom = geom.reshape(Nprime, 3).astype(jnp.int32)
    batch_ix = jnp.repeat(jnp.arange(B, dtype=jnp.int32), Nprime // B)
    nx0, nx1, nx2 = mod.nx
    kept = ((geom[:, 0] >= 0) & (geom[:, 0] < nx0) &
            (geom[:, 1] >= 0) & (geom[:, 1] < nx1) &
            (geom[:, 2] >= 0) & (geom[:, 2] < nx2))
    Dv, Hv, Wv = nx2, nx0, nx1
    flat = ((batch_ix * Dv + geom[:, 2]) * Hv + geom[:, 0]) * Wv + geom[:, 1]
    flat = jnp.where(kept, flat, 0)
    xk = jnp.where(kept[:, None], xf, jnp.zeros_like(xf))
    out = jnp.zeros((B * Dv * Hv * Wv, C), jnp.float32).at[flat].add(xk)
    out = out.reshape(B, Dv, Hv, Wv, C)
    return out.transpose(0, 1, 4, 2, 3).reshape(B, Dv * C, Hv, Wv)


if __name__ == "__main__":
    key = jax.random.PRNGKey(0)
    k1, k2 = jax.random.split(key)

    # Small synthetic shapes: B=2 batches, N=2 cams, 4 depth bins, 4x8 feature
    # map, C=64 channels.  Asymmetric BEV grid nx = (16, 20, 1) so the voxel
    # count (2*1*16*20 = 640) is NOT a multiple of the voxel tile (512),
    # exercising multi-tile accumulation, padded voxel tiles and padded point
    # blocks.  Output shape: (2, 1*64, 16, 20).
    B, N, Dc, Hf, Wf, C = 2, 2, 4, 4, 8, 64
    bounds = dict(xbound=(-8.0, 8.0, 1.0), ybound=(-10.0, 10.0, 1.0),
                  zbound=(-10.0, 10.0, 20.0), dbound=(1.0, 60.0, 0.5))

    geom = jax.random.uniform(k1, (B, N, Dc, Hf, Wf, 3), jnp.float32,
                              minval=-11.0, maxval=11.0)  # some points out of range
    x = jax.random.normal(k2, (B, N, Dc, Hf, Wf, C), jnp.float32)

    # Default fast path: bf16 point features on the MXU with f32 accumulation.
    mod = BEVPool(**bounds)
    out = jax.block_until_ready(jax.jit(mod.__call__)(geom, x))

    assert out.shape == (B, mod.nx[2] * C, mod.nx[0], mod.nx[1]), out.shape
    # Exact structural check vs a reference using the same bf16-quantized x.
    ref_q = _reference_forward(mod, geom, x, quantize_dtype=jnp.bfloat16)
    assert jnp.allclose(out, ref_q, atol=1e-3, rtol=1e-3), "mismatch vs bf16 reference"
    # Loose end-to-end check vs the full-precision f32 reference.
    ref_f32 = _reference_forward(mod, geom, x)
    assert jnp.allclose(out, ref_f32, atol=3e-2, rtol=3e-2), "mismatch vs f32 reference"

    print("KERNEL_OK")
</pallas_src>

<mosaic_0001>
module attributes {stable_mosaic.version = 11 : i64} {
  func.func @_bev_pool_kernel(%arg0: i32, %arg1: memref<3xi32, #tpu.memory_space<smem>>, %arg2: memref<3xi32, #tpu.memory_space<smem>>, %arg3: memref<3xi32, #tpu.memory_space<smem>>, %arg4: memref<3xi32, #tpu.memory_space<smem>>, %arg5: memref<1x1024xi32, #tpu.memory_space<vmem>>, %arg6: memref<1024x64xbf16, #tpu.memory_space<vmem>>, %arg7: memref<512x64xf32, #tpu.memory_space<vmem>>) attributes {dimension_semantics = [#tpu.dimension_semantics<arbitrary>], iteration_bounds = array<i64: 3>, scalar_prefetch = 4 : i64, scratch_operands = 0 : i64, tpu.core_type = #tpu.core_type<tc>, window_params = [{transform_indices = @transform_0, window_bounds = array<i64: 1, 1024>}, {transform_indices = @transform_1, window_bounds = array<i64: 1024, 64>}, {transform_indices = @transform_2, window_bounds = array<i64: 512, 64>}]} {
    %0 = arith.index_cast %arg0 : i32 to index
    %1 = memref.load %arg3[%0] : memref<3xi32, #tpu.memory_space<smem>>
    %c1_i32 = arith.constant 1 : i32
    %2 = arith.cmpi eq, %1, %c1_i32 : i32
    %3 = arith.extui %2 : i1 to i32
    %c0_i32 = arith.constant 0 : i32
    %4 = arith.cmpi ne, %3, %c0_i32 : i32
    scf.if %4 {
      %cst = arith.constant 0.000000e+00 : f32
      %10 = vector.broadcast %cst : f32 to vector<512x64xf32>
      %c0 = arith.constant 0 : index
      %c0_2 = arith.constant 0 : index
      %11 = vector.load %arg7[%c0, %c0_2] : memref<512x64xf32, #tpu.memory_space<vmem>>, vector<512x64xf32>
      tpu.vector_store %arg7[%c0, %c0_2], %10 {strides = array<i32>} : memref<512x64xf32, #tpu.memory_space<vmem>>, vector<512x64xf32>,
    } else {
    }
    %5 = arith.index_cast %arg0 : i32 to index
    %6 = memref.load %arg4[%5] : memref<3xi32, #tpu.memory_space<smem>>
    %c1_i32_0 = arith.constant 1 : i32
    %7 = arith.cmpi eq, %6, %c1_i32_0 : i32
    %8 = arith.extui %7 : i1 to i32
    %c0_i32_1 = arith.constant 0 : i32
    %9 = arith.cmpi ne, %8, %c0_i32_1 : i32
    scf.if %9 {
      %10 = arith.index_cast %arg0 : i32 to index
      %11 = memref.load %arg1[%10] : memref<3xi32, #tpu.memory_space<smem>>
      %c512_i32 = arith.constant 512 : i32
      %12 = arith.muli %11, %c512_i32 : i32
      %c0 = arith.constant 0 : index
      %c0_2 = arith.constant 0 : index
      %13 = vector.load %arg5[%c0, %c0_2] : memref<1x1024xi32, #tpu.memory_space<vmem>>, vector<1x1024xi32>
      %14 = vector.broadcast %12 : i32 to vector<1x1024xi32>
      %15 = arith.subi %13, %14 : vector<1x1024xi32>
      %16 = tpu.iota {dimensions = array<i32: 0>} : vector<512x1xi32>
      %17 = vector.broadcast %16 : vector<512x1xi32> to vector<512x1024xi32>
      %18 = vector.broadcast %15 : vector<1x1024xi32> to vector<512x1024xi32>
      %19 = arith.cmpi eq, %17, %18 : vector<512x1024xi32>
      %20 = arith.extui %19 : vector<512x1024xi1> to vector<512x1024xi32>
      %21 = arith.sitofp %20 : vector<512x1024xi32> to vector<512x1024xf32>
      %22 = arith.truncf %21 : vector<512x1024xf32> to vector<512x1024xbf16>
      %c0_3 = arith.constant 0 : index
      %c0_4 = arith.constant 0 : index
      %23 = vector.load %arg7[%c0_3, %c0_4] : memref<512x64xf32, #tpu.memory_space<vmem>>, vector<512x64xf32>
      %c0_5 = arith.constant 0 : index
      %c0_6 = arith.constant 0 : index
      %24 = vector.load %arg6[%c0_5, %c0_6] : memref<1024x64xbf16, #tpu.memory_space<vmem>>, vector<1024x64xbf16>
      %cst = arith.constant dense<0.000000e+00> : vector<512x64xf32>
      %25 = tpu.matmul %22, %24, %cst {dimension_numbers = #tpu.dot_dimension_numbers<[1], [0], [0], [1], [0, 0, 1, 1], [], []>} : vector<512x1024xbf16>, vector<1024x64xbf16>, vector<512x64xf32> -> vector<512x64xf32>
      %26 = arith.addf %23, %25 : vector<512x64xf32>
      %c0_7 = arith.constant 0 : index
      %c0_8 = arith.constant 0 : index
      %27 = vector.load %arg7[%c0_7, %c0_8] : memref<512x64xf32, #tpu.memory_space<vmem>>, vector<512x64xf32>
      tpu.vector_store %arg7[%c0_7, %c0_8], %26 {strides = array<i32>} : memref<512x64xf32, #tpu.memory_space<vmem>>, vector<512x64xf32>,
    } else {
    }
    return
  }
  func.func @transform_0(%arg0: i32, %arg1: memref<3xi32, #tpu.memory_space<smem>>, %arg2: memref<3xi32, #tpu.memory_space<smem>>, %arg3: memref<3xi32, #tpu.memory_space<smem>>, %arg4: memref<3xi32, #tpu.memory_space<smem>>) -> (i32, i32) {
    %0 = arith.index_cast %arg0 : i32 to index
    %1 = memref.load %arg2[%0] : memref<3xi32, #tpu.memory_space<smem>>
    %c0_i32 = arith.constant 0 : i32
    %c0_i32_0 = arith.constant 0 : i32
    return %c0_i32, %1 : i32, i32
  }
  func.func @transform_1(%arg0: i32, %arg1: memref<3xi32, #tpu.memory_space<smem>>, %arg2: memref<3xi32, #tpu.memory_space<smem>>, %arg3: memref<3xi32, #tpu.memory_space<smem>>, %arg4: memref<3xi32, #tpu.memory_space<smem>>) -> (i32, i32) {
    %0 = arith.index_cast %arg0 : i32 to index
    %1 = memref.load %arg2[%0] : memref<3xi32, #tpu.memory_space<smem>>
    %c0_i32 = arith.constant 0 : i32
    %c0_i32_0 = arith.constant 0 : i32
    return %1, %c0_i32 : i32, i32
  }
  func.func @transform_2(%arg0: i32, %arg1: memref<3xi32, #tpu.memory_space<smem>>, %arg2: memref<3xi32, #tpu.memory_space<smem>>, %arg3: memref<3xi32, #tpu.memory_space<smem>>, %arg4: memref<3xi32, #tpu.memory_space<smem>>) -> (i32, i32) {
    %0 = arith.index_cast %arg0 : i32 to index
    %1 = memref.load %arg1[%0] : memref<3xi32, #tpu.memory_space<smem>>
    %c0_i32 = arith.constant 0 : i32
    %c0_i32_0 = arith.constant 0 : i32
    return %1, %c0_i32 : i32, i32
  }
}

</mosaic_0001>

<llo_original>
// kernel: custom-call.3
$region0: #{custom-call.3}
  %s0 = inlined_call_operand.vmem [shape: u32[2], index: 0, kind: output, shape index: {}]

// kernel: custom-call.5
$region0: #{custom-call.5}
  %s0 = inlined_call_operand.vmem [shape: u32[3], index: 0, kind: output, shape index: {}]

// kernel: a_call__.1
$region0: #{a_call__.1}
  #allocation0 [shape = 'u32[]', space=smem, size = 0x4, offset = 0x4, fixed_abs, tag = 'smem constant byte address 0x4 - core index']
  #allocation1 [shape = 'u32[72,128]{1,0:T(1,128)}', space=vmem, size = 0x9000, scoped, tag = 'internal scratch']
  #allocation2 [shape = 's32[1]{0}', space=sflag, size = 0x4, scoped, tag = 'scoped memory for a_call__.1']
  #allocation3 [shape = 'u8[512]{0}', space=smem, size = 0x200, scoped, tag = 'prefetched SMEM operand 0']
  #allocation4 [shape = 'u8[512]{0}', space=smem, size = 0x200, scoped, tag = 'prefetched SMEM operand 1']
  #allocation5 [shape = 'u8[512]{0}', space=smem, size = 0x200, scoped, tag = 'prefetched SMEM operand 2']
  #allocation6 [shape = 'u8[512]{0}', space=smem, size = 0x200, scoped, tag = 'prefetched SMEM operand 3']
  %s0 = inlined_call_operand.vmem [shape: s32[3], index: 0, kind: input, shape index: {}]
  %s1 = inlined_call_operand.vmem [shape: s32[3], index: 1, kind: input, shape index: {}]
  %s2 = inlined_call_operand.vmem [shape: s32[3], index: 2, kind: input, shape index: {}]
  %s3 = inlined_call_operand.vmem [shape: s32[3], index: 3, kind: input, shape index: {}]
  %s4 = inlined_call_operand.vmem [shape: s32[1,1024], index: 4, kind: input, shape index: {}]
  %s5 = inlined_call_operand.vmem [shape: bf16[1024,64], index: 5, kind: input, shape index: {}]
  %s6 = inlined_call_operand.vmem [shape: f32[1024,64], index: 6, kind: output, shape index: {}]
  %s7 = sld [smem:[#allocation0]]
  $region49: #{a_call__.1} parent=0
    _
  %s9 = ssub.s32 1, %s7
  %s10 = scalar_select 0, %s9, %s7
  %s12 = sshll.u32 %s0, 4
  %s13 = int_to_ptr.vmem [resolvable:$true] %s12
  %15 = dma.vmem_to_smem %s13, 16, [#allocation3], [#allocation2]
  %s17 = sshll.u32 %s1, 4
  %s18 = int_to_ptr.vmem [resolvable:$true] %s17
  %20 = dma.vmem_to_smem %s18, 16, [#allocation4], [#allocation2]
  %s22 = sshll.u32 %s2, 4
  %s23 = int_to_ptr.vmem [resolvable:$true] %s22
  %25 = dma.vmem_to_smem %s23, 16, [#allocation5], [#allocation2]
  %s27 = sshll.u32 %s3, 4
  %s28 = int_to_ptr.vmem [resolvable:$true] %s27
  %30 = dma.vmem_to_smem %s28, 16, [#allocation6], [#allocation2]
  %32 = dma.done [#allocation2], 64
  %33 = sfence
  loop: start=0, step=1, limit=5
  $region2: #{a_call__.1} parent=0 // loop_pre_header
    _
  $region3: #{a_call__.1} parent=0 // loop_header
    %s35 = sphi 0, %s39
    %p36 = scmp.ge.s32.totalorder %s35, 5
    %s47 = sphi 0, %s49
    %s50 = sphi 0, %s47
    %s51 = sphi 0, %s50
    %s67 = sphi 0, %s51
    %s75 = sphi 0, %s77
    %s78 = sphi 0, %s75
    %s79 = sphi 0, %s78
    %s95 = sphi 0, %s79
    %s103 = sphi 0, %s105
    %s106 = sphi 0, %s103
    %s107 = sphi 0, %s106
    %s123 = sphi 0, %s107
  $region4: #{a_call__.1} parent=0 // loop_header_branch
    %38 = sbr.rel (%p36) target = $region8
  $region5: #{a_call__.1} parent=0 // loop_body
    %s40 = ssub.s32 %s35, 1
    %s41 = ssub.s32 %s35, 2
    %s42 = sadd.s32 %s35, 1
    %s43 = sld [smem:[#allocation4 + %s35]]
    %s44 = sld [smem:[#allocation4 + %s42]]
    %s45 = ssub.s32 %s43, %s44
    %p46 = scmp.eq.s32.totalorder %s45, 0
    %s48 = sadd.s32 %s47, 1
    %s49 = scalar_select %p46, %s47, %s48
    %p52 = pneg %p46
    %p53 = scmp.eq.s32.totalorder %s35, 2
    %p54 = por %p52, %p53
    %p55 = scmp.ne.s32.totalorder %s47, %s50
    %p56 = scmp.eq.s32.totalorder %s35, 0
    %p57 = por %p55, %p56
    %p58 = scmp.ne.s32.totalorder %s47, %s50
    %p59 = scmp.eq.s32.totalorder %s40, 2
    %p60 = por %p58, %p59
    %p61 = scmp.ne.s32.totalorder %s50, %s51
    %p62 = scmp.eq.s32.totalorder %s40, 0
    %p63 = por %p61, %p62
    %p64 = scmp.ne.s32.totalorder %s50, %s51
    %p65 = scmp.eq.s32.totalorder %s41, 2
    %p66 = por %p64, %p65
    %p68 = scmp.ne.s32.totalorder %s51, %s67
    %p69 = scmp.eq.s32.totalorder %s41, 0
    %p70 = por %p68, %p69
    %s71 = sld [smem:[#allocation4 + %s35]]
    %s72 = sld [smem:[#allocation4 + %s42]]
    %s73 = ssub.s32 %s71, %s72
    %p74 = scmp.eq.s32.totalorder %s73, 0
    %s76 = sadd.s32 %s75, 1
    %s77 = scalar_select %p74, %s75, %s76
    %p80 = pneg %p74
    %p81 = scmp.eq.s32.totalorder %s35, 2
    %p82 = por %p80, %p81
    %p83 = scmp.ne.s32.totalorder %s75, %s78
    %p84 = scmp.eq.s32.totalorder %s35, 0
    %p85 = por %p83, %p84
    %p86 = scmp.ne.s32.totalorder %s75, %s78
    %p87 = scmp.eq.s32.totalorder %s40, 2
    %p88 = por %p86, %p87
    %p89 = scmp.ne.s32.totalorder %s78, %s79
    %p90 = scmp.eq.s32.totalorder %s40, 0
    %p91 = por %p89, %p90
    %p92 = scmp.ne.s32.totalorder %s78, %s79
    %p93 = scmp.eq.s32.totalorder %s41, 2
    %p94 = por %p92, %p93
    %p96 = scmp.ne.s32.totalorder %s79, %s95
    %p97 = scmp.eq.s32.totalorder %s41, 0
    %p98 = por %p96, %p97
    %s99 = sld [smem:[#allocation3 + %s35]]
    %s100 = sld [smem:[#allocation3 + %s42]]
    %s101 = ssub.s32 %s99, %s100
    %p102 = scmp.eq.s32.totalorder %s101, 0
    %s104 = sadd.s32 %s103, 1
    %s105 = scalar_select %p102, %s103, %s104
    %p108 = pneg %p102
    %p109 = scmp.eq.s32.totalorder %s35, 2
    %p110 = por %p108, %p109
    %p111 = scmp.ne.s32.totalorder %s103, %s106
    %p112 = scmp.eq.s32.totalorder %s35, 0
    %p113 = por %p111, %p112
    %p114 = scmp.ne.s32.totalorder %s103, %s106
    %p115 = scmp.eq.s32.totalorder %s40, 2
    %p116 = por %p114, %p115
    %p117 = scmp.ne.s32.totalorder %s106, %s107
    %p118 = scmp.eq.s32.totalorder %s40, 0
    %p119 = por %p117, %p118
    %p120 = scmp.ne.s32.totalorder %s106, %s107
    %p121 = scmp.eq.s32.totalorder %s41, 2
    %p122 = por %p120, %p121
    %p124 = scmp.ne.s32.totalorder %s107, %s123
    %p125 = scmp.eq.s32.totalorder %s41, 0
    %p126 = por %p124, %p125
    %p127 = scmp.le.s32.totalorder 1, %s35
    %p128 = scmp.lt.s32.totalorder %s35, 4
    %p129 = pnand %p127, %p128
    %p130 = pneg %p129
    // Predicated region
    $region9: #{a_call__.1} parent=5 // pred_check
      _
    $region10: #{a_call__.1} parent=5 // pred_check_branch
      %132 = sbr.rel (%p129) target = $region12
    $region11: #{a_call__.1} parent=5 // pred_region
      %s133 = ssub.s32 %s35, 1
    $region12: #{a_call__.1} parent=5 // pred_fallthru
      _
    %p134 = scmp.lt.s32.totalorder %s35, 3
    // Predicated region
    $region13: #{a_call__.1} parent=5 // pred_check
      %p135 = pneg %p134
    $region14: #{a_call__.1} parent=5 // pred_check_branch
      %137 = sbr.rel (%p135) target = $region16
    $region15: #{a_call__.1} parent=5 // pred_region
      // Predicated region
      $region17: #{a_call__.1} parent=15 // pred_check
        %p138 = pneg %p57
      $region18: #{a_call__.1} parent=15 // pred_check_branch
        %140 = sbr.rel (%p138) target = $region20
      $region19: #{a_call__.1} parent=15 // pred_region
        %s141 = sld [smem:[#allocation4 + %s35]]
        %s142 = smul.u32 8, %s141
        %p143 = scmp.lt.s32.totalorder %s142, 7
        %s144 = scalar_select %p143, %s142, 7
        %s145 = scalar_lea.vmem %s4, %s144
        %s146 = sld [smem:[#allocation4 + %s35]]
        %s147 = smul.u32 8, %s146
      $region20: #{a_call__.1} parent=15 // pred_fallthru
        _
      // Predicated region
      $region21: #{a_call__.1} parent=15 // pred_check
        %p148 = pneg %p85
      $region22: #{a_call__.1} parent=15 // pred_check_branch
        %150 = sbr.rel (%p148) target = $region24
      $region23: #{a_call__.1} parent=15 // pred_region
        %s151 = sld [smem:[#allocation4 + %s35]]
        %s152 = smul.u32 128, %s151
        %p153 = scmp.lt.s32.totalorder %s152, 127
        %s154 = scalar_select %p153, %s152, 127
        %s155 = smul.addr %s154, 4
        %s156 = scalar_lea.vmem %s5, %s155
        %s157 = sld [smem:[#allocation4 + %s35]]
        %s158 = smul.u32 128, %s157
      $region24: #{a_call__.1} parent=15 // pred_fallthru
        _
    $region16: #{a_call__.1} parent=5 // pred_fallthru
      _
    %p159 = scmp.le.s32.totalorder 1, %s35
    %p160 = scmp.lt.s32.totalorder %s35, 4
    %p161 = pnand %p159, %p160
    %p162 = pneg %p161
    // Predicated region
    $region25: #{a_call__.1} parent=5 // pred_check
      _
    $region26: #{a_call__.1} parent=5 // pred_check_branch
      %164 = sbr.rel (%p161) target = $region28
    $region27: #{a_call__.1} parent=5 // pred_region
      %s165 = ssub.s32 %s35, 1
      %s166 = sld [smem:[#allocation4 + %s40]]
      %s167 = smul.u32 8, %s166
      %p168 = scmp.lt.s32.totalorder %s167, 7
      %s169 = scalar_select %p168, %s167, 7
      %s170 = scalar_lea.vmem %s4, %s169
      %p171 = pneg %p63
      %p172 = pneg %p60
      %s173 = sld [smem:[#allocation4 + %s40]]
      %s174 = smul.u32 128, %s173
      %p175 = scmp.lt.s32.totalorder %s174, 127
      %s176 = scalar_select %p175, %s174, 127
      %s177 = smul.addr %s176, 4
      %s178 = scalar_lea.vmem %s5, %s177
      %p179 = pneg %p91
      %p180 = pneg %p88
      %p181 = pneg %p119
      %p182 = pneg %p116
      %s183 = sld [smem:[#allocation3 + %s40]]
      %s184 = smul.u32 64, %s183
      %p185 = scmp.lt.s32.totalorder %s184, 127
      %s186 = scalar_select %p185, %s184, 127
      %s187 = smul.addr %s186, 8
      %s188 = scalar_lea.vmem %s6, %s187
      %s189 = sld [smem:[#allocation4 + %s40]]
      %s190 = smul.u32 8, %s189
      %p191 = scmp.lt.s32.totalorder %s190, 7
      %s192 = scalar_select %p191, %s190, 7
      %s193 = scalar_lea.vmem %s4, %s192
      %s194 = sld [smem:[#allocation4 + %s40]]
      %s195 = smul.u32 8, %s194
      %s196 = sld [smem:[#allocation4 + %s40]]
      %s197 = smul.u32 128, %s196
      %p198 = scmp.lt.s32.totalorder %s197, 127
      %s199 = scalar_select %p198, %s197, 127
      %s200 = smul.addr %s199, 4
      %s201 = scalar_lea.vmem %s5, %s200
      %s202 = sld [smem:[#allocation4 + %s40]]
      %s203 = smul.u32 128, %s202
      %s204 = sld [smem:[#allocation3 + %s40]]
      %s205 = smul.u32 64, %s204
      %p206 = scmp.lt.s32.totalorder %s205, 127
      %s207 = scalar_select %p206, %s205, 127
      %s208 = smul.addr %s207, 8
      %s209 = scalar_lea.vmem %s6, %s208
      %s210 = sld [smem:[#allocation3 + %s40]]
      %s211 = smul.u32 64, %s210
      %s212 = sld [smem:[#allocation5 + %s40]]
      %p213 = scmp.eq.s32.totalorder %s212, 1
      // Predicated region
      $region29: #{a_call__.1} parent=27 // pred_check
        %p214 = pneg %p213
      $region30: #{a_call__.1} parent=27 // pred_check_branch
        %216 = sbr.rel (%p214) target = $region32
      $region31: #{a_call__.1} parent=27 // pred_region
        %vm217 = vcmask 523264
        %218 = vst.msk [vmem:[%s209] sm:$0xff] %vm217, 0.0
        %219 = vst.msk [vmem:[%s209 + $0x8] sm:$0xff] %vm217, 0.0
        %220 = vst.msk [vmem:[%s209 + $0x10] sm:$0xff] %vm217, 0.0
        %221 = vst.msk [vmem:[%s209 + $0x18] sm:$0xff] %vm217, 0.0
        %222 = vst.msk [vmem:[%s209 + $0x20] sm:$0xff] %vm217, 0.0
        %223 = vst.msk [vmem:[%s209 + $0x28] sm:$0xff] %vm217, 0.0
        %224 = vst.msk [vmem:[%s209 + $0x30] sm:$0xff] %vm217, 0.0
        %225 = vst.msk [vmem:[%s209 + $0x38] sm:$0xff] %vm217, 0.0
        %226 = vst.msk [vmem:[%s209 + $0x40] sm:$0xff] %vm217, 0.0
        %227 = vst.msk [vmem:[%s209 + $0x48] sm:$0xff] %vm217, 0.0
        %228 = vst.msk [vmem:[%s209 + $0x50] sm:$0xff] %vm217, 0.0
        %229 = vst.msk [vmem:[%s209 + $0x58] sm:$0xff] %vm217, 0.0
        %230 = vst.msk [vmem:[%s209 + $0x60] sm:$0xff] %vm217, 0.0
        %231 = vst.msk [vmem:[%s209 + $0x68] sm:$0xff] %vm217, 0.0
        %232 = vst.msk [vmem:[%s209 + $0x70] sm:$0xff] %vm217, 0.0
        %233 = vst.msk [vmem:[%s209 + $0x78] sm:$0xff] %vm217, 0.0
        %234 = vst.msk [vmem:[%s209 + $0x80] sm:$0xff] %vm217, 0.0
        %235 = vst.msk [vmem:[%s209 + $0x88] sm:$0xff] %vm217, 0.0
        %236 = vst.msk [vmem:[%s209 + $0x90] sm:$0xff] %vm217, 0.0
        %237 = vst.msk [vmem:[%s209 + $0x98] sm:$0xff] %vm217, 0.0
        %238 = vst.msk [vmem:[%s209 + $0xa0] sm:$0xff] %vm217, 0.0
        %239 = vst.msk [vmem:[%s209 + $0xa8] sm:$0xff] %vm217, 0.0
        %240 = vst.msk [vmem:[%s209 + $0xb0] sm:$0xff] %vm217, 0.0
        %241 = vst.msk [vmem:[%s209 + $0xb8] sm:$0xff] %vm217, 0.0
        %242 = vst.msk [vmem:[%s209 + $0xc0] sm:$0xff] %vm217, 0.0
        %243 = vst.msk [vmem:[%s209 + $0xc8] sm:$0xff] %vm217, 0.0
        %244 = vst.msk [vmem:[%s209 + $0xd0] sm:$0xff] %vm217, 0.0
        %245 = vst.msk [vmem:[%s209 + $0xd8] sm:$0xff] %vm217, 0.0
        %246 = vst.msk [vmem:[%s209 + $0xe0] sm:$0xff] %vm217, 0.0
        %247 = vst.msk [vmem:[%s209 + $0xe8] sm:$0xff] %vm217, 0.0
        %248 = vst.msk [vmem:[%s209 + $0xf0] sm:$0xff] %vm217, 0.0
        %249 = vst.msk [vmem:[%s209 + $0xf8] sm:$0xff] %vm217, 0.0
        %250 = vst.msk [vmem:[%s209 + $0x100] sm:$0xff] %vm217, 0.0
        %251 = vst.msk [vmem:[%s209 + $0x108] sm:$0xff] %vm217, 0.0
        %252 = vst.msk [vmem:[%s209 + $0x110] sm:$0xff] %vm217, 0.0
        %253 = vst.msk [vmem:[%s209 + $0x118] sm:$0xff] %vm217, 0.0
        %254 = vst.msk [vmem:[%s209 + $0x120] sm:$0xff] %vm217, 0.0
        %255 = vst.msk [vmem:[%s209 + $0x128] sm:$0xff] %vm217, 0.0
        %256 = vst.msk [vmem:[%s209 + $0x130] sm:$0xff] %vm217, 0.0
        %257 = vst.msk [vmem:[%s209 + $0x138] sm:$0xff] %vm217, 0.0
        %258 = vst.msk [vmem:[%s209 + $0x140] sm:$0xff] %vm217, 0.0
        %259 = vst.msk [vmem:[%s209 + $0x148] sm:$0xff] %vm217, 0.0
        %260 = vst.msk [vmem:[%s209 + $0x150] sm:$0xff] %vm217, 0.0
        %261 = vst.msk [vmem:[%s209 + $0x158] sm:$0xff] %vm217, 0.0
        %262 = vst.msk [vmem:[%s209 + $0x160] sm:$0xff] %vm217, 0.0
        %263 = vst.msk [vmem:[%s209 + $0x168] sm:$0xff] %vm217, 0.0
        %264 = vst.msk [vmem:[%s209 + $0x170] sm:$0xff] %vm217, 0.0
        %265 = vst.msk [vmem:[%s209 + $0x178] sm:$0xff] %vm217, 0.0
        %266 = vst.msk [vmem:[%s209 + $0x180] sm:$0xff] %vm217, 0.0
        %267 = vst.msk [vmem:[%s209 + $0x188] sm:$0xff] %vm217, 0.0
        %268 = vst.msk [vmem:[%s209 + $0x190] sm:$0xff] %vm217, 0.0
        %269 = vst.msk [vmem:[%s209 + $0x198] sm:$0xff] %vm217, 0.0
        %270 = vst.msk [vmem:[%s209 + $0x1a0] sm:$0xff] %vm217, 0.0
        %271 = vst.msk [vmem:[%s209 + $0x1a8] sm:$0xff] %vm217, 0.0
        %272 = vst.msk [vmem:[%s209 + $0x1b0] sm:$0xff] %vm217, 0.0
        %273 = vst.msk [vmem:[%s209 + $0x1b8] sm:$0xff] %vm217, 0.0
        %274 = vst.msk [vmem:[%s209 + $0x1c0] sm:$0xff] %vm217, 0.0
        %275 = vst.msk [vmem:[%s209 + $0x1c8] sm:$0xff] %vm217, 0.0
        %276 = vst.msk [vmem:[%s209 + $0x1d0] sm:$0xff] %vm217, 0.0
        %277 = vst.msk [vmem:[%s209 + $0x1d8] sm:$0xff] %vm217, 0.0
        %278 = vst.msk [vmem:[%s209 + $0x1e0] sm:$0xff] %vm217, 0.0
        %279 = vst.msk [vmem:[%s209 + $0x1e8] sm:$0xff] %vm217, 0.0
        %280 = vst.msk [vmem:[%s209 + $0x1f0] sm:$0xff] %vm217, 0.0
        %281 = vst.msk [vmem:[%s209 + $0x1f8] sm:$0xff] %vm217, 0.0
      $region32: #{a_call__.1} parent=27 // pred_fallthru
        _
      %s282 = sld [smem:[#allocation6 + %s40]]
      %p283 = scmp.eq.s32.totalorder %s282, 1
      // Predicated region
      $region33: #{a_call__.1} parent=27 // pred_check
        %p284 = pneg %p283
      $region34: #{a_call__.1} parent=27 // pred_check_branch
        %286 = sbr.rel (%p284) target = $region36
      $region35: #{a_call__.1} parent=27 // pred_region
        %s287 = sld [smem:[#allocation3 + %s40]]
        %s288 = smul.u32 %s287, 512
        %v289 = vld [vmem:[%s193] sm:$0xff]
        %v290 = vstv %s288
        %v291 = vsub.s32 %v289, %v290
        %v292 = vlaneseq
        %v293 = vshrl.u32 %v292, 7
        %v294 = vadd.s32 %v293, 8
        %v295 = vadd.s32 %v293, 16
        %v296 = vadd.s32 %v293, 24
        %v297 = vadd.s32 %v293, 32
        %v298 = vadd.s32 %v293, 40
        %v299 = vadd.s32 %v293, 48
        %v300 = vadd.s32 %v293, 56
        %v301 = vadd.s32 %v293, 64
        %v302 = vadd.s32 %v293, 72
        %v303 = vadd.s32 %v293, 80
        %v304 = vadd.s32 %v293, 88
        %v305 = vadd.s32 %v293, 96
        %v306 = vadd.s32 %v293, 104
        %v307 = vadd.s32 %v293, 112
        %v308 = vadd.s32 %v293, 120
        %v309 = vadd.s32 %v293, 128
        %v310 = vadd.s32 %v293, 136
        %v311 = vadd.s32 %v293, 144
        %v312 = vadd.s32 %v293, 152
        %v313 = vadd.s32 %v293, 160
        %v314 = vadd.s32 %v293, 168
        %v315 = vadd.s32 %v293, 176
        %v316 = vadd.s32 %v293, 184
        %v317 = vadd.s32 %v293, 192
        %v318 = vadd.s32 %v293, 200
        %v319 = vadd.s32 %v293, 208
        %v320 = vadd.s32 %v293, 216
        %v321 = vadd.s32 %v293, 224
        %v322 = vadd.s32 %v293, 232
        %v323 = vadd.s32 %v293, 240
        %v324 = vadd.s32 %v293, 248
        %v325 = vadd.s32 %v293, 256
        %v326 = vadd.s32 %v293, 264
        %v327 = vadd.s32 %v293, 272
        %v328 = vadd.s32 %v293, 280
        %v329 = vadd.s32 %v293, 288
        %v330 = vadd.s32 %v293, 296
        %v331 = vadd.s32 %v293, 304
        %v332 = vadd.s32 %v293, 312
        %v333 = vadd.s32 %v293, 320
        %v334 = vadd.s32 %v293, 328
        %v335 = vadd.s32 %v293, 336
        %v336 = vadd.s32 %v293, 344
        %v337 = vadd.s32 %v293, 352
        %v338 = vadd.s32 %v293, 360
        %v339 = vadd.s32 %v293, 368
        %v340 = vadd.s32 %v293, 376
        %v341 = vadd.s32 %v293, 384
        %v342 = vadd.s32 %v293, 392
        %v343 = vadd.s32 %v293, 400
        %v344 = vadd.s32 %v293, 408
        %v345 = vadd.s32 %v293, 416
        %v346 = vadd.s32 %v293, 424
        %v347 = vadd.s32 %v293, 432
        %v348 = vadd.s32 %v293, 440
        %v349 = vadd.s32 %v293, 448
        %v350 = vadd.s32 %v293, 456
        %v351 = vadd.s32 %v293, 464
        %v352 = vadd.s32 %v293, 472
        %v353 = vadd.s32 %v293, 480
        %v354 = vadd.s32 %v293, 488
        %v355 = vadd.s32 %v293, 496
        %v356 = vadd.s32 %v293, 504
        %v357 = vperm.slane %v291, 0
        %v358 = vperm.slane %v291, 1
        %v359 = vperm.slane %v291, 2
        %v360 = vperm.slane %v291, 3
        %v361 = vperm.slane %v291, 4
        %v362 = vperm.slane %v291, 5
        %v363 = vperm.slane %v291, 6
        %v364 = vperm.slane %v291, 7
        %vm365 = vcmp.eq.s32.totalorder %v293, %v357
        %vm366 = vcmp.eq.s32.totalorder %v293, %v358
        %vm367 = vcmp.eq.s32.totalorder %v293, %v359
        %vm368 = vcmp.eq.s32.totalorder %v293, %v360
        %vm369 = vcmp.eq.s32.totalorder %v293, %v361
        %vm370 = vcmp.eq.s32.totalorder %v293, %v362
        %vm371 = vcmp.eq.s32.totalorder %v293, %v363
        %vm372 = vcmp.eq.s32.totalorder %v293, %v364
        %vm373 = vcmp.eq.s32.totalorder %v294, %v357
        %vm374 = vcmp.eq.s32.totalorder %v294, %v358
        %vm375 = vcmp.eq.s32.totalorder %v294, %v359
        %vm376 = vcmp.eq.s32.totalorder %v294, %v360
        %vm377 = vcmp.eq.s32.totalorder %v294, %v361
        %vm378 = vcmp.eq.s32.totalorder %v294, %v362
        %vm379 = vcmp.eq.s32.totalorder %v294, %v363
        %vm380 = vcmp.eq.s32.totalorder %v294, %v364
        %vm381 = vcmp.eq.s32.totalorder %v295, %v357
        %vm382 = vcmp.eq.s32.totalorder %v295, %v358
        %vm383 = vcmp.eq.s32.totalorder %v295, %v359
        %vm384 = vcmp.eq.s32.totalorder %v295, %v360
        %vm385 = vcmp.eq.s32.totalorder %v295, %v361
        %vm386 = vcmp.eq.s32.totalorder %v295, %v362
        %vm387 = vcmp.eq.s32.totalorder %v295, %v363
        %vm388 = vcmp.eq.s32.totalorder %v295, %v364
        %vm389 = vcmp.eq.s32.totalorder %v296, %v357
        %vm390 = vcmp.eq.s32.totalorder %v296, %v358
        %vm391 = vcmp.eq.s32.totalorder %v296, %v359
        %vm392 = vcmp.eq.s32.totalorder %v296, %v360
        %vm393 = vcmp.eq.s32.totalorder %v296, %v361
        %vm394 = vcmp.eq.s32.totalorder %v296, %v362
        %vm395 = vcmp.eq.s32.totalorder %v296, %v363
        %vm396 = vcmp.eq.s32.totalorder %v296, %v364
        %vm397 = vcmp.eq.s32.totalorder %v297, %v357
        %vm398 = vcmp.eq.s32.totalorder %v297, %v358
        %vm399 = vcmp.eq.s32.totalorder %v297, %v359
        %vm400 = vcmp.eq.s32.totalorder %v297, %v360
        %vm401 = vcmp.eq.s32.totalorder %v297, %v361
        %vm402 = vcmp.eq.s32.totalorder %v297, %v362
        %vm403 = vcmp.eq.s32.totalorder %v297, %v363
        %vm404 = vcmp.eq.s32.totalorder %v297, %v364
        %vm405 = vcmp.eq.s32.totalorder %v298, %v357
        %vm406 = vcmp.eq.s32.totalorder %v298, %v358
        %vm407 = vcmp.eq.s32.totalorder %v298, %v359
        %vm408 = vcmp.eq.s32.totalorder %v298, %v360
        %vm409 = vcmp.eq.s32.totalorder %v298, %v361
        %vm410 = vcmp.eq.s32.totalorder %v298, %v362
        %vm411 = vcmp.eq.s32.totalorder %v298, %v363
        %vm412 = vcmp.eq.s32.totalorder %v298, %v364
        %vm413 = vcmp.eq.s32.totalorder %v299, %v357
        %vm414 = vcmp.eq.s32.totalorder %v299, %v358
        %vm415 = vcmp.eq.s32.totalorder %v299, %v359
        %vm416 = vcmp.eq.s32.totalorder %v299, %v360
        %vm417 = vcmp.eq.s32.totalorder %v299, %v361
        %vm418 = vcmp.eq.s32.totalorder %v299, %v362
        %vm419 = vcmp.eq.s32.totalorder %v299, %v363
        %vm420 = vcmp.eq.s32.totalorder %v299, %v364
        %vm421 = vcmp.eq.s32.totalorder %v300, %v357
        %vm422 = vcmp.eq.s32.totalorder %v300, %v358
        %vm423 = vcmp.eq.s32.totalorder %v300, %v359
        %vm424 = vcmp.eq.s32.totalorder %v300, %v360
        %vm425 = vcmp.eq.s32.totalorder %v300, %v361
        %vm426 = vcmp.eq.s32.totalorder %v300, %v362
        %vm427 = vcmp.eq.s32.totalorder %v300, %v363
        %vm428 = vcmp.eq.s32.totalorder %v300, %v364
        %vm429 = vcmp.eq.s32.totalorder %v301, %v357
        %vm430 = vcmp.eq.s32.totalorder %v301, %v358
        %vm431 = vcmp.eq.s32.totalorder %v301, %v359
        %vm432 = vcmp.eq.s32.totalorder %v301, %v360
        %vm433 = vcmp.eq.s32.totalorder %v301, %v361
        %vm434 = vcmp.eq.s32.totalorder %v301, %v362
        %vm435 = vcmp.eq.s32.totalorder %v301, %v363
        %vm436 = vcmp.eq.s32.totalorder %v301, %v364
        %vm437 = vcmp.eq.s32.totalorder %v302, %v357
        %vm438 = vcmp.eq.s32.totalorder %v302, %v358
        %vm439 = vcmp.eq.s32.totalorder %v302, %v359
        %vm440 = vcmp.eq.s32.totalorder %v302, %v360
        %vm441 = vcmp.eq.s32.totalorder %v302, %v361
        %vm442 = vcmp.eq.s32.totalorder %v302, %v362
        %vm443 = vcmp.eq.s32.totalorder %v302, %v363
        %vm444 = vcmp.eq.s32.totalorder %v302, %v364
        %vm445 = vcmp.eq.s32.totalorder %v303, %v357
        %vm446 = vcmp.eq.s32.totalorder %v303, %v358
        %vm447 = vcmp.eq.s32.totalorder %v303, %v359
        %vm448 = vcmp.eq.s32.totalorder %v303, %v360
        %vm449 = vcmp.eq.s32.totalorder %v303, %v361
        %vm450 = vcmp.eq.s32.totalorder %v303, %v362
        %vm451 = vcmp.eq.s32.totalorder %v303, %v363
        %vm452 = vcmp.eq.s32.totalorder %v303, %v364
        %vm453 = vcmp.eq.s32.totalorder %v304, %v357
        %vm454 = vcmp.eq.s32.totalorder %v304, %v358
        %vm455 = vcmp.eq.s32.totalorder %v304, %v359
        %vm456 = vcmp.eq.s32.totalorder %v304, %v360
        %vm457 = vcmp.eq.s32.totalorder %v304, %v361
        %vm458 = vcmp.eq.s32.totalorder %v304, %v362
        %vm459 = vcmp.eq.s32.totalorder %v304, %v363
        %vm460 = vcmp.eq.s32.totalorder %v304, %v364
        %vm461 = vcmp.eq.s32.totalorder %v305, %v357
        %vm462 = vcmp.eq.s32.totalorder %v305, %v358
        %vm463 = vcmp.eq.s32.totalorder %v305, %v359
        %vm464 = vcmp.eq.s32.totalorder %v305, %v360
        %vm465 = vcmp.eq.s32.totalorder %v305, %v361
        %vm466 = vcmp.eq.s32.totalorder %v305, %v362
        %vm467 = vcmp.eq.s32.totalorder %v305, %v363
        %vm468 = vcmp.eq.s32.totalorder %v305, %v364
        %vm469 = vcmp.eq.s32.totalorder %v306, %v357
        %vm470 = vcmp.eq.s32.totalorder %v306, %v358
        %vm471 = vcmp.eq.s32.totalorder %v306, %v359
        %vm472 = vcmp.eq.s32.totalorder %v306, %v360
        %vm473 = vcmp.eq.s32.totalorder %v306, %v361
        %vm474 = vcmp.eq.s32.totalorder %v306, %v362
        %vm475 = vcmp.eq.s32.totalorder %v306, %v363
        %vm476 = vcmp.eq.s32.totalorder %v306, %v364
        %vm477 = vcmp.eq.s32.totalorder %v307, %v357
        %vm478 = vcmp.eq.s32.totalorder %v307, %v358
        %vm479 = vcmp.eq.s32.totalorder %v307, %v359
        %vm480 = vcmp.eq.s32.totalorder %v307, %v360
        %vm481 = vcmp.eq.s32.totalorder %v307, %v361
        %vm482 = vcmp.eq.s32.totalorder %v307, %v362
        %vm483 = vcmp.eq.s32.totalorder %v307, %v363
        %vm484 = vcmp.eq.s32.totalorder %v307, %v364
        %vm485 = vcmp.eq.s32.totalorder %v308, %v357
        %vm486 = vcmp.eq.s32.totalorder %v308, %v358
        %vm487 = vcmp.eq.s32.totalorder %v308, %v359
        %vm488 = vcmp.eq.s32.totalorder %v308, %v360
        %vm489 = vcmp.eq.s32.totalorder %v308, %v361
        %vm490 = vcmp.eq.s32.totalorder %v308, %v362
        %vm491 = vcmp.eq.s32.totalorder %v308, %v363
        %vm492 = vcmp.eq.s32.totalorder %v308, %v364
        %vm493 = vcmp.eq.s32.totalorder %v309, %v357
        %vm494 = vcmp.eq.s32.totalorder %v309, %v358
        %vm495 = vcmp.eq.s32.totalorder %v309, %v359
        %vm496 = vcmp.eq.s32.totalorder %v309, %v360
        %vm497 = vcmp.eq.s32.totalorder %v309, %v361
        %vm498 = vcmp.eq.s32.totalorder %v309, %v362
        %vm499 = vcmp.eq.s32.totalorder %v309, %v363
        %vm500 = vcmp.eq.s32.totalorder %v309, %v364
        %vm501 = vcmp.eq.s32.totalorder %v310, %v357
        %vm502 = vcmp.eq.s32.totalorder %v310, %v358
        %vm503 = vcmp.eq.s32.totalorder %v310, %v359
        %vm504 = vcmp.eq.s32.totalorder %v310, %v360
        %vm505 = vcmp.eq.s32.totalorder %v310, %v361
        %vm506 = vcmp.eq.s32.totalorder %v310, %v362
        %vm507 = vcmp.eq.s32.totalorder %v310, %v363
        %vm508 = vcmp.eq.s32.totalorder %v310, %v364
        %vm509 = vcmp.eq.s32.totalorder %v311, %v357
        %vm510 = vcmp.eq.s32.totalorder %v311, %v358
        %vm511 = vcmp.eq.s32.totalorder %v311, %v359
        %vm512 = vcmp.eq.s32.totalorder %v311, %v360
        %vm513 = vcmp.eq.s32.totalorder %v311, %v361
        %vm514 = vcmp.eq.s32.totalorder %v311, %v362
        %vm515 = vcmp.eq.s32.totalorder %v311, %v363
        %vm516 = vcmp.eq.s32.totalorder %v311, %v364
        %vm517 = vcmp.eq.s32.totalorder %v312, %v357
        %vm518 = vcmp.eq.s32.totalorder %v312, %v358
        %vm519 = vcmp.eq.s32.totalorder %v312, %v359
        %vm520 = vcmp.eq.s32.totalorder %v312, %v360
        %vm521 = vcmp.eq.s32.totalorder %v312, %v361
        %vm522 = vcmp.eq.s32.totalorder %v312, %v362
        %vm523 = vcmp.eq.s32.totalorder %v312, %v363
        %vm524 = vcmp.eq.s32.totalorder %v312, %v364
        %vm525 = vcmp.eq.s32.totalorder %v313, %v357
        %vm526 = vcmp.eq.s32.totalorder %v313, %v358
        %vm527 = vcmp.eq.s32.totalorder %v313, %v359
        %vm528 = vcmp.eq.s32.totalorder %v313, %v360
        %vm529 = vcmp.eq.s32.totalorder %v313, %v361
        %vm530 = vcmp.eq.s32.totalorder %v313, %v362
        %vm531 = vcmp.eq.s32.totalorder %v313, %v363
        %vm532 = vcmp.eq.s32.totalorder %v313, %v364
        %vm533 = vcmp.eq.s32.totalorder %v314, %v357
        %vm534 = vcmp.eq.s32.totalorder %v314, %v358
        %vm535 = vcmp.eq.s32.totalorder %v314, %v359
        %vm536 = vcmp.eq.s32.totalorder %v314, %v360
        %vm537 = vcmp.eq.s32.totalorder %v314, %v361
        %vm538 = vcmp.eq.s32.totalorder %v314, %v362
        %vm539 = vcmp.eq.s32.totalorder %v314, %v363
        %vm540 = vcmp.eq.s32.totalorder %v314, %v364
        %vm541 = vcmp.eq.s32.totalorder %v315, %v357
        %vm542 = vcmp.eq.s32.totalorder %v315, %v358
        %vm543 = vcmp.eq.s32.totalorder %v315, %v359
        %vm544 = vcmp.eq.s32.totalorder %v315, %v360
        %vm545 = vcmp.eq.s32.totalorder %v315, %v361
        %vm546 = vcmp.eq.s32.totalorder %v315, %v362
        %vm547 = vcmp.eq.s32.totalorder %v315, %v363
        %vm548 = vcmp.eq.s32.totalorder %v315, %v364
        %vm549 = vcmp.eq.s32.totalorder %v316, %v357
        %vm550 = vcmp.eq.s32.totalorder %v316, %v358
        %vm551 = vcmp.eq.s32.totalorder %v316, %v359
        %vm552 = vcmp.eq.s32.totalorder %v316, %v360
        %vm553 = vcmp.eq.s32.totalorder %v316, %v361
        %vm554 = vcmp.eq.s32.totalorder %v316, %v362
        %vm555 = vcmp.eq.s32.totalorder %v316, %v363
        %vm556 = vcmp.eq.s32.totalorder %v316, %v364
        %vm557 = vcmp.eq.s32.totalorder %v317, %v357
        %vm558 = vcmp.eq.s32.totalorder %v317, %v358
        %vm559 = vcmp.eq.s32.totalorder %v317, %v359
        %vm560 = vcmp.eq.s32.totalorder %v317, %v360
        %vm561 = vcmp.eq.s32.totalorder %v317, %v361
        %vm562 = vcmp.eq.s32.totalorder %v317, %v362
        %vm563 = vcmp.eq.s32.totalorder %v317, %v363
        %vm564 = vcmp.eq.s32.totalorder %v317, %v364
        %vm565 = vcmp.eq.s32.totalorder %v318, %v357
        %vm566 = vcmp.eq.s32.totalorder %v318, %v358
        %vm567 = vcmp.eq.s32.totalorder %v318, %v359
        %vm568 = vcmp.eq.s32.totalorder %v318, %v360
        %vm569 = vcmp.eq.s32.totalorder %v318, %v361
        %vm570 = vcmp.eq.s32.totalorder %v318, %v362
        %vm571 = vcmp.eq.s32.totalorder %v318, %v363
        %vm572 = vcmp.eq.s32.totalorder %v318, %v364
        %vm573 = vcmp.eq.s32.totalorder %v319, %v357
        %vm574 = vcmp.eq.s32.totalorder %v319, %v358
        %vm575 = vcmp.eq.s32.totalorder %v319, %v359
        %vm576 = vcmp.eq.s32.totalorder %v319, %v360
        %vm577 = vcmp.eq.s32.totalorder %v319, %v361
        %vm578 = vcmp.eq.s32.totalorder %v319, %v362
        %vm579 = vcmp.eq.s32.totalorder %v319, %v363
        %vm580 = vcmp.eq.s32.totalorder %v319, %v364
        %vm581 = vcmp.eq.s32.totalorder %v320, %v357
        %vm582 = vcmp.eq.s32.totalorder %v320, %v358
        %vm583 = vcmp.eq.s32.totalorder %v320, %v359
        %vm584 = vcmp.eq.s32.totalorder %v320, %v360
        %vm585 = vcmp.eq.s32.totalorder %v320, %v361
        %vm586 = vcmp.eq.s32.totalorder %v320, %v362
        %vm587 = vcmp.eq.s32.totalorder %v320, %v363
        %vm588 = vcmp.eq.s32.totalorder %v320, %v364
        %vm589 = vcmp.eq.s32.totalorder %v321, %v357
        %vm590 = vcmp.eq.s32.totalorder %v321, %v358
        %vm591 = vcmp.eq.s32.totalorder %v321, %v359
        %vm592 = vcmp.eq.s32.totalorder %v321, %v360
        %vm593 = vcmp.eq.s32.totalorder %v321, %v361
        %vm594 = vcmp.eq.s32.totalorder %v321, %v362
        %vm595 = vcmp.eq.s32.totalorder %v321, %v363
        %vm596 = vcmp.eq.s32.totalorder %v321, %v364
        %vm597 = vcmp.eq.s32.totalorder %v322, %v357
        %vm598 = vcmp.eq.s32.totalorder %v322, %v358
        %vm599 = vcmp.eq.s32.totalorder %v322, %v359
        %vm600 = vcmp.eq.s32.totalorder %v322, %v360
        %vm601 = vcmp.eq.s32.totalorder %v322, %v361
        %vm602 = vcmp.eq.s32.totalorder %v322, %v362
        %vm603 = vcmp.eq.s32.totalorder %v322, %v363
        %vm604 = vcmp.eq.s32.totalorder %v322, %v364
        %vm605 = vcmp.eq.s32.totalorder %v323, %v357
        %vm606 = vcmp.eq.s32.totalorder %v323, %v358
        %vm607 = vcmp.eq.s32.totalorder %v323, %v359
        %vm608 = vcmp.eq.s32.totalorder %v323, %v360
        %vm609 = vcmp.eq.s32.totalorder %v323, %v361
        %vm610 = vcmp.eq.s32.totalorder %v323, %v362
        %vm611 = vcmp.eq.s32.totalorder %v323, %v363
        %vm612 = vcmp.eq.s32.totalorder %v323, %v364
        %vm613 = vcmp.eq.s32.totalorder %v324, %v357
        %vm614 = vcmp.eq.s32.totalorder %v324, %v358
        %vm615 = vcmp.eq.s32.totalorder %v324, %v359
        %vm616 = vcmp.eq.s32.totalorder %v324, %v360
        %vm617 = vcmp.eq.s32.totalorder %v324, %v361
        %vm618 = vcmp.eq.s32.totalorder %v324, %v362
        %vm619 = vcmp.eq.s32.totalorder %v324, %v363
        %vm620 = vcmp.eq.s32.totalorder %v324, %v364
        %vm621 = vcmp.eq.s32.totalorder %v325, %v357
        %vm622 = vcmp.eq.s32.totalorder %v325, %v358
        %vm623 = vcmp.eq.s32.totalorder %v325, %v359
        %vm624 = vcmp.eq.s32.totalorder %v325, %v360
        %vm625 = vcmp.eq.s32.totalorder %v325, %v361
        %vm626 = vcmp.eq.s32.totalorder %v325, %v362
        %vm627 = vcmp.eq.s32.totalorder %v325, %v363
        %vm628 = vcmp.eq.s32.totalorder %v325, %v364
        %vm629 = vcmp.eq.s32.totalorder %v326, %v357
        %vm630 = vcmp.eq.s32.totalorder %v326, %v358
        %vm631 = vcmp.eq.s32.totalorder %v326, %v359
        %vm632 = vcmp.eq.s32.totalorder %v326, %v360
        %vm633 = vcmp.eq.s32.totalorder %v326, %v361
        %vm634 = vcmp.eq.s32.totalorder %v326, %v362
        %vm635 = vcmp.eq.s32.totalorder %v326, %v363
        %vm636 = vcmp.eq.s32.totalorder %v326, %v364
        %vm637 = vcmp.eq.s32.totalorder %v327, %v357
        %vm638 = vcmp.eq.s32.totalorder %v327, %v358
        %vm639 = vcmp.eq.s32.totalorder %v327, %v359
        %vm640 = vcmp.eq.s32.totalorder %v327, %v360
        %vm641 = vcmp.eq.s32.totalorder %v327, %v361
        %vm642 = vcmp.eq.s32.totalorder %v327, %v362
        %vm643 = vcmp.eq.s32.totalorder %v327, %v363
        %vm644 = vcmp.eq.s32.totalorder %v327, %v364
        %vm645 = vcmp.eq.s32.totalorder %v328, %v357
        %vm646 = vcmp.eq.s32.totalorder %v328, %v358
        %vm647 = vcmp.eq.s32.totalorder %v328, %v359
        %vm648 = vcmp.eq.s32.totalorder %v328, %v360
        %vm649 = vcmp.eq.s32.totalorder %v328, %v361
        %vm650 = vcmp.eq.s32.totalorder %v328, %v362
        %vm651 = vcmp.eq.s32.totalorder %v328, %v363
        %vm652 = vcmp.eq.s32.totalorder %v328, %v364
        %vm653 = vcmp.eq.s32.totalorder %v329, %v357
        %vm654 = vcmp.eq.s32.totalorder %v329, %v358
        %vm655 = vcmp.eq.s32.totalorder %v329, %v359
        %vm656 = vcmp.eq.s32.totalorder %v329, %v360
        %vm657 = vcmp.eq.s32.totalorder %v329, %v361
        %vm658 = vcmp.eq.s32.totalorder %v329, %v362
        %vm659 = vcmp.eq.s32.totalorder %v329, %v363
        %vm660 = vcmp.eq.s32.totalorder %v329, %v364
        %vm661 = vcmp.eq.s32.totalorder %v330, %v357
        %vm662 = vcmp.eq.s32.totalorder %v330, %v358
        %vm663 = vcmp.eq.s32.totalorder %v330, %v359
        %vm664 = vcmp.eq.s32.totalorder %v330, %v360
        %vm665 = vcmp.eq.s32.totalorder %v330, %v361
        %vm666 = vcmp.eq.s32.totalorder %v330, %v362
        %vm667 = vcmp.eq.s32.totalorder %v330, %v363
        %vm668 = vcmp.eq.s32.totalorder %v330, %v364
        %vm669 = vcmp.eq.s32.totalorder %v331, %v357
        %vm670 = vcmp.eq.s32.totalorder %v331, %v358
        %vm671 = vcmp.eq.s32.totalorder %v331, %v359
        %vm672 = vcmp.eq.s32.totalorder %v331, %v360
        %vm673 = vcmp.eq.s32.totalorder %v331, %v361
        %vm674 = vcmp.eq.s32.totalorder %v331, %v362
        %vm675 = vcmp.eq.s32.totalorder %v331, %v363
        %vm676 = vcmp.eq.s32.totalorder %v331, %v364
        %vm677 = vcmp.eq.s32.totalorder %v332, %v357
        %vm678 = vcmp.eq.s32.totalorder %v332, %v358
        %vm679 = vcmp.eq.s32.totalorder %v332, %v359
        %vm680 = vcmp.eq.s32.totalorder %v332, %v360
        %vm681 = vcmp.eq.s32.totalorder %v332, %v361
        %vm682 = vcmp.eq.s32.totalorder %v332, %v362
        %vm683 = vcmp.eq.s32.totalorder %v332, %v363
        %vm684 = vcmp.eq.s32.totalorder %v332, %v364
        %vm685 = vcmp.eq.s32.totalorder %v333, %v357
        %vm686 = vcmp.eq.s32.totalorder %v333, %v358
        %vm687 = vcmp.eq.s32.totalorder %v333, %v359
        %vm688 = vcmp.eq.s32.totalorder %v333, %v360
        %vm689 = vcmp.eq.s32.totalorder %v333, %v361
        %vm690 = vcmp.eq.s32.totalorder %v333, %v362
        %vm691 = vcmp.eq.s32.totalorder %v333, %v363
        %vm692 = vcmp.eq.s32.totalorder %v333, %v364
        %vm693 = vcmp.eq.s32.totalorder %v334, %v357
        %vm694 = vcmp.eq.s32.totalorder %v334, %v358
        %vm695 = vcmp.eq.s32.totalorder %v334, %v359
        %vm696 = vcmp.eq.s32.totalorder %v334, %v360
        %vm697 = vcmp.eq.s32.totalorder %v334, %v361
        %vm698 = vcmp.eq.s32.totalorder %v334, %v362
        %vm699 = vcmp.eq.s32.totalorder %v334, %v363
        %vm700 = vcmp.eq.s32.totalorder %v334, %v364
        %vm701 = vcmp.eq.s32.totalorder %v335, %v357
        %vm702 = vcmp.eq.s32.totalorder %v335, %v358
        %vm703 = vcmp.eq.s32.totalorder %v335, %v359
        %vm704 = vcmp.eq.s32.totalorder %v335, %v360
        %vm705 = vcmp.eq.s32.totalorder %v335, %v361
        %vm706 = vcmp.eq.s32.totalorder %v335, %v362
        %vm707 = vcmp.eq.s32.totalorder %v335, %v363
        %vm708 = vcmp.eq.s32.totalorder %v335, %v364
        %vm709 = vcmp.eq.s32.totalorder %v336, %v357
        %vm710 = vcmp.eq.s32.totalorder %v336, %v358
        %vm711 = vcmp.eq.s32.totalorder %v336, %v359
        %vm712 = vcmp.eq.s32.totalorder %v336, %v360
        %vm713 = vcmp.eq.s32.totalorder %v336, %v361
        %vm714 = vcmp.eq.s32.totalorder %v336, %v362
        %vm715 = vcmp.eq.s32.totalorder %v336, %v363
        %vm716 = vcmp.eq.s32.totalorder %v336, %v364
        %vm717 = vcmp.eq.s32.totalorder %v337, %v357
        %vm718 = vcmp.eq.s32.totalorder %v337, %v358
        %vm719 = vcmp.eq.s32.totalorder %v337, %v359
        %vm720 = vcmp.eq.s32.totalorder %v337, %v360
        %vm721 = vcmp.eq.s32.totalorder %v337, %v361
        %vm722 = vcmp.eq.s32.totalorder %v337, %v362
        %vm723 = vcmp.eq.s32.totalorder %v337, %v363
        %vm724 = vcmp.eq.s32.totalorder %v337, %v364
        %vm725 = vcmp.eq.s32.totalorder %v338, %v357
        %vm726 = vcmp.eq.s32.totalorder %v338, %v358
        %vm727 = vcmp.eq.s32.totalorder %v338, %v359
        %vm728 = vcmp.eq.s32.totalorder %v338, %v360
        %vm729 = vcmp.eq.s32.totalorder %v338, %v361
        %vm730 = vcmp.eq.s32.totalorder %v338, %v362
        %vm731 = vcmp.eq.s32.totalorder %v338, %v363
        %vm732 = vcmp.eq.s32.totalorder %v338, %v364
        %vm733 = vcmp.eq.s32.totalorder %v339, %v357
        %vm734 = vcmp.eq.s32.totalorder %v339, %v358
        %vm735 = vcmp.eq.s32.totalorder %v339, %v359
        %vm736 = vcmp.eq.s32.totalorder %v339, %v360
        %vm737 = vcmp.eq.s32.totalorder %v339, %v361
        %vm738 = vcmp.eq.s32.totalorder %v339, %v362
        %vm739 = vcmp.eq.s32.totalorder %v339, %v363
        %vm740 = vcmp.eq.s32.totalorder %v339, %v364
        %vm741 = vcmp.eq.s32.totalorder %v340, %v357
        %vm742 = vcmp.eq.s32.totalorder %v340, %v358
        %vm743 = vcmp.eq.s32.totalorder %v340, %v359
        %vm744 = vcmp.eq.s32.totalorder %v340, %v360
        %vm745 = vcmp.eq.s32.totalorder %v340, %v361
        %vm746 = vcmp.eq.s32.totalorder %v340, %v362
        %vm747 = vcmp.eq.s32.totalorder %v340, %v363
        %vm748 = vcmp.eq.s32.totalorder %v340, %v364
        %vm749 = vcmp.eq.s32.totalorder %v341, %v357
        %vm750 = vcmp.eq.s32.totalorder %v341, %v358
        %vm751 = vcmp.eq.s32.totalorder %v341, %v359
        %vm752 = vcmp.eq.s32.totalorder %v341, %v360
        %vm753 = vcmp.eq.s32.totalorder %v341, %v361
        %vm754 = vcmp.eq.s32.totalorder %v341, %v362
        %vm755 = vcmp.eq.s32.totalorder %v341, %v363
        %vm756 = vcmp.eq.s32.totalorder %v341, %v364
        %vm757 = vcmp.eq.s32.totalorder %v342, %v357
        %vm758 = vcmp.eq.s32.totalorder %v342, %v358
        %vm759 = vcmp.eq.s32.totalorder %v342, %v359
        %vm760 = vcmp.eq.s32.totalorder %v342, %v360
        %vm761 = vcmp.eq.s32.totalorder %v342, %v361
        %vm762 = vcmp.eq.s32.totalorder %v342, %v362
        %vm763 = vcmp.eq.s32.totalorder %v342, %v363
        %vm764 = vcmp.eq.s32.totalorder %v342, %v364
        %vm765 = vcmp.eq.s32.totalorder %v343, %v357
        %vm766 = vcmp.eq.s32.totalorder %v343, %v358
        %vm767 = vcmp.eq.s32.totalorder %v343, %v359
        %vm768 = vcmp.eq.s32.totalorder %v343, %v360
        %vm769 = vcmp.eq.s32.totalorder %v343, %v361
        %vm770 = vcmp.eq.s32.totalorder %v343, %v362
        %vm771 = vcmp.eq.s32.totalorder %v343, %v363
        %vm772 = vcmp.eq.s32.totalorder %v343, %v364
        %vm773 = vcmp.eq.s32.totalorder %v344, %v357
        %vm774 = vcmp.eq.s32.totalorder %v344, %v358
        %vm775 = vcmp.eq.s32.totalorder %v344, %v359
        %vm776 = vcmp.eq.s32.totalorder %v344, %v360
        %vm777 = vcmp.eq.s32.totalorder %v344, %v361
        %vm778 = vcmp.eq.s32.totalorder %v344, %v362
        %vm779 = vcmp.eq.s32.totalorder %v344, %v363
        %vm780 = vcmp.eq.s32.totalorder %v344, %v364
        %vm781 = vcmp.eq.s32.totalorder %v345, %v357
        %vm782 = vcmp.eq.s32.totalorder %v345, %v358
        %vm783 = vcmp.eq.s32.totalorder %v345, %v359
        %vm784 = vcmp.eq.s32.totalorder %v345, %v360
        %vm785 = vcmp.eq.s32.totalorder %v345, %v361
        %vm786 = vcmp.eq.s32.totalorder %v345, %v362
        %vm787 = vcmp.eq.s32.totalorder %v345, %v363
        %vm788 = vcmp.eq.s32.totalorder %v345, %v364
        %vm789 = vcmp.eq.s32.totalorder %v346, %v357
        %vm790 = vcmp.eq.s32.totalorder %v346, %v358
        %vm791 = vcmp.eq.s32.totalorder %v346, %v359
        %vm792 = vcmp.eq.s32.totalorder %v346, %v360
        %vm793 = vcmp.eq.s32.totalorder %v346, %v361
        %vm794 = vcmp.eq.s32.totalorder %v346, %v362
        %vm795 = vcmp.eq.s32.totalorder %v346, %v363
        %vm796 = vcmp.eq.s32.totalorder %v346, %v364
        %vm797 = vcmp.eq.s32.totalorder %v347, %v357
        %vm798 = vcmp.eq.s32.totalorder %v347, %v358
        %vm799 = vcmp.eq.s32.totalorder %v347, %v359
        %vm800 = vcmp.eq.s32.totalorder %v347, %v360
        %vm801 = vcmp.eq.s32.totalorder %v347, %v361
        %vm802 = vcmp.eq.s32.totalorder %v347, %v362
        %vm803 = vcmp.eq.s32.totalorder %v347, %v363
        %vm804 = vcmp.eq.s32.totalorder %v347, %v364
        %vm805 = vcmp.eq.s32.totalorder %v348, %v357
        %vm806 = vcmp.eq.s32.totalorder %v348, %v358
        %vm807 = vcmp.eq.s32.totalorder %v348, %v359
        %vm808 = vcmp.eq.s32.totalorder %v348, %v360
        %vm809 = vcmp.eq.s32.totalorder %v348, %v361
        %vm810 = vcmp.eq.s32.totalorder %v348, %v362
        %vm811 = vcmp.eq.s32.totalorder %v348, %v363
        %vm812 = vcmp.eq.s32.totalorder %v348, %v364
        %vm813 = vcmp.eq.s32.totalorder %v349, %v357
        %vm814 = vcmp.eq.s32.totalorder %v349, %v358
        %vm815 = vcmp.eq.s32.totalorder %v349, %v359
        %vm816 = vcmp.eq.s32.totalorder %v349, %v360
        %vm817 = vcmp.eq.s32.totalorder %v349, %v361
        %vm818 = vcmp.eq.s32.totalorder %v349, %v362
        %vm819 = vcmp.eq.s32.totalorder %v349, %v363
        %vm820 = vcmp.eq.s32.totalorder %v349, %v364
        %vm821 = vcmp.eq.s32.totalorder %v350, %v357
        %vm822 = vcmp.eq.s32.totalorder %v350, %v358
        %vm823 = vcmp.eq.s32.totalorder %v350, %v359
        %vm824 = vcmp.eq.s32.totalorder %v350, %v360
        %vm825 = vcmp.eq.s32.totalorder %v350, %v361
        %vm826 = vcmp.eq.s32.totalorder %v350, %v362
        %vm827 = vcmp.eq.s32.totalorder %v350, %v363
        %vm828 = vcmp.eq.s32.totalorder %v350, %v364
        %vm829 = vcmp.eq.s32.totalorder %v351, %v357
        %vm830 = vcmp.eq.s32.totalorder %v351, %v358
        %vm831 = vcmp.eq.s32.totalorder %v351, %v359
        %vm832 = vcmp.eq.s32.totalorder %v351, %v360
        %vm833 = vcmp.eq.s32.totalorder %v351, %v361
        %vm834 = vcmp.eq.s32.totalorder %v351, %v362
        %vm835 = vcmp.eq.s32.totalorder %v351, %v363
        %vm836 = vcmp.eq.s32.totalorder %v351, %v364
        %vm837 = vcmp.eq.s32.totalorder %v352, %v357
        %vm838 = vcmp.eq.s32.totalorder %v352, %v358
        %vm839 = vcmp.eq.s32.totalorder %v352, %v359
        %vm840 = vcmp.eq.s32.totalorder %v352, %v360
        %vm841 = vcmp.eq.s32.totalorder %v352, %v361
        %vm842 = vcmp.eq.s32.totalorder %v352, %v362
        %vm843 = vcmp.eq.s32.totalorder %v352, %v363
        %vm844 = vcmp.eq.s32.totalorder %v352, %v364
        %vm845 = vcmp.eq.s32.totalorder %v353, %v357
        %vm846 = vcmp.eq.s32.totalorder %v353, %v358
        %vm847 = vcmp.eq.s32.totalorder %v353, %v359
        %vm848 = vcmp.eq.s32.totalorder %v353, %v360
        %vm849 = vcmp.eq.s32.totalorder %v353, %v361
        %vm850 = vcmp.eq.s32.totalorder %v353, %v362
        %vm851 = vcmp.eq.s32.totalorder %v353, %v363
        %vm852 = vcmp.eq.s32.totalorder %v353, %v364
        %vm853 = vcmp.eq.s32.totalorder %v354, %v357
        %vm854 = vcmp.eq.s32.totalorder %v354, %v358
        %vm855 = vcmp.eq.s32.totalorder %v354, %v359
        %vm856 = vcmp.eq.s32.totalorder %v354, %v360
        %vm857 = vcmp.eq.s32.totalorder %v354, %v361
        %vm858 = vcmp.eq.s32.totalorder %v354, %v362
        %vm859 = vcmp.eq.s32.totalorder %v354, %v363
        %vm860 = vcmp.eq.s32.totalorder %v354, %v364
        %vm861 = vcmp.eq.s32.totalorder %v355, %v357
        %vm862 = vcmp.eq.s32.totalorder %v355, %v358
        %vm863 = vcmp.eq.s32.totalorder %v355, %v359
        %vm864 = vcmp.eq.s32.totalorder %v355, %v360
        %vm865 = vcmp.eq.s32.totalorder %v355, %v361
        %vm866 = vcmp.eq.s32.totalorder %v355, %v362
        %vm867 = vcmp.eq.s32.totalorder %v355, %v363
        %vm868 = vcmp.eq.s32.totalorder %v355, %v364
        %vm869 = vcmp.eq.s32.totalorder %v356, %v357
        %vm870 = vcmp.eq.s32.totalorder %v356, %v358
        %vm871 = vcmp.eq.s32.totalorder %v356, %v359
        %vm872 = vcmp.eq.s32.totalorder %v356, %v360
        %vm873 = vcmp.eq.s32.totalorder %v356, %v361
        %vm874 = vcmp.eq.s32.totalorder %v356, %v362
        %vm875 = vcmp.eq.s32.totalorder %v356, %v363
        %vm876 = vcmp.eq.s32.totalorder %v356, %v364
        %v877 = vsel %vm365, 1, 0
        %v878 = vsel %vm366, 1, 0
        %v879 = vsel %vm367, 1, 0
        %v880 = vsel %vm368, 1, 0
        %v881 = vsel %vm369, 1, 0
        %v882 = vsel %vm370, 1, 0
        %v883 = vsel %vm371, 1, 0
        %v884 = vsel %vm372, 1, 0
        %v885 = vsel %vm373, 1, 0
        %v886 = vsel %vm374, 1, 0
        %v887 = vsel %vm375, 1, 0
        %v888 = vsel %vm376, 1, 0
        %v889 = vsel %vm377, 1, 0
        %v890 = vsel %vm378, 1, 0
        %v891 = vsel %vm379, 1, 0
        %v892 = vsel %vm380, 1, 0
        %v893 = vsel %vm381, 1, 0
        %v894 = vsel %vm382, 1, 0
        %v895 = vsel %vm383, 1, 0
        %v896 = vsel %vm384, 1, 0
        %v897 = vsel %vm385, 1, 0
        %v898 = vsel %vm386, 1, 0
        %v899 = vsel %vm387, 1, 0
        %v900 = vsel %vm388, 1, 0
        %v901 = vsel %vm389, 1, 0
        %v902 = vsel %vm390, 1, 0
        %v903 = vsel %vm391, 1, 0
        %v904 = vsel %vm392, 1, 0
        %v905 = vsel %vm393, 1, 0
        %v906 = vsel %vm394, 1, 0
        %v907 = vsel %vm395, 1, 0
        %v908 = vsel %vm396, 1, 0
        %v909 = vsel %vm397, 1, 0
        %v910 = vsel %vm398, 1, 0
        %v911 = vsel %vm399, 1, 0
        %v912 = vsel %vm400, 1, 0
        %v913 = vsel %vm401, 1, 0
        %v914 = vsel %vm402, 1, 0
        %v915 = vsel %vm403, 1, 0
        %v916 = vsel %vm404, 1, 0
        %v917 = vsel %vm405, 1, 0
        %v918 = vsel %vm406, 1, 0
        %v919 = vsel %vm407, 1, 0
        %v920 = vsel %vm408, 1, 0
        %v921 = vsel %vm409, 1, 0
        %v922 = vsel %vm410, 1, 0
        %v923 = vsel %vm411, 1, 0
        %v924 = vsel %vm412, 1, 0
        %v925 = vsel %vm413, 1, 0
        %v926 = vsel %vm414, 1, 0
        %v927 = vsel %vm415, 1, 0
        %v928 = vsel %vm416, 1, 0
        %v929 = vsel %vm417, 1, 0
        %v930 = vsel %vm418, 1, 0
        %v931 = vsel %vm419, 1, 0
        %v932 = vsel %vm420, 1, 0
        %v933 = vsel %vm421, 1, 0
        %v934 = vsel %vm422, 1, 0
        %v935 = vsel %vm423, 1, 0
        %v936 = vsel %vm424, 1, 0
        %v937 = vsel %vm425, 1, 0
        %v938 = vsel %vm426, 1, 0
        %v939 = vsel %vm427, 1, 0
        %v940 = vsel %vm428, 1, 0
        %v941 = vsel %vm429, 1, 0
        %v942 = vsel %vm430, 1, 0
        %v943 = vsel %vm431, 1, 0
        %v944 = vsel %vm432, 1, 0
        %v945 = vsel %vm433, 1, 0
        %v946 = vsel %vm434, 1, 0
        %v947 = vsel %vm435, 1, 0
        %v948 = vsel %vm436, 1, 0
        %v949 = vsel %vm437, 1, 0
        %v950 = vsel %vm438, 1, 0
        %v951 = vsel %vm439, 1, 0
        %v952 = vsel %vm440, 1, 0
        %v953 = vsel %vm441, 1, 0
        %v954 = vsel %vm442, 1, 0
        %v955 = vsel %vm443, 1, 0
        %v956 = vsel %vm444, 1, 0
        %v957 = vsel %vm445, 1, 0
        %v958 = vsel %vm446, 1, 0
        %v959 = vsel %vm447, 1, 0
        %v960 = vsel %vm448, 1, 0
        %v961 = vsel %vm449, 1, 0
        %v962 = vsel %vm450, 1, 0
        %v963 = vsel %vm451, 1, 0
        %v964 = vsel %vm452, 1, 0
        %v965 = vsel %vm453, 1, 0
        %v966 = vsel %vm454, 1, 0
        %v967 = vsel %vm455, 1, 0
        %v968 = vsel %vm456, 1, 0
        %v969 = vsel %vm457, 1, 0
        %v970 = vsel %vm458, 1, 0
        %v971 = vsel %vm459, 1, 0
        %v972 = vsel %vm460, 1, 0
        %v973 = vsel %vm461, 1, 0
        %v974 = vsel %vm462, 1, 0
        %v975 = vsel %vm463, 1, 0
        %v976 = vsel %vm464, 1, 0
        %v977 = vsel %vm465, 1, 0
        %v978 = vsel %vm466, 1, 0
        %v979 = vsel %vm467, 1, 0
        %v980 = vsel %vm468, 1, 0
        %v981 = vsel %vm469, 1, 0
        %v982 = vsel %vm470, 1, 0
        %v983 = vsel %vm471, 1, 0
        %v984 = vsel %vm472, 1, 0
        %v985 = vsel %vm473, 1, 0
        %v986 = vsel %vm474, 1, 0
        %v987 = vsel %vm475, 1, 0
        %v988 = vsel %vm476, 1, 0
        %v989 = vsel %vm477, 1, 0
        %v990 = vsel %vm478, 1, 0
        %v991 = vsel %vm479, 1, 0
        %v992 = vsel %vm480, 1, 0
        %v993 = vsel %vm481, 1, 0
        %v994 = vsel %vm482, 1, 0
        %v995 = vsel %vm483, 1, 0
        %v996 = vsel %vm484, 1, 0
        %v997 = vsel %vm485, 1, 0
        %v998 = vsel %vm486, 1, 0
        %v999 = vsel %vm487, 1, 0
        %v1000 = vsel %vm488, 1, 0
        %v1001 = vsel %vm489, 1, 0
        %v1002 = vsel %vm490, 1, 0
        %v1003 = vsel %vm491, 1, 0
        %v1004 = vsel %vm492, 1, 0
        %v1005 = vsel %vm493, 1, 0
        %v1006 = vsel %vm494, 1, 0
        %v1007 = vsel %vm495, 1, 0
        %v1008 = vsel %vm496, 1, 0
        %v1009 = vsel %vm497, 1, 0
        %v1010 = vsel %vm498, 1, 0
        %v1011 = vsel %vm499, 1, 0
        %v1012 = vsel %vm500, 1, 0
        %v1013 = vsel %vm501, 1, 0
        %v1014 = vsel %vm502, 1, 0
        %v1015 = vsel %vm503, 1, 0
        %v1016 = vsel %vm504, 1, 0
        %v1017 = vsel %vm505, 1, 0
        %v1018 = vsel %vm506, 1, 0
        %v1019 = vsel %vm507, 1, 0
        %v1020 = vsel %vm508, 1, 0
        %v1021 = vsel %vm509, 1, 0
        %v1022 = vsel %vm510, 1, 0
        %v1023 = vsel %vm511, 1, 0
        %v1024 = vsel %vm512, 1, 0
        %v1025 = vsel %vm513, 1, 0
        %v1026 = vsel %vm514, 1, 0
        %v1027 = vsel %vm515, 1, 0
        %v1028 = vsel %vm516, 1, 0
        %v1029 = vsel %vm517, 1, 0
        %v1030 = vsel %vm518, 1, 0
        %v1031 = vsel %vm519, 1, 0
        %v1032 = vsel %vm520, 1, 0
        %v1033 = vsel %vm521, 1, 0
        %v1034 = vsel %vm522, 1, 0
        %v1035 = vsel %vm523, 1, 0
        %v1036 = vsel %vm524, 1, 0
        %v1037 = vsel %vm525, 1, 0
        %v1038 = vsel %vm526, 1, 0
        %v1039 = vsel %vm527, 1, 0
        %v1040 = vsel %vm528, 1, 0
        %v1041 = vsel %vm529, 1, 0
        %v1042 = vsel %vm530, 1, 0
        %v1043 = vsel %vm531, 1, 0
        %v1044 = vsel %vm532, 1, 0
        %v1045 = vsel %vm533, 1, 0
        %v1046 = vsel %vm534, 1, 0
        %v1047 = vsel %vm535, 1, 0
        %v1048 = vsel %vm536, 1, 0
        %v1049 = vsel %vm537, 1, 0
        %v1050 = vsel %vm538, 1, 0
        %v1051 = vsel %vm539, 1, 0
        %v1052 = vsel %vm540, 1, 0
        %v1053 = vsel %vm541, 1, 0
        %v1054 = vsel %vm542, 1, 0
        %v1055 = vsel %vm543, 1, 0
        %v1056 = vsel %vm544, 1, 0
        %v1057 = vsel %vm545, 1, 0
        %v1058 = vsel %vm546, 1, 0
        %v1059 = vsel %vm547, 1, 0
        %v1060 = vsel %vm548, 1, 0
        %v1061 = vsel %vm549, 1, 0
        %v1062 = vsel %vm550, 1, 0
        %v1063 = vsel %vm551, 1, 0
        %v1064 = vsel %vm552, 1, 0
        %v1065 = vsel %vm553, 1, 0
        %v1066 = vsel %vm554, 1, 0
        %v1067 = vsel %vm555, 1, 0
        %v1068 = vsel %vm556, 1, 0
        %v1069 = vsel %vm557, 1, 0
        %v1070 = vsel %vm558, 1, 0
        %v1071 = vsel %vm559, 1, 0
        %v1072 = vsel %vm560, 1, 0
        %v1073 = vsel %vm561, 1, 0
        %v1074 = vsel %vm562, 1, 0
        %v1075 = vsel %vm563, 1, 0
        %v1076 = vsel %vm564, 1, 0
        %v1077 = vsel %vm565, 1, 0
        %v1078 = vsel %vm566, 1, 0
        %v1079 = vsel %vm567, 1, 0
        %v1080 = vsel %vm568, 1, 0
        %v1081 = vsel %vm569, 1, 0
        %v1082 = vsel %vm570, 1, 0
        %v1083 = vsel %vm571, 1, 0
        %v1084 = vsel %vm572, 1, 0
        %v1085 = vsel %vm573, 1, 0
        %v1086 = vsel %vm574, 1, 0
        %v1087 = vsel %vm575, 1, 0
        %v1088 = vsel %vm576, 1, 0
        %v1089 = vsel %vm577, 1, 0
        %v1090 = vsel %vm578, 1, 0
        %v1091 = vsel %vm579, 1, 0
        %v1092 = vsel %vm580, 1, 0
        %v1093 = vsel %vm581, 1, 0
        %v1094 = vsel %vm582, 1, 0
        %v1095 = vsel %vm583, 1, 0
        %v1096 = vsel %vm584, 1, 0
        %v1097 = vsel %vm585, 1, 0
        %v1098 = vsel %vm586, 1, 0
        %v1099 = vsel %vm587, 1, 0
        %v1100 = vsel %vm588, 1, 0
        %v1101 = vsel %vm589, 1, 0
        %v1102 = vsel %vm590, 1, 0
        %v1103 = vsel %vm591, 1, 0
        %v1104 = vsel %vm592, 1, 0
        %v1105 = vsel %vm593, 1, 0
        %v1106 = vsel %vm594, 1, 0
        %v1107 = vsel %vm595, 1, 0
        %v1108 = vsel %vm596, 1, 0
        %v1109 = vsel %vm597, 1, 0
        %v1110 = vsel %vm598, 1, 0
        %v1111 = vsel %vm599, 1, 0
        %v1112 = vsel %vm600, 1, 0
        %v1113 = vsel %vm601, 1, 0
        %v1114 = vsel %vm602, 1, 0
        %v1115 = vsel %vm603, 1, 0
        %v1116 = vsel %vm604, 1, 0
        %v1117 = vsel %vm605, 1, 0
        %v1118 = vsel %vm606, 1, 0
        %v1119 = vsel %vm607, 1, 0
        %v1120 = vsel %vm608, 1, 0
        %v1121 = vsel %vm609, 1, 0
        %v1122 = vsel %vm610, 1, 0
        %v1123 = vsel %vm611, 1, 0
        %v1124 = vsel %vm612, 1, 0
        %v1125 = vsel %vm613, 1, 0
        %v1126 = vsel %vm614, 1, 0
        %v1127 = vsel %vm615, 1, 0
        %v1128 = vsel %vm616, 1, 0
        %v1129 = vsel %vm617, 1, 0
        %v1130 = vsel %vm618, 1, 0
        %v1131 = vsel %vm619, 1, 0
        %v1132 = vsel %vm620, 1, 0
        %v1133 = vsel %vm621, 1, 0
        %v1134 = vsel %vm622, 1, 0
        %v1135 = vsel %vm623, 1, 0
        %v1136 = vsel %vm624, 1, 0
        %v1137 = vsel %vm625, 1, 0
        %v1138 = vsel %vm626, 1, 0
        %v1139 = vsel %vm627, 1, 0
        %v1140 = vsel %vm628, 1, 0
        %v1141 = vsel %vm629, 1, 0
        %v1142 = vsel %vm630, 1, 0
        %v1143 = vsel %vm631, 1, 0
        %v1144 = vsel %vm632, 1, 0
        %v1145 = vsel %vm633, 1, 0
        %v1146 = vsel %vm634, 1, 0
        %v1147 = vsel %vm635, 1, 0
        %v1148 = vsel %vm636, 1, 0
        %v1149 = vsel %vm637, 1, 0
        %v1150 = vsel %vm638, 1, 0
        %v1151 = vsel %vm639, 1, 0
        %v1152 = vsel %vm640, 1, 0
        %v1153 = vsel %vm641, 1, 0
        %v1154 = vsel %vm642, 1, 0
        %v1155 = vsel %vm643, 1, 0
        %v1156 = vsel %vm644, 1, 0
        %v1157 = vsel %vm645, 1, 0
        %v1158 = vsel %vm646, 1, 0
        %v1159 = vsel %vm647, 1, 0
        %v1160 = vsel %vm648, 1, 0
        %v1161 = vsel %vm649, 1, 0
        %v1162 = vsel %vm650, 1, 0
        %v1163 = vsel %vm651, 1, 0
        %v1164 = vsel %vm652, 1, 0
        %v1165 = vsel %vm653, 1, 0
        %v1166 = vsel %vm654, 1, 0
        %v1167 = vsel %vm655, 1, 0
        %v1168 = vsel %vm656, 1, 0
        %v1169 = vsel %vm657, 1, 0
        %v1170 = vsel %vm658, 1, 0
        %v1171 = vsel %vm659, 1, 0
        %v1172 = vsel %vm660, 1, 0
        %v1173 = vsel %vm661, 1, 0
        %v1174 = vsel %vm662, 1, 0
        %v1175 = vsel %vm663, 1, 0
        %v1176 = vsel %vm664, 1, 0
        %v1177 = vsel %vm665, 1, 0
        %v1178 = vsel %vm666, 1, 0
        %v1179 = vsel %vm667, 1, 0
        %v1180 = vsel %vm668, 1, 0
        %v1181 = vsel %vm669, 1, 0
        %v1182 = vsel %vm670, 1, 0
        %v1183 = vsel %vm671, 1, 0
        %v1184 = vsel %vm672, 1, 0
        %v1185 = vsel %vm673, 1, 0
        %v1186 = vsel %vm674, 1, 0
        %v1187 = vsel %vm675, 1, 0
        %v1188 = vsel %vm676, 1, 0
        %v1189 = vsel %vm677, 1, 0
        %v1190 = vsel %vm678, 1, 0
        %v1191 = vsel %vm679, 1, 0
        %v1192 = vsel %vm680, 1, 0
        %v1193 = vsel %vm681, 1, 0
        %v1194 = vsel %vm682, 1, 0
        %v1195 = vsel %vm683, 1, 0
        %v1196 = vsel %vm684, 1, 0
        %v1197 = vsel %vm685, 1, 0
        %v1198 = vsel %vm686, 1, 0
        %v1199 = vsel %vm687, 1, 0
        %v1200 = vsel %vm688, 1, 0
        %v1201 = vsel %vm689, 1, 0
        %v1202 = vsel %vm690, 1, 0
        %v1203 = vsel %vm691, 1, 0
        %v1204 = vsel %vm692, 1, 0
        %v1205 = vsel %vm693, 1, 0
        %v1206 = vsel %vm694, 1, 0
        %v1207 = vsel %vm695, 1, 0
        %v1208 = vsel %vm696, 1, 0
        %v1209 = vsel %vm697, 1, 0
        %v1210 = vsel %vm698, 1, 0
        %v1211 = vsel %vm699, 1, 0
        %v1212 = vsel %vm700, 1, 0
        %v1213 = vsel %vm701, 1, 0
        %v1214 = vsel %vm702, 1, 0
        %v1215 = vsel %vm703, 1, 0
        %v1216 = vsel %vm704, 1, 0
        %v1217 = vsel %vm705, 1, 0
        %v1218 = vsel %vm706, 1, 0
        %v1219 = vsel %vm707, 1, 0
        %v1220 = vsel %vm708, 1, 0
        %v1221 = vsel %vm709, 1, 0
        %v1222 = vsel %vm710, 1, 0
        %v1223 = vsel %vm711, 1, 0
        %v1224 = vsel %vm712, 1, 0
        %v1225 = vsel %vm713, 1, 0
        %v1226 = vsel %vm714, 1, 0
        %v1227 = vsel %vm715, 1, 0
        %v1228 = vsel %vm716, 1, 0
        %v1229 = vsel %vm717, 1, 0
        %v1230 = vsel %vm718, 1, 0
        %v1231 = vsel %vm719, 1, 0
        %v1232 = vsel %vm720, 1, 0
        %v1233 = vsel %vm721, 1, 0
        %v1234 = vsel %vm722, 1, 0
        %v1235 = vsel %vm723, 1, 0
        %v1236 = vsel %vm724, 1, 0
        %v1237 = vsel %vm725, 1, 0
        %v1238 = vsel %vm726, 1, 0
        %v1239 = vsel %vm727, 1, 0
        %v1240 = vsel %vm728, 1, 0
        %v1241 = vsel %vm729, 1, 0
        %v1242 = vsel %vm730, 1, 0
        %v1243 = vsel %vm731, 1, 0
        %v1244 = vsel %vm732, 1, 0
        %v1245 = vsel %vm733, 1, 0
        %v1246 = vsel %vm734, 1, 0
        %v1247 = vsel %vm735, 1, 0
        %v1248 = vsel %vm736, 1, 0
        %v1249 = vsel %vm737, 1, 0
        %v1250 = vsel %vm738, 1, 0
        %v1251 = vsel %vm739, 1, 0
        %v1252 = vsel %vm740, 1, 0
        %v1253 = vsel %vm741, 1, 0
        %v1254 = vsel %vm742, 1, 0
        %v1255 = vsel %vm743, 1, 0
        %v1256 = vsel %vm744, 1, 0
        %v1257 = vsel %vm745, 1, 0
        %v1258 = vsel %vm746, 1, 0
        %v1259 = vsel %vm747, 1, 0
        %v1260 = vsel %vm748, 1, 0
        %v1261 = vsel %vm749, 1, 0
        %v1262 = vsel %vm750, 1, 0
        %v1263 = vsel %vm751, 1, 0
        %v1264 = vsel %vm752, 1, 0
        %v1265 = vsel %vm753, 1, 0
        %v1266 = vsel %vm754, 1, 0
        %v1267 = vsel %vm755, 1, 0
        %v1268 = vsel %vm756, 1, 0
        %v1269 = vsel %vm757, 1, 0
        %v1270 = vsel %vm758, 1, 0
        %v1271 = vsel %vm759, 1, 0
        %v1272 = vsel %vm760, 1, 0
        %v1273 = vsel %vm761, 1, 0
        %v1274 = vsel %vm762, 1, 0
        %v1275 = vsel %vm763, 1, 0
        %v1276 = vsel %vm764, 1, 0
        %v1277 = vsel %vm765, 1, 0
        %v1278 = vsel %vm766, 1, 0
        %v1279 = vsel %vm767, 1, 0
        %v1280 = vsel %vm768, 1, 0
        %v1281 = vsel %vm769, 1, 0
        %v1282 = vsel %vm770, 1, 0
        %v1283 = vsel %vm771, 1, 0
        %v1284 = vsel %vm772, 1, 0
        %v1285 = vsel %vm773, 1, 0
        %v1286 = vsel %vm774, 1, 0
        %v1287 = vsel %vm775, 1, 0
        %v1288 = vsel %vm776, 1, 0
        %v1289 = vsel %vm777, 1, 0
        %v1290 = vsel %vm778, 1, 0
        %v1291 = vsel %vm779, 1, 0
        %v1292 = vsel %vm780, 1, 0
        %v1293 = vsel %vm781, 1, 0
        %v1294 = vsel %vm782, 1, 0
        %v1295 = vsel %vm783, 1, 0
        %v1296 = vsel %vm784, 1, 0
        %v1297 = vsel %vm785, 1, 0
        %v1298 = vsel %vm786, 1, 0
        %v1299 = vsel %vm787, 1, 0
        %v1300 = vsel %vm788, 1, 0
        %v1301 = vsel %vm789, 1, 0
        %v1302 = vsel %vm790, 1, 0
        %v1303 = vsel %vm791, 1, 0
        %v1304 = vsel %vm792, 1, 0
        %v1305 = vsel %vm793, 1, 0
        %v1306 = vsel %vm794, 1, 0
        %v1307 = vsel %vm795, 1, 0
        %v1308 = vsel %vm796, 1, 0
        %v1309 = vsel %vm797, 1, 0
        %v1310 = vsel %vm798, 1, 0
        %v1311 = vsel %vm799, 1, 0
        %v1312 = vsel %vm800, 1, 0
        %v1313 = vsel %vm801, 1, 0
        %v1314 = vsel %vm802, 1, 0
        %v1315 = vsel %vm803, 1, 0
        %v1316 = vsel %vm804, 1, 0
        %v1317 = vsel %vm805, 1, 0
        %v1318 = vsel %vm806, 1, 0
        %v1319 = vsel %vm807, 1, 0
        %v1320 = vsel %vm808, 1, 0
        %v1321 = vsel %vm809, 1, 0
        %v1322 = vsel %vm810, 1, 0
        %v1323 = vsel %vm811, 1, 0
        %v1324 = vsel %vm812, 1, 0
        %v1325 = vsel %vm813, 1, 0
        %v1326 = vsel %vm814, 1, 0
        %v1327 = vsel %vm815, 1, 0
        %v1328 = vsel %vm816, 1, 0
        %v1329 = vsel %vm817, 1, 0
        %v1330 = vsel %vm818, 1, 0
        %v1331 = vsel %vm819, 1, 0
        %v1332 = vsel %vm820, 1, 0
        %v1333 = vsel %vm821, 1, 0
        %v1334 = vsel %vm822, 1, 0
        %v1335 = vsel %vm823, 1, 0
        %v1336 = vsel %vm824, 1, 0
        %v1337 = vsel %vm825, 1, 0
        %v1338 = vsel %vm826, 1, 0
        %v1339 = vsel %vm827, 1, 0
        %v1340 = vsel %vm828, 1, 0
        %v1341 = vsel %vm829, 1, 0
        %v1342 = vsel %vm830, 1, 0
        %v1343 = vsel %vm831, 1, 0
        %v1344 = vsel %vm832, 1, 0
        %v1345 = vsel %vm833, 1, 0
        %v1346 = vsel %vm834, 1, 0
        %v1347 = vsel %vm835, 1, 0
        %v1348 = vsel %vm836, 1, 0
        %v1349 = vsel %vm837, 1, 0
        %v1350 = vsel %vm838, 1, 0
        %v1351 = vsel %vm839, 1, 0
        %v1352 = vsel %vm840, 1, 0
        %v1353 = vsel %vm841, 1, 0
        %v1354 = vsel %vm842, 1, 0
        %v1355 = vsel %vm843, 1, 0
        %v1356 = vsel %vm844, 1, 0
        %v1357 = vsel %vm845, 1, 0
        %v1358 = vsel %vm846, 1, 0
        %v1359 = vsel %vm847, 1, 0
        %v1360 = vsel %vm848, 1, 0
        %v1361 = vsel %vm849, 1, 0
        %v1362 = vsel %vm850, 1, 0
        %v1363 = vsel %vm851, 1, 0
        %v1364 = vsel %vm852, 1, 0
        %v1365 = vsel %vm853, 1, 0
        %v1366 = vsel %vm854, 1, 0
        %v1367 = vsel %vm855, 1, 0
        %v1368 = vsel %vm856, 1, 0
        %v1369 = vsel %vm857, 1, 0
        %v1370 = vsel %vm858, 1, 0
        %v1371 = vsel %vm859, 1, 0
        %v1372 = vsel %vm860, 1, 0
        %v1373 = vsel %vm861, 1, 0
        %v1374 = vsel %vm862, 1, 0
        %v1375 = vsel %vm863, 1, 0
        %v1376 = vsel %vm864, 1, 0
        %v1377 = vsel %vm865, 1, 0
        %v1378 = vsel %vm866, 1, 0
        %v1379 = vsel %vm867, 1, 0
        %v1380 = vsel %vm868, 1, 0
        %v1381 = vsel %vm869, 1, 0
        %v1382 = vsel %vm870, 1, 0
        %v1383 = vsel %vm871, 1, 0
        %v1384 = vsel %vm872, 1, 0
        %v1385 = vsel %vm873, 1, 0
        %v1386 = vsel %vm874, 1, 0
        %v1387 = vsel %vm875, 1, 0
        %v1388 = vsel %vm876, 1, 0
        %v1389 = vcvt.s32.f32 %v877
        %v1390 = vcvt.s32.f32 %v878
        %v1391 = vcvt.s32.f32 %v879
        %v1392 = vcvt.s32.f32 %v880
        %v1393 = vcvt.s32.f32 %v881
        %v1394 = vcvt.s32.f32 %v882
        %v1395 = vcvt.s32.f32 %v883
        %v1396 = vcvt.s32.f32 %v884
        %v1397 = vcvt.s32.f32 %v885
        %v1398 = vcvt.s32.f32 %v886
        %v1399 = vcvt.s32.f32 %v887
        %v1400 = vcvt.s32.f32 %v888
        %v1401 = vcvt.s32.f32 %v889
        %v1402 = vcvt.s32.f32 %v890
        %v1403 = vcvt.s32.f32 %v891
        %v1404 = vcvt.s32.f32 %v892
        %v1405 = vcvt.s32.f32 %v893
        %v1406 = vcvt.s32.f32 %v894
        %v1407 = vcvt.s32.f32 %v895
        %v1408 = vcvt.s32.f32 %v896
        %v1409 = vcvt.s32.f32 %v897
        %v1410 = vcvt.s32.f32 %v898
        %v1411 = vcvt.s32.f32 %v899
        %v1412 = vcvt.s32.f32 %v900
        %v1413 = vcvt.s32.f32 %v901
        %v1414 = vcvt.s32.f32 %v902
        %v1415 = vcvt.s32.f32 %v903
        %v1416 = vcvt.s32.f32 %v904
        %v1417 = vcvt.s32.f32 %v905
        %v1418 = vcvt.s32.f32 %v906
        %v1419 = vcvt.s32.f32 %v907
        %v1420 = vcvt.s32.f32 %v908
        %v1421 = vcvt.s32.f32 %v909
        %v1422 = vcvt.s32.f32 %v910
        %v1423 = vcvt.s32.f32 %v911
        %v1424 = vcvt.s32.f32 %v912
        %v1425 = vcvt.s32.f32 %v913
        %v1426 = vcvt.s32.f32 %v914
        %v1427 = vcvt.s32.f32 %v915
        %v1428 = vcvt.s32.f32 %v916
        %v1429 = vcvt.s32.f32 %v917
        %v1430 = vcvt.s32.f32 %v918
        %v1431 = vcvt.s32.f32 %v919
        %v1432 = vcvt.s32.f32 %v920
        %v1433 = vcvt.s32.f32 %v921
        %v1434 = vcvt.s32.f32 %v922
        %v1435 = vcvt.s32.f32 %v923
        %v1436 = vcvt.s32.f32 %v924
        %v1437 = vcvt.s32.f32 %v925
        %v1438 = vcvt.s32.f32 %v926
        %v1439 = vcvt.s32.f32 %v927
        %v1440 = vcvt.s32.f32 %v928
        %v1441 = vcvt.s32.f32 %v929
        %v1442 = vcvt.s32.f32 %v930
        %v1443 = vcvt.s32.f32 %v931
        %v1444 = vcvt.s32.f32 %v932
        %v1445 = vcvt.s32.f32 %v933
        %v1446 = vcvt.s32.f32 %v934
        %v1447 = vcvt.s32.f32 %v935
        %v1448 = vcvt.s32.f32 %v936
        %v1449 = vcvt.s32.f32 %v937
        %v1450 = vcvt.s32.f32 %v938
        %v1451 = vcvt.s32.f32 %v939
        %v1452 = vcvt.s32.f32 %v940
        %v1453 = vcvt.s32.f32 %v941
        %v1454 = vcvt.s32.f32 %v942
        %v1455 = vcvt.s32.f32 %v943
        %v1456 = vcvt.s32.f32 %v944
        %v1457 = vcvt.s32.f32 %v945
        %v1458 = vcvt.s32.f32 %v946
        %v1459 = vcvt.s32.f32 %v947
        %v1460 = vcvt.s32.f32 %v948
        %v1461 = vcvt.s32.f32 %v949
        %v1462 = vcvt.s32.f32 %v950
        %v1463 = vcvt.s32.f32 %v951
        %v1464 = vcvt.s32.f32 %v952
        %v1465 = vcvt.s32.f32 %v953
        %v1466 = vcvt.s32.f32 %v954
        %v1467 = vcvt.s32.f32 %v955
        %v1468 = vcvt.s32.f32 %v956
        %v1469 = vcvt.s32.f32 %v957
        %v1470 = vcvt.s32.f32 %v958
        %v1471 = vcvt.s32.f32 %v959
        %v1472 = vcvt.s32.f32 %v960
        %v1473 = vcvt.s32.f32 %v961
        %v1474 = vcvt.s32.f32 %v962
        %v1475 = vcvt.s32.f32 %v963
        %v1476 = vcvt.s32.f32 %v964
        %v1477 = vcvt.s32.f32 %v965
        %v1478 = vcvt.s32.f32 %v966
        %v1479 = vcvt.s32.f32 %v967
        %v1480 = vcvt.s32.f32 %v968
        %v1481 = vcvt.s32.f32 %v969
        %v1482 = vcvt.s32.f32 %v970
        %v1483 = vcvt.s32.f32 %v971
        %v1484 = vcvt.s32.f32 %v972
        %v1485 = vcvt.s32.f32 %v973
        %v1486 = vcvt.s32.f32 %v974
        %v1487 = vcvt.s32.f32 %v975
        %v1488 = vcvt.s32.f32 %v976
        %v1489 = vcvt.s32.f32 %v977
        %v1490 = vcvt.s32.f32 %v978
        %v1491 = vcvt.s32.f32 %v979
        %v1492 = vcvt.s32.f32 %v980
        %v1493 = vcvt.s32.f32 %v981
        %v1494 = vcvt.s32.f32 %v982
        %v1495 = vcvt.s32.f32 %v983
        %v1496 = vcvt.s32.f32 %v984
        %v1497 = vcvt.s32.f32 %v985
        %v1498 = vcvt.s32.f32 %v986
        %v1499 = vcvt.s32.f32 %v987
        %v1500 = vcvt.s32.f32 %v988
        %v1501 = vcvt.s32.f32 %v989
        %v1502 = vcvt.s32.f32 %v990
        %v1503 = vcvt.s32.f32 %v991
        %v1504 = vcvt.s32.f32 %v992
        %v1505 = vcvt.s32.f32 %v993
        %v1506 = vcvt.s32.f32 %v994
        %v1507 = vcvt.s32.f32 %v995
        %v1508 = vcvt.s32.f32 %v996
        %v1509 = vcvt.s32.f32 %v997
        %v1510 = vcvt.s32.f32 %v998
        %v1511 = vcvt.s32.f32 %v999
        %v1512 = vcvt.s32.f32 %v1000
        %v1513 = vcvt.s32.f32 %v1001
        %v1514 = vcvt.s32.f32 %v1002
        %v1515 = vcvt.s32.f32 %v1003
        %v1516 = vcvt.s32.f32 %v1004
        %v1517 = vcvt.s32.f32 %v1005
        %v1518 = vcvt.s32.f32 %v1006
        %v1519 = vcvt.s32.f32 %v1007
        %v1520 = vcvt.s32.f32 %v1008
        %v1521 = vcvt.s32.f32 %v1009
        %v1522 = vcvt.s32.f32 %v1010
        %v1523 = vcvt.s32.f32 %v1011
        %v1524 = vcvt.s32.f32 %v1012
        %v1525 = vcvt.s32.f32 %v1013
        %v1526 = vcvt.s32.f32 %v1014
        %v1527 = vcvt.s32.f32 %v1015
        %v1528 = vcvt.s32.f32 %v1016
        %v1529 = vcvt.s32.f32 %v1017
        %v1530 = vcvt.s32.f32 %v1018
        %v1531 = vcvt.s32.f32 %v1019
        %v1532 = vcvt.s32.f32 %v1020
        %v1533 = vcvt.s32.f32 %v1021
        %v1534 = vcvt.s32.f32 %v1022
        %v1535 = vcvt.s32.f32 %v1023
        %v1536 = vcvt.s32.f32 %v1024
        %v1537 = vcvt.s32.f32 %v1025
        %v1538 = vcvt.s32.f32 %v1026
        %v1539 = vcvt.s32.f32 %v1027
        %v1540 = vcvt.s32.f32 %v1028
        %v1541 = vcvt.s32.f32 %v1029
        %v1542 = vcvt.s32.f32 %v1030
        %v1543 = vcvt.s32.f32 %v1031
        %v1544 = vcvt.s32.f32 %v1032
        %v1545 = vcvt.s32.f32 %v1033
        %v1546 = vcvt.s32.f32 %v1034
        %v1547 = vcvt.s32.f32 %v1035
        %v1548 = vcvt.s32.f32 %v1036
        %v1549 = vcvt.s32.f32 %v1037
        %v1550 = vcvt.s32.f32 %v1038
        %v1551 = vcvt.s32.f32 %v1039
        %v1552 = vcvt.s32.f32 %v1040
        %v1553 = vcvt.s32.f32 %v1041
        %v1554 = vcvt.s32.f32 %v1042
        %v1555 = vcvt.s32.f32 %v1043
        %v1556 = vcvt.s32.f32 %v1044
        %v1557 = vcvt.s32.f32 %v1045
        %v1558 = vcvt.s32.f32 %v1046
        %v1559 = vcvt.s32.f32 %v1047
        %v1560 = vcvt.s32.f32 %v1048
        %v1561 = vcvt.s32.f32 %v1049
        %v1562 = vcvt.s32.f32 %v1050
        %v1563 = vcvt.s32.f32 %v1051
        %v1564 = vcvt.s32.f32 %v1052
        %v1565 = vcvt.s32.f32 %v1053
        %v1566 = vcvt.s32.f32 %v1054
        %v1567 = vcvt.s32.f32 %v1055
        %v1568 = vcvt.s32.f32 %v1056
        %v1569 = vcvt.s32.f32 %v1057
        %v1570 = vcvt.s32.f32 %v1058
        %v1571 = vcvt.s32.f32 %v1059
        %v1572 = vcvt.s32.f32 %v1060
        %v1573 = vcvt.s32.f32 %v1061
        %v1574 = vcvt.s32.f32 %v1062
        %v1575 = vcvt.s32.f32 %v1063
        %v1576 = vcvt.s32.f32 %v1064
        %v1577 = vcvt.s32.f32 %v1065
        %v1578 = vcvt.s32.f32 %v1066
        %v1579 = vcvt.s32.f32 %v1067
        %v1580 = vcvt.s32.f32 %v1068
        %v1581 = vcvt.s32.f32 %v1069
        %v1582 = vcvt.s32.f32 %v1070
        %v1583 = vcvt.s32.f32 %v1071
        %v1584 = vcvt.s32.f32 %v1072
        %v1585 = vcvt.s32.f32 %v1073
        %v1586 = vcvt.s32.f32 %v1074
        %v1587 = vcvt.s32.f32 %v1075
        %v1588 = vcvt.s32.f32 %v1076
        %v1589 = vcvt.s32.f32 %v1077
        %v1590 = vcvt.s32.f32 %v1078
        %v1591 = vcvt.s32.f32 %v1079
        %v1592 = vcvt.s32.f32 %v1080
        %v1593 = vcvt.s32.f32 %v1081
        %v1594 = vcvt.s32.f32 %v1082
        %v1595 = vcvt.s32.f32 %v1083
        %v1596 = vcvt.s32.f32 %v1084
        %v1597 = vcvt.s32.f32 %v1085
        %v1598 = vcvt.s32.f32 %v1086
        %v1599 = vcvt.s32.f32 %v1087
        %v1600 = vcvt.s32.f32 %v1088
        %v1601 = vcvt.s32.f32 %v1089
        %v1602 = vcvt.s32.f32 %v1090
        %v1603 = vcvt.s32.f32 %v1091
        %v1604 = vcvt.s32.f32 %v1092
        %v1605 = vcvt.s32.f32 %v1093
        %v1606 = vcvt.s32.f32 %v1094
        %v1607 = vcvt.s32.f32 %v1095
        %v1608 = vcvt.s32.f32 %v1096
        %v1609 = vcvt.s32.f32 %v1097
        %v1610 = vcvt.s32.f32 %v1098
        %v1611 = vcvt.s32.f32 %v1099
        %v1612 = vcvt.s32.f32 %v1100
        %v1613 = vcvt.s32.f32 %v1101
        %v1614 = vcvt.s32.f32 %v1102
        %v1615 = vcvt.s32.f32 %v1103
        %v1616 = vcvt.s32.f32 %v1104
        %v1617 = vcvt.s32.f32 %v1105
        %v1618 = vcvt.s32.f32 %v1106
        %v1619 = vcvt.s32.f32 %v1107
        %v1620 = vcvt.s32.f32 %v1108
        %v1621 = vcvt.s32.f32 %v1109
        %v1622 = vcvt.s32.f32 %v1110
        %v1623 = vcvt.s32.f32 %v1111
        %v1624 = vcvt.s32.f32 %v1112
        %v1625 = vcvt.s32.f32 %v1113
        %v1626 = vcvt.s32.f32 %v1114
        %v1627 = vcvt.s32.f32 %v1115
        %v1628 = vcvt.s32.f32 %v1116
        %v1629 = vcvt.s32.f32 %v1117
        %v1630 = vcvt.s32.f32 %v1118
        %v1631 = vcvt.s32.f32 %v1119
        %v1632 = vcvt.s32.f32 %v1120
        %v1633 = vcvt.s32.f32 %v1121
        %v1634 = vcvt.s32.f32 %v1122
        %v1635 = vcvt.s32.f32 %v1123
        %v1636 = vcvt.s32.f32 %v1124
        %v1637 = vcvt.s32.f32 %v1125
        %v1638 = vcvt.s32.f32 %v1126
        %v1639 = vcvt.s32.f32 %v1127
        %v1640 = vcvt.s32.f32 %v1128
        %v1641 = vcvt.s32.f32 %v1129
        %v1642 = vcvt.s32.f32 %v1130
        %v1643 = vcvt.s32.f32 %v1131
        %v1644 = vcvt.s32.f32 %v1132
        %v1645 = vcvt.s32.f32 %v1133
        %v1646 = vcvt.s32.f32 %v1134
        %v1647 = vcvt.s32.f32 %v1135
        %v1648 = vcvt.s32.f32 %v1136
        %v1649 = vcvt.s32.f32 %v1137
        %v1650 = vcvt.s32.f32 %v1138
        %v1651 = vcvt.s32.f32 %v1139
        %v1652 = vcvt.s32.f32 %v1140
        %v1653 = vcvt.s32.f32 %v1141
        %v1654 = vcvt.s32.f32 %v1142
        %v1655 = vcvt.s32.f32 %v1143
        %v1656 = vcvt.s32.f32 %v1144
        %v1657 = vcvt.s32.f32 %v1145
        %v1658 = vcvt.s32.f32 %v1146
        %v1659 = vcvt.s32.f32 %v1147
        %v1660 = vcvt.s32.f32 %v1148
        %v1661 = vcvt.s32.f32 %v1149
        %v1662 = vcvt.s32.f32 %v1150
        %v1663 = vcvt.s32.f32 %v1151
        %v1664 = vcvt.s32.f32 %v1152
        %v1665 = vcvt.s32.f32 %v1153
        %v1666 = vcvt.s32.f32 %v1154
        %v1667 = vcvt.s32.f32 %v1155
        %v1668 = vcvt.s32.f32 %v1156
        %v1669 = vcvt.s32.f32 %v1157
        %v1670 = vcvt.s32.f32 %v1158
        %v1671 = vcvt.s32.f32 %v1159
        %v1672 = vcvt.s32.f32 %v1160
        %v1673 = vcvt.s32.f32 %v1161
        %v1674 = vcvt.s32.f32 %v1162
        %v1675 = vcvt.s32.f32 %v1163
        %v1676 = vcvt.s32.f32 %v1164
        %v1677 = vcvt.s32.f32 %v1165
        %v1678 = vcvt.s32.f32 %v1166
        %v1679 = vcvt.s32.f32 %v1167
        %v1680 = vcvt.s32.f32 %v1168
        %v1681 = vcvt.s32.f32 %v1169
        %v1682 = vcvt.s32.f32 %v1170
        %v1683 = vcvt.s32.f32 %v1171
        %v1684 = vcvt.s32.f32 %v1172
        %v1685 = vcvt.s32.f32 %v1173
        %v1686 = vcvt.s32.f32 %v1174
        %v1687 = vcvt.s32.f32 %v1175
        %v1688 = vcvt.s32.f32 %v1176
        %v1689 = vcvt.s32.f32 %v1177
        %v1690 = vcvt.s32.f32 %v1178
        %v1691 = vcvt.s32.f32 %v1179
        %v1692 = vcvt.s32.f32 %v1180
        %v1693 = vcvt.s32.f32 %v1181
        %v1694 = vcvt.s32.f32 %v1182
        %v1695 = vcvt.s32.f32 %v1183
        %v1696 = vcvt.s32.f32 %v1184
        %v1697 = vcvt.s32.f32 %v1185
        %v1698 = vcvt.s32.f32 %v1186
        %v1699 = vcvt.s32.f32 %v1187
        %v1700 = vcvt.s32.f32 %v1188
        %v1701 = vcvt.s32.f32 %v1189
        %v1702 = vcvt.s32.f32 %v1190
        %v1703 = vcvt.s32.f32 %v1191
        %v1704 = vcvt.s32.f32 %v1192
        %v1705 = vcvt.s32.f32 %v1193
        %v1706 = vcvt.s32.f32 %v1194
        %v1707 = vcvt.s32.f32 %v1195
        %v1708 = vcvt.s32.f32 %v1196
        %v1709 = vcvt.s32.f32 %v1197
        %v1710 = vcvt.s32.f32 %v1198
        %v1711 = vcvt.s32.f32 %v1199
        %v1712 = vcvt.s32.f32 %v1200
        %v1713 = vcvt.s32.f32 %v1201
        %v1714 = vcvt.s32.f32 %v1202
        %v1715 = vcvt.s32.f32 %v1203
        %v1716 = vcvt.s32.f32 %v1204
        %v1717 = vcvt.s32.f32 %v1205
        %v1718 = vcvt.s32.f32 %v1206
        %v1719 = vcvt.s32.f32 %v1207
        %v1720 = vcvt.s32.f32 %v1208
        %v1721 = vcvt.s32.f32 %v1209
        %v1722 = vcvt.s32.f32 %v1210
        %v1723 = vcvt.s32.f32 %v1211
        %v1724 = vcvt.s32.f32 %v1212
        %v1725 = vcvt.s32.f32 %v1213
        %v1726 = vcvt.s32.f32 %v1214
        %v1727 = vcvt.s32.f32 %v1215
        %v1728 = vcvt.s32.f32 %v1216
        %v1729 = vcvt.s32.f32 %v1217
        %v1730 = vcvt.s32.f32 %v1218
        %v1731 = vcvt.s32.f32 %v1219
        %v1732 = vcvt.s32.f32 %v1220
        %v1733 = vcvt.s32.f32 %v1221
        %v1734 = vcvt.s32.f32 %v1222
        %v1735 = vcvt.s32.f32 %v1223
        %v1736 = vcvt.s32.f32 %v1224
        %v1737 = vcvt.s32.f32 %v1225
        %v1738 = vcvt.s32.f32 %v1226
        %v1739 = vcvt.s32.f32 %v1227
        %v1740 = vcvt.s32.f32 %v1228
        %v1741 = vcvt.s32.f32 %v1229
        %v1742 = vcvt.s32.f32 %v1230
        %v1743 = vcvt.s32.f32 %v1231
        %v1744 = vcvt.s32.f32 %v1232
        %v1745 = vcvt.s32.f32 %v1233
        %v1746 = vcvt.s32.f32 %v1234
        %v1747 = vcvt.s32.f32 %v1235
        %v1748 = vcvt.s32.f32 %v1236
        %v1749 = vcvt.s32.f32 %v1237
        %v1750 = vcvt.s32.f32 %v1238
        %v1751 = vcvt.s32.f32 %v1239
        %v1752 = vcvt.s32.f32 %v1240
        %v1753 = vcvt.s32.f32 %v1241
        %v1754 = vcvt.s32.f32 %v1242
        %v1755 = vcvt.s32.f32 %v1243
        %v1756 = vcvt.s32.f32 %v1244
        %v1757 = vcvt.s32.f32 %v1245
        %v1758 = vcvt.s32.f32 %v1246
        %v1759 = vcvt.s32.f32 %v1247
        %v1760 = vcvt.s32.f32 %v1248
        %v1761 = vcvt.s32.f32 %v1249
        %v1762 = vcvt.s32.f32 %v1250
        %v1763 = vcvt.s32.f32 %v1251
        %v1764 = vcvt.s32.f32 %v1252
        %v1765 = vcvt.s32.f32 %v1253
        %v1766 = vcvt.s32.f32 %v1254
        %v1767 = vcvt.s32.f32 %v1255
        %v1768 = vcvt.s32.f32 %v1256
        %v1769 = vcvt.s32.f32 %v1257
        %v1770 = vcvt.s32.f32 %v1258
        %v1771 = vcvt.s32.f32 %v1259
        %v1772 = vcvt.s32.f32 %v1260
        %v1773 = vcvt.s32.f32 %v1261
        %v1774 = vcvt.s32.f32 %v1262
        %v1775 = vcvt.s32.f32 %v1263
        %v1776 = vcvt.s32.f32 %v1264
        %v1777 = vcvt.s32.f32 %v1265
        %v1778 = vcvt.s32.f32 %v1266
        %v1779 = vcvt.s32.f32 %v1267
        %v1780 = vcvt.s32.f32 %v1268
        %v1781 = vcvt.s32.f32 %v1269
        %v1782 = vcvt.s32.f32 %v1270
        %v1783 = vcvt.s32.f32 %v1271
        %v1784 = vcvt.s32.f32 %v1272
        %v1785 = vcvt.s32.f32 %v1273
        %v1786 = vcvt.s32.f32 %v1274
        %v1787 = vcvt.s32.f32 %v1275
        %v1788 = vcvt.s32.f32 %v1276
        %v1789 = vcvt.s32.f32 %v1277
        %v1790 = vcvt.s32.f32 %v1278
        %v1791 = vcvt.s32.f32 %v1279
        %v1792 = vcvt.s32.f32 %v1280
        %v1793 = vcvt.s32.f32 %v1281
        %v1794 = vcvt.s32.f32 %v1282
        %v1795 = vcvt.s32.f32 %v1283
        %v1796 = vcvt.s32.f32 %v1284
        %v1797 = vcvt.s32.f32 %v1285
        %v1798 = vcvt.s32.f32 %v1286
        %v1799 = vcvt.s32.f32 %v1287
        %v1800 = vcvt.s32.f32 %v1288
        %v1801 = vcvt.s32.f32 %v1289
        %v1802 = vcvt.s32.f32 %v1290
        %v1803 = vcvt.s32.f32 %v1291
        %v1804 = vcvt.s32.f32 %v1292
        %v1805 = vcvt.s32.f32 %v1293
        %v1806 = vcvt.s32.f32 %v1294
        %v1807 = vcvt.s32.f32 %v1295
        %v1808 = vcvt.s32.f32 %v1296
        %v1809 = vcvt.s32.f32 %v1297
        %v1810 = vcvt.s32.f32 %v1298
        %v1811 = vcvt.s32.f32 %v1299
        %v1812 = vcvt.s32.f32 %v1300
        %v1813 = vcvt.s32.f32 %v1301
        %v1814 = vcvt.s32.f32 %v1302
        %v1815 = vcvt.s32.f32 %v1303
        %v1816 = vcvt.s32.f32 %v1304
        %v1817 = vcvt.s32.f32 %v1305
        %v1818 = vcvt.s32.f32 %v1306
        %v1819 = vcvt.s32.f32 %v1307
        %v1820 = vcvt.s32.f32 %v1308
        %v1821 = vcvt.s32.f32 %v1309
        %v1822 = vcvt.s32.f32 %v1310
        %v1823 = vcvt.s32.f32 %v1311
        %v1824 = vcvt.s32.f32 %v1312
        %v1825 = vcvt.s32.f32 %v1313
        %v1826 = vcvt.s32.f32 %v1314
        %v1827 = vcvt.s32.f32 %v1315
        %v1828 = vcvt.s32.f32 %v1316
        %v1829 = vcvt.s32.f32 %v1317
        %v1830 = vcvt.s32.f32 %v1318
        %v1831 = vcvt.s32.f32 %v1319
        %v1832 = vcvt.s32.f32 %v1320
        %v1833 = vcvt.s32.f32 %v1321
        %v1834 = vcvt.s32.f32 %v1322
        %v1835 = vcvt.s32.f32 %v1323
        %v1836 = vcvt.s32.f32 %v1324
        %v1837 = vcvt.s32.f32 %v1325
        %v1838 = vcvt.s32.f32 %v1326
        %v1839 = vcvt.s32.f32 %v1327
        %v1840 = vcvt.s32.f32 %v1328
        %v1841 = vcvt.s32.f32 %v1329
        %v1842 = vcvt.s32.f32 %v1330
        %v1843 = vcvt.s32.f32 %v1331
        %v1844 = vcvt.s32.f32 %v1332
        %v1845 = vcvt.s32.f32 %v1333
        %v1846 = vcvt.s32.f32 %v1334
        %v1847 = vcvt.s32.f32 %v1335
        %v1848 = vcvt.s32.f32 %v1336
        %v1849 = vcvt.s32.f32 %v1337
        %v1850 = vcvt.s32.f32 %v1338
        %v1851 = vcvt.s32.f32 %v1339
        %v1852 = vcvt.s32.f32 %v1340
        %v1853 = vcvt.s32.f32 %v1341
        %v1854 = vcvt.s32.f32 %v1342
        %v1855 = vcvt.s32.f32 %v1343
        %v1856 = vcvt.s32.f32 %v1344
        %v1857 = vcvt.s32.f32 %v1345
        %v1858 = vcvt.s32.f32 %v1346
        %v1859 = vcvt.s32.f32 %v1347
        %v1860 = vcvt.s32.f32 %v1348
        %v1861 = vcvt.s32.f32 %v1349
        %v1862 = vcvt.s32.f32 %v1350
        %v1863 = vcvt.s32.f32 %v1351
        %v1864 = vcvt.s32.f32 %v1352
        %v1865 = vcvt.s32.f32 %v1353
        %v1866 = vcvt.s32.f32 %v1354
        %v1867 = vcvt.s32.f32 %v1355
        %v1868 = vcvt.s32.f32 %v1356
        %v1869 = vcvt.s32.f32 %v1357
        %v1870 = vcvt.s32.f32 %v1358
        %v1871 = vcvt.s32.f32 %v1359
        %v1872 = vcvt.s32.f32 %v1360
        %v1873 = vcvt.s32.f32 %v1361
        %v1874 = vcvt.s32.f32 %v1362
        %v1875 = vcvt.s32.f32 %v1363
        %v1876 = vcvt.s32.f32 %v1364
        %v1877 = vcvt.s32.f32 %v1365
        %v1878 = vcvt.s32.f32 %v1366
        %v1879 = vcvt.s32.f32 %v1367
        %v1880 = vcvt.s32.f32 %v1368
        %v1881 = vcvt.s32.f32 %v1369
        %v1882 = vcvt.s32.f32 %v1370
        %v1883 = vcvt.s32.f32 %v1371
        %v1884 = vcvt.s32.f32 %v1372
        %v1885 = vcvt.s32.f32 %v1373
        %v1886 = vcvt.s32.f32 %v1374
        %v1887 = vcvt.s32.f32 %v1375
        %v1888 = vcvt.s32.f32 %v1376
        %v1889 = vcvt.s32.f32 %v1377
        %v1890 = vcvt.s32.f32 %v1378
        %v1891 = vcvt.s32.f32 %v1379
        %v1892 = vcvt.s32.f32 %v1380
        %v1893 = vcvt.s32.f32 %v1381
        %v1894 = vcvt.s32.f32 %v1382
        %v1895 = vcvt.s32.f32 %v1383
        %v1896 = vcvt.s32.f32 %v1384
        %v1897 = vcvt.s32.f32 %v1385
        %v1898 = vcvt.s32.f32 %v1386
        %v1899 = vcvt.s32.f32 %v1387
        %v1900 = vcvt.s32.f32 %v1388
        %v1901 = vpack.c.bf16 %v1397, %v1389
        %v1902 = vpack.c.bf16 %v1398, %v1390
        %v1903 = vpack.c.bf16 %v1399, %v1391
        %v1904 = vpack.c.bf16 %v1400, %v1392
        %v1905 = vpack.c.bf16 %v1401, %v1393
        %v1906 = vpack.c.bf16 %v1402, %v1394
        %v1907 = vpack.c.bf16 %v1403, %v1395
        %v1908 = vpack.c.bf16 %v1404, %v1396
        %v1909 = vpack.c.bf16 %v1413, %v1405
        %v1910 = vpack.c.bf16 %v1414, %v1406
        %v1911 = vpack.c.bf16 %v1415, %v1407
        %v1912 = vpack.c.bf16 %v1416, %v1408
        %v1913 = vpack.c.bf16 %v1417, %v1409
        %v1914 = vpack.c.bf16 %v1418, %v1410
        %v1915 = vpack.c.bf16 %v1419, %v1411
        %v1916 = vpack.c.bf16 %v1420, %v1412
        %v1917 = vpack.c.bf16 %v1429, %v1421
        %v1918 = vpack.c.bf16 %v1430, %v1422
        %v1919 = vpack.c.bf16 %v1431, %v1423
        %v1920 = vpack.c.bf16 %v1432, %v1424
        %v1921 = vpack.c.bf16 %v1433, %v1425
        %v1922 = vpack.c.bf16 %v1434, %v1426
        %v1923 = vpack.c.bf16 %v1435, %v1427
        %v1924 = vpack.c.bf16 %v1436, %v1428
        %v1925 = vpack.c.bf16 %v1445, %v1437
        %v1926 = vpack.c.bf16 %v1446, %v1438
        %v1927 = vpack.c.bf16 %v1447, %v1439
        %v1928 = vpack.c.bf16 %v1448, %v1440
        %v1929 = vpack.c.bf16 %v1449, %v1441
        %v1930 = vpack.c.bf16 %v1450, %v1442
        %v1931 = vpack.c.bf16 %v1451, %v1443
        %v1932 = vpack.c.bf16 %v1452, %v1444
        %v1933 = vpack.c.bf16 %v1461, %v1453
        %v1934 = vpack.c.bf16 %v1462, %v1454
        %v1935 = vpack.c.bf16 %v1463, %v1455
        %v1936 = vpack.c.bf16 %v1464, %v1456
        %v1937 = vpack.c.bf16 %v1465, %v1457
        %v1938 = vpack.c.bf16 %v1466, %v1458
        %v1939 = vpack.c.bf16 %v1467, %v1459
        %v1940 = vpack.c.bf16 %v1468, %v1460
        %v1941 = vpack.c.bf16 %v1477, %v1469
        %v1942 = vpack.c.bf16 %v1478, %v1470
        %v1943 = vpack.c.bf16 %v1479, %v1471
        %v1944 = vpack.c.bf16 %v1480, %v1472
        %v1945 = vpack.c.bf16 %v1481, %v1473
        %v1946 = vpack.c.bf16 %v1482, %v1474
        %v1947 = vpack.c.bf16 %v1483, %v1475
        %v1948 = vpack.c.bf16 %v1484, %v1476
        %v1949 = vpack.c.bf16 %v1493, %v1485
        %v1950 = vpack.c.bf16 %v1494, %v1486
        %v1951 = vpack.c.bf16 %v1495, %v1487
        %v1952 = vpack.c.bf16 %v1496, %v1488
        %v1953 = vpack.c.bf16 %v1497, %v1489
        %v1954 = vpack.c.bf16 %v1498, %v1490
        %v1955 = vpack.c.bf16 %v1499, %v1491
        %v1956 = vpack.c.bf16 %v1500, %v1492
        %v1957 = vpack.c.bf16 %v1509, %v1501
        %v1958 = vpack.c.bf16 %v1510, %v1502
        %v1959 = vpack.c.bf16 %v1511, %v1503
        %v1960 = vpack.c.bf16 %v1512, %v1504
        %v1961 = vpack.c.bf16 %v1513, %v1505
        %v1962 = vpack.c.bf16 %v1514, %v1506
        %v1963 = vpack.c.bf16 %v1515, %v1507
        %v1964 = vpack.c.bf16 %v1516, %v1508
        %v1965 = vpack.c.bf16 %v1525, %v1517
        %v1966 = vpack.c.bf16 %v1526, %v1518
        %v1967 = vpack.c.bf16 %v1527, %v1519
        %v1968 = vpack.c.bf16 %v1528, %v1520
        %v1969 = vpack.c.bf16 %v1529, %v1521
        %v1970 = vpack.c.bf16 %v1530, %v1522
        %v1971 = vpack.c.bf16 %v1531, %v1523
        %v1972 = vpack.c.bf16 %v1532, %v1524
        %v1973 = vpack.c.bf16 %v1541, %v1533
        %v1974 = vpack.c.bf16 %v1542, %v1534
        %v1975 = vpack.c.bf16 %v1543, %v1535
        %v1976 = vpack.c.bf16 %v1544, %v1536
        %v1977 = vpack.c.bf16 %v1545, %v1537
        %v1978 = vpack.c.bf16 %v1546, %v1538
        %v1979 = vpack.c.bf16 %v1547, %v1539
        %v1980 = vpack.c.bf16 %v1548, %v1540
        %v1981 = vpack.c.bf16 %v1557, %v1549
        %v1982 = vpack.c.bf16 %v1558, %v1550
        %v1983 = vpack.c.bf16 %v1559, %v1551
        %v1984 = vpack.c.bf16 %v1560, %v1552
        %v1985 = vpack.c.bf16 %v1561, %v1553
        %v1986 = vpack.c.bf16 %v1562, %v1554
        %v1987 = vpack.c.bf16 %v1563, %v1555
        %v1988 = vpack.c.bf16 %v1564, %v1556
        %v1989 = vpack.c.bf16 %v1573, %v1565
        %v1990 = vpack.c.bf16 %v1574, %v1566
        %v1991 = vpack.c.bf16 %v1575, %v1567
        %v1992 = vpack.c.bf16 %v1576, %v1568
        %v1993 = vpack.c.bf16 %v1577, %v1569
        %v1994 = vpack.c.bf16 %v1578, %v1570
        %v1995 = vpack.c.bf16 %v1579, %v1571
        %v1996 = vpack.c.bf16 %v1580, %v1572
        %v1997 = vpack.c.bf16 %v1589, %v1581
        %v1998 = vpack.c.bf16 %v1590, %v1582
        %v1999 = vpack.c.bf16 %v1591, %v1583
        %v2000 = vpack.c.bf16 %v1592, %v1584
        %v2001 = vpack.c.bf16 %v1593, %v1585
        %v2002 = vpack.c.bf16 %v1594, %v1586
        %v2003 = vpack.c.bf16 %v1595, %v1587
        %v2004 = vpack.c.bf16 %v1596, %v1588
        %v2005 = vpack.c.bf16 %v1605, %v1597
        %v2006 = vpack.c.bf16 %v1606, %v1598
        %v2007 = vpack.c.bf16 %v1607, %v1599
        %v2008 = vpack.c.bf16 %v1608, %v1600
        %v2009 = vpack.c.bf16 %v1609, %v1601
        %v2010 = vpack.c.bf16 %v1610, %v1602
        %v2011 = vpack.c.bf16 %v1611, %v1603
        %v2012 = vpack.c.bf16 %v1612, %v1604
        %v2013 = vpack.c.bf16 %v1621, %v1613
        %v2014 = vpack.c.bf16 %v1622, %v1614
        %v2015 = vpack.c.bf16 %v1623, %v1615
        %v2016 = vpack.c.bf16 %v1624, %v1616
        %v2017 = vpack.c.bf16 %v1625, %v1617
        %v2018 = vpack.c.bf16 %v1626, %v1618
        %v2019 = vpack.c.bf16 %v1627, %v1619
        %v2020 = vpack.c.bf16 %v1628, %v1620
        %v2021 = vpack.c.bf16 %v1637, %v1629
        %v2022 = vpack.c.bf16 %v1638, %v1630
        %v2023 = vpack.c.bf16 %v1639, %v1631
        %v2024 = vpack.c.bf16 %v1640, %v1632
        %v2025 = vpack.c.bf16 %v1641, %v1633
        %v2026 = vpack.c.bf16 %v1642, %v1634
        %v2027 = vpack.c.bf16 %v1643, %v1635
        %v2028 = vpack.c.bf16 %v1644, %v1636
        %v2029 = vpack.c.bf16 %v1653, %v1645
        %v2030 = vpack.c.bf16 %v1654, %v1646
        %v2031 = vpack.c.bf16 %v1655, %v1647
        %v2032 = vpack.c.bf16 %v1656, %v1648
        %v2033 = vpack.c.bf16 %v1657, %v1649
        %v2034 = vpack.c.bf16 %v1658, %v1650
        %v2035 = vpack.c.bf16 %v1659, %v1651
        %v2036 = vpack.c.bf16 %v1660, %v1652
        %v2037 = vpack.c.bf16 %v1669, %v1661
        %v2038 = vpack.c.bf16 %v1670, %v1662
        %v2039 = vpack.c.bf16 %v1671, %v1663
        %v2040 = vpack.c.bf16 %v1672, %v1664
        %v2041 = vpack.c.bf16 %v1673, %v1665
        %v2042 = vpack.c.bf16 %v1674, %v1666
        %v2043 = vpack.c.bf16 %v1675, %v1667
        %v2044 = vpack.c.bf16 %v1676, %v1668
        %v2045 = vpack.c.bf16 %v1685, %v1677
        %v2046 = vpack.c.bf16 %v1686, %v1678
        %v2047 = vpack.c.bf16 %v1687, %v1679
        %v2048 = vpack.c.bf16 %v1688, %v1680
        %v2049 = vpack.c.bf16 %v1689, %v1681
        %v2050 = vpack.c.bf16 %v1690, %v1682
        %v2051 = vpack.c.bf16 %v1691, %v1683
        %v2052 = vpack.c.bf16 %v1692, %v1684
        %v2053 = vpack.c.bf16 %v1701, %v1693
        %v2054 = vpack.c.bf16 %v1702, %v1694
        %v2055 = vpack.c.bf16 %v1703, %v1695
        %v2056 = vpack.c.bf16 %v1704, %v1696
        %v2057 = vpack.c.bf16 %v1705, %v1697
        %v2058 = vpack.c.bf16 %v1706, %v1698
        %v2059 = vpack.c.bf16 %v1707, %v1699
        %v2060 = vpack.c.bf16 %v1708, %v1700
        %v2061 = vpack.c.bf16 %v1717, %v1709
        %v2062 = vpack.c.bf16 %v1718, %v1710
        %v2063 = vpack.c.bf16 %v1719, %v1711
        %v2064 = vpack.c.bf16 %v1720, %v1712
        %v2065 = vpack.c.bf16 %v1721, %v1713
        %v2066 = vpack.c.bf16 %v1722, %v1714
        %v2067 = vpack.c.bf16 %v1723, %v1715
        %v2068 = vpack.c.bf16 %v1724, %v1716
        %v2069 = vpack.c.bf16 %v1733, %v1725
        %v2070 = vpack.c.bf16 %v1734, %v1726
        %v2071 = vpack.c.bf16 %v1735, %v1727
        %v2072 = vpack.c.bf16 %v1736, %v1728
        %v2073 = vpack.c.bf16 %v1737, %v1729
        %v2074 = vpack.c.bf16 %v1738, %v1730
        %v2075 = vpack.c.bf16 %v1739, %v1731
        %v2076 = vpack.c.bf16 %v1740, %v1732
        %v2077 = vpack.c.bf16 %v1749, %v1741
        %v2078 = vpack.c.bf16 %v1750, %v1742
        %v2079 = vpack.c.bf16 %v1751, %v1743
        %v2080 = vpack.c.bf16 %v1752, %v1744
        %v2081 = vpack.c.bf16 %v1753, %v1745
        %v2082 = vpack.c.bf16 %v1754, %v1746
        %v2083 = vpack.c.bf16 %v1755, %v1747
        %v2084 = vpack.c.bf16 %v1756, %v1748
        %v2085 = vpack.c.bf16 %v1765, %v1757
        %v2086 = vpack.c.bf16 %v1766, %v1758
        %v2087 = vpack.c.bf16 %v1767, %v1759
        %v2088 = vpack.c.bf16 %v1768, %v1760
        %v2089 = vpack.c.bf16 %v1769, %v1761
        %v2090 = vpack.c.bf16 %v1770, %v1762
        %v2091 = vpack.c.bf16 %v1771, %v1763
        %v2092 = vpack.c.bf16 %v1772, %v1764
        %v2093 = vpack.c.bf16 %v1781, %v1773
        %v2094 = vpack.c.bf16 %v1782, %v1774
        %v2095 = vpack.c.bf16 %v1783, %v1775
        %v2096 = vpack.c.bf16 %v1784, %v1776
        %v2097 = vpack.c.bf16 %v1785, %v1777
        %v2098 = vpack.c.bf16 %v1786, %v1778
        %v2099 = vpack.c.bf16 %v1787, %v1779
        %v2100 = vpack.c.bf16 %v1788, %v1780
        %v2101 = vpack.c.bf16 %v1797, %v1789
        %v2102 = vpack.c.bf16 %v1798, %v1790
        %v2103 = vpack.c.bf16 %v1799, %v1791
        %v2104 = vpack.c.bf16 %v1800, %v1792
        %v2105 = vpack.c.bf16 %v1801, %v1793
        %v2106 = vpack.c.bf16 %v1802, %v1794
        %v2107 = vpack.c.bf16 %v1803, %v1795
        %v2108 = vpack.c.bf16 %v1804, %v1796
        %v2109 = vpack.c.bf16 %v1813, %v1805
        %v2110 = vpack.c.bf16 %v1814, %v1806
        %v2111 = vpack.c.bf16 %v1815, %v1807
        %v2112 = vpack.c.bf16 %v1816, %v1808
        %v2113 = vpack.c.bf16 %v1817, %v1809
        %v2114 = vpack.c.bf16 %v1818, %v1810
        %v2115 = vpack.c.bf16 %v1819, %v1811
        %v2116 = vpack.c.bf16 %v1820, %v1812
        %v2117 = vpack.c.bf16 %v1829, %v1821
        %v2118 = vpack.c.bf16 %v1830, %v1822
        %v2119 = vpack.c.bf16 %v1831, %v1823
        %v2120 = vpack.c.bf16 %v1832, %v1824
        %v2121 = vpack.c.bf16 %v1833, %v1825
        %v2122 = vpack.c.bf16 %v1834, %v1826
        %v2123 = vpack.c.bf16 %v1835, %v1827
        %v2124 = vpack.c.bf16 %v1836, %v1828
        %v2125 = vpack.c.bf16 %v1845, %v1837
        %v2126 = vpack.c.bf16 %v1846, %v1838
        %v2127 = vpack.c.bf16 %v1847, %v1839
        %v2128 = vpack.c.bf16 %v1848, %v1840
        %v2129 = vpack.c.bf16 %v1849, %v1841
        %v2130 = vpack.c.bf16 %v1850, %v1842
        %v2131 = vpack.c.bf16 %v1851, %v1843
        %v2132 = vpack.c.bf16 %v1852, %v1844
        %v2133 = vpack.c.bf16 %v1861, %v1853
        %v2134 = vpack.c.bf16 %v1862, %v1854
        %v2135 = vpack.c.bf16 %v1863, %v1855
        %v2136 = vpack.c.bf16 %v1864, %v1856
        %v2137 = vpack.c.bf16 %v1865, %v1857
        %v2138 = vpack.c.bf16 %v1866, %v1858
        %v2139 = vpack.c.bf16 %v1867, %v1859
        %v2140 = vpack.c.bf16 %v1868, %v1860
        %v2141 = vpack.c.bf16 %v1877, %v1869
        %v2142 = vpack.c.bf16 %v1878, %v1870
        %v2143 = vpack.c.bf16 %v1879, %v1871
        %v2144 = vpack.c.bf16 %v1880, %v1872
        %v2145 = vpack.c.bf16 %v1881, %v1873
        %v2146 = vpack.c.bf16 %v1882, %v1874
        %v2147 = vpack.c.bf16 %v1883, %v1875
        %v2148 = vpack.c.bf16 %v1884, %v1876
        %v2149 = vpack.c.bf16 %v1893, %v1885
        %v2150 = vpack.c.bf16 %v1894, %v1886
        %v2151 = vpack.c.bf16 %v1895, %v1887
        %v2152 = vpack.c.bf16 %v1896, %v1888
        %v2153 = vpack.c.bf16 %v1897, %v1889
        %v2154 = vpack.c.bf16 %v1898, %v1890
        %v2155 = vpack.c.bf16 %v1899, %v1891
        %v2156 = vpack.c.bf16 %v1900, %v1892
        %v2157 = vld [vmem:[%s209] sm:$0xff]
        %v2158 = vld [vmem:[%s209 + $0x8] sm:$0xff]
        %v2159 = vld [vmem:[%s209 + $0x10] sm:$0xff]
        %v2160 = vld [vmem:[%s209 + $0x18] sm:$0xff]
        %v2161 = vld [vmem:[%s209 + $0x20] sm:$0xff]
        %v2162 = vld [vmem:[%s209 + $0x28] sm:$0xff]
        %v2163 = vld [vmem:[%s209 + $0x30] sm:$0xff]
        %v2164 = vld [vmem:[%s209 + $0x38] sm:$0xff]
        %v2165 = vld [vmem:[%s209 + $0x40] sm:$0xff]
        %v2166 = vld [vmem:[%s209 + $0x48] sm:$0xff]
        %v2167 = vld [vmem:[%s209 + $0x50] sm:$0xff]
        %v2168 = vld [vmem:[%s209 + $0x58] sm:$0xff]
        %v2169 = vld [vmem:[%s209 + $0x60] sm:$0xff]
        %v2170 = vld [vmem:[%s209 + $0x68] sm:$0xff]
        %v2171 = vld [vmem:[%s209 + $0x70] sm:$0xff]
        %v2172 = vld [vmem:[%s209 + $0x78] sm:$0xff]
        %v2173 = vld [vmem:[%s209 + $0x80] sm:$0xff]
        %v2174 = vld [vmem:[%s209 + $0x88] sm:$0xff]
        %v2175 = vld [vmem:[%s209 + $0x90] sm:$0xff]
        %v2176 = vld [vmem:[%s209 + $0x98] sm:$0xff]
        %v2177 = vld [vmem:[%s209 + $0xa0] sm:$0xff]
        %v2178 = vld [vmem:[%s209 + $0xa8] sm:$0xff]
        %v2179 = vld [vmem:[%s209 + $0xb0] sm:$0xff]
        %v2180 = vld [vmem:[%s209 + $0xb8] sm:$0xff]
        %v2181 = vld [vmem:[%s209 + $0xc0] sm:$0xff]
        %v2182 = vld [vmem:[%s209 + $0xc8] sm:$0xff]
        %v2183 = vld [vmem:[%s209 + $0xd0] sm:$0xff]
        %v2184 = vld [vmem:[%s209 + $0xd8] sm:$0xff]
        %v2185 = vld [vmem:[%s209 + $0xe0] sm:$0xff]
        %v2186 = vld [vmem:[%s209 + $0xe8] sm:$0xff]
        %v2187 = vld [vmem:[%s209 + $0xf0] sm:$0xff]
        %v2188 = vld [vmem:[%s209 + $0xf8] sm:$0xff]
        %v2189 = vld [vmem:[%s209 + $0x100] sm:$0xff]
        %v2190 = vld [vmem:[%s209 + $0x108] sm:$0xff]
        %v2191 = vld [vmem:[%s209 + $0x110] sm:$0xff]
        %v2192 = vld [vmem:[%s209 + $0x118] sm:$0xff]
        %v2193 = vld [vmem:[%s209 + $0x120] sm:$0xff]
        %v2194 = vld [vmem:[%s209 + $0x128] sm:$0xff]
        %v2195 = vld [vmem:[%s209 + $0x130] sm:$0xff]
        %v2196 = vld [vmem:[%s209 + $0x138] sm:$0xff]
        %v2197 = vld [vmem:[%s209 + $0x140] sm:$0xff]
        %v2198 = vld [vmem:[%s209 + $0x148] sm:$0xff]
        %v2199 = vld [vmem:[%s209 + $0x150] sm:$0xff]
        %v2200 = vld [vmem:[%s209 + $0x158] sm:$0xff]
        %v2201 = vld [vmem:[%s209 + $0x160] sm:$0xff]
        %v2202 = vld [vmem:[%s209 + $0x168] sm:$0xff]
        %v2203 = vld [vmem:[%s209 + $0x170] sm:$0xff]
        %v2204 = vld [vmem:[%s209 + $0x178] sm:$0xff]
        %v2205 = vld [vmem:[%s209 + $0x180] sm:$0xff]
        %v2206 = vld [vmem:[%s209 + $0x188] sm:$0xff]
        %v2207 = vld [vmem:[%s209 + $0x190] sm:$0xff]
        %v2208 = vld [vmem:[%s209 + $0x198] sm:$0xff]
        %v2209 = vld [vmem:[%s209 + $0x1a0] sm:$0xff]
        %v2210 = vld [vmem:[%s209 + $0x1a8] sm:$0xff]
        %v2211 = vld [vmem:[%s209 + $0x1b0] sm:$0xff]
        %v2212 = vld [vmem:[%s209 + $0x1b8] sm:$0xff]
        %v2213 = vld [vmem:[%s209 + $0x1c0] sm:$0xff]
        %v2214 = vld [vmem:[%s209 + $0x1c8] sm:$0xff]
        %v2215 = vld [vmem:[%s209 + $0x1d0] sm:$0xff]
        %v2216 = vld [vmem:[%s209 + $0x1d8] sm:$0xff]
        %v2217 = vld [vmem:[%s209 + $0x1e0] sm:$0xff]
        %v2218 = vld [vmem:[%s209 + $0x1e8] sm:$0xff]
        %v2219 = vld [vmem:[%s209 + $0x1f0] sm:$0xff]
        %v2220 = vld [vmem:[%s209 + $0x1f8] sm:$0xff]
        %v2221 = vld [vmem:[%s201] sm:$0xf]
        %v2222 = vld [vmem:[%s201 + $0x4] sm:$0xf]
        %v2223 = vld [vmem:[%s201 + $0x8] sm:$0xf]
        %v2224 = vld [vmem:[%s201 + $0xc] sm:$0xf]
        %v2225 = vld [vmem:[%s201 + $0x10] sm:$0xf]
        %v2226 = vld [vmem:[%s201 + $0x14] sm:$0xf]
        %v2227 = vld [vmem:[%s201 + $0x18] sm:$0xf]
        %v2228 = vld [vmem:[%s201 + $0x1c] sm:$0xf]
        %v2229 = vld [vmem:[%s201 + $0x20] sm:$0xf]
        %v2230 = vld [vmem:[%s201 + $0x24] sm:$0xf]
        %v2231 = vld [vmem:[%s201 + $0x28] sm:$0xf]
        %v2232 = vld [vmem:[%s201 + $0x2c] sm:$0xf]
        %v2233 = vld [vmem:[%s201 + $0x30] sm:$0xf]
        %v2234 = vld [vmem:[%s201 + $0x34] sm:$0xf]
        %v2235 = vld [vmem:[%s201 + $0x38] sm:$0xf]
        %v2236 = vld [vmem:[%s201 + $0x3c] sm:$0xf]
        %v2237 = vld [vmem:[%s201 + $0x40] sm:$0xf]
        %v2238 = vld [vmem:[%s201 + $0x44] sm:$0xf]
        %v2239 = vld [vmem:[%s201 + $0x48] sm:$0xf]
        %v2240 = vld [vmem:[%s201 + $0x4c] sm:$0xf]
        %v2241 = vld [vmem:[%s201 + $0x50] sm:$0xf]
        %v2242 = vld [vmem:[%s201 + $0x54] sm:$0xf]
        %v2243 = vld [vmem:[%s201 + $0x58] sm:$0xf]
        %v2244 = vld [vmem:[%s201 + $0x5c] sm:$0xf]
        %v2245 = vld [vmem:[%s201 + $0x60] sm:$0xf]
        %v2246 = vld [vmem:[%s201 + $0x64] sm:$0xf]
        %v2247 = vld [vmem:[%s201 + $0x68] sm:$0xf]
        %v2248 = vld [vmem:[%s201 + $0x6c] sm:$0xf]
        %v2249 = vld [vmem:[%s201 + $0x70] sm:$0xf]
        %v2250 = vld [vmem:[%s201 + $0x74] sm:$0xf]
        %v2251 = vld [vmem:[%s201 + $0x78] sm:$0xf]
        %v2252 = vld [vmem:[%s201 + $0x7c] sm:$0xf]
        %v2253 = vld [vmem:[%s201 + $0x80] sm:$0xf]
        %v2254 = vld [vmem:[%s201 + $0x84] sm:$0xf]
        %v2255 = vld [vmem:[%s201 + $0x88] sm:$0xf]
        %v2256 = vld [vmem:[%s201 + $0x8c] sm:$0xf]
        %v2257 = vld [vmem:[%s201 + $0x90] sm:$0xf]
        %v2258 = vld [vmem:[%s201 + $0x94] sm:$0xf]
        %v2259 = vld [vmem:[%s201 + $0x98] sm:$0xf]
        %v2260 = vld [vmem:[%s201 + $0x9c] sm:$0xf]
        %v2261 = vld [vmem:[%s201 + $0xa0] sm:$0xf]
        %v2262 = vld [vmem:[%s201 + $0xa4] sm:$0xf]
        %v2263 = vld [vmem:[%s201 + $0xa8] sm:$0xf]
        %v2264 = vld [vmem:[%s201 + $0xac] sm:$0xf]
        %v2265 = vld [vmem:[%s201 + $0xb0] sm:$0xf]
        %v2266 = vld [vmem:[%s201 + $0xb4] sm:$0xf]
        %v2267 = vld [vmem:[%s201 + $0xb8] sm:$0xf]
        %v2268 = vld [vmem:[%s201 + $0xbc] sm:$0xf]
        %v2269 = vld [vmem:[%s201 + $0xc0] sm:$0xf]
        %v2270 = vld [vmem:[%s201 + $0xc4] sm:$0xf]
        %v2271 = vld [vmem:[%s201 + $0xc8] sm:$0xf]
        %v2272 = vld [vmem:[%s201 + $0xcc] sm:$0xf]
        %v2273 = vld [vmem:[%s201 + $0xd0] sm:$0xf]
        %v2274 = vld [vmem:[%s201 + $0xd4] sm:$0xf]
        %v2275 = vld [vmem:[%s201 + $0xd8] sm:$0xf]
        %v2276 = vld [vmem:[%s201 + $0xdc] sm:$0xf]
        %v2277 = vld [vmem:[%s201 + $0xe0] sm:$0xf]
        %v2278 = vld [vmem:[%s201 + $0xe4] sm:$0xf]
        %v2279 = vld [vmem:[%s201 + $0xe8] sm:$0xf]
        %v2280 = vld [vmem:[%s201 + $0xec] sm:$0xf]
        %v2281 = vld [vmem:[%s201 + $0xf0] sm:$0xf]
        %v2282 = vld [vmem:[%s201 + $0xf4] sm:$0xf]
        %v2283 = vld [vmem:[%s201 + $0xf8] sm:$0xf]
        %v2284 = vld [vmem:[%s201 + $0xfc] sm:$0xf]
        %v2285 = vld [vmem:[%s201 + $0x100] sm:$0xf]
        %v2286 = vld [vmem:[%s201 + $0x104] sm:$0xf]
        %v2287 = vld [vmem:[%s201 + $0x108] sm:$0xf]
        %v2288 = vld [vmem:[%s201 + $0x10c] sm:$0xf]
        %v2289 = vld [vmem:[%s201 + $0x110] sm:$0xf]
        %v2290 = vld [vmem:[%s201 + $0x114] sm:$0xf]
        %v2291 = vld [vmem:[%s201 + $0x118] sm:$0xf]
        %v2292 = vld [vmem:[%s201 + $0x11c] sm:$0xf]
        %v2293 = vld [vmem:[%s201 + $0x120] sm:$0xf]
        %v2294 = vld [vmem:[%s201 + $0x124] sm:$0xf]
        %v2295 = vld [vmem:[%s201 + $0x128] sm:$0xf]
        %v2296 = vld [vmem:[%s201 + $0x12c] sm:$0xf]
        %v2297 = vld [vmem:[%s201 + $0x130] sm:$0xf]
        %v2298 = vld [vmem:[%s201 + $0x134] sm:$0xf]
        %v2299 = vld [vmem:[%s201 + $0x138] sm:$0xf]
        %v2300 = vld [vmem:[%s201 + $0x13c] sm:$0xf]
        %v2301 = vld [vmem:[%s201 + $0x140] sm:$0xf]
        %v2302 = vld [vmem:[%s201 + $0x144] sm:$0xf]
        %v2303 = vld [vmem:[%s201 + $0x148] sm:$0xf]
        %v2304 = vld [vmem:[%s201 + $0x14c] sm:$0xf]
        %v2305 = vld [vmem:[%s201 + $0x150] sm:$0xf]
        %v2306 = vld [vmem:[%s201 + $0x154] sm:$0xf]
        %v2307 = vld [vmem:[%s201 + $0x158] sm:$0xf]
        %v2308 = vld [vmem:[%s201 + $0x15c] sm:$0xf]
        %v2309 = vld [vmem:[%s201 + $0x160] sm:$0xf]
        %v2310 = vld [vmem:[%s201 + $0x164] sm:$0xf]
        %v2311 = vld [vmem:[%s201 + $0x168] sm:$0xf]
        %v2312 = vld [vmem:[%s201 + $0x16c] sm:$0xf]
        %v2313 = vld [vmem:[%s201 + $0x170] sm:$0xf]
        %v2314 = vld [vmem:[%s201 + $0x174] sm:$0xf]
        %v2315 = vld [vmem:[%s201 + $0x178] sm:$0xf]
        %v2316 = vld [vmem:[%s201 + $0x17c] sm:$0xf]
        %v2317 = vld [vmem:[%s201 + $0x180] sm:$0xf]
        %v2318 = vld [vmem:[%s201 + $0x184] sm:$0xf]
        %v2319 = vld [vmem:[%s201 + $0x188] sm:$0xf]
        %v2320 = vld [vmem:[%s201 + $0x18c] sm:$0xf]
        %v2321 = vld [vmem:[%s201 + $0x190] sm:$0xf]
        %v2322 = vld [vmem:[%s201 + $0x194] sm:$0xf]
        %v2323 = vld [vmem:[%s201 + $0x198] sm:$0xf]
        %v2324 = vld [vmem:[%s201 + $0x19c] sm:$0xf]
        %v2325 = vld [vmem:[%s201 + $0x1a0] sm:$0xf]
        %v2326 = vld [vmem:[%s201 + $0x1a4] sm:$0xf]
        %v2327 = vld [vmem:[%s201 + $0x1a8] sm:$0xf]
        %v2328 = vld [vmem:[%s201 + $0x1ac] sm:$0xf]
        %v2329 = vld [vmem:[%s201 + $0x1b0] sm:$0xf]
        %v2330 = vld [vmem:[%s201 + $0x1b4] sm:$0xf]
        %v2331 = vld [vmem:[%s201 + $0x1b8] sm:$0xf]
        %v2332 = vld [vmem:[%s201 + $0x1bc] sm:$0xf]
        %v2333 = vld [vmem:[%s201 + $0x1c0] sm:$0xf]
        %v2334 = vld [vmem:[%s201 + $0x1c4] sm:$0xf]
        %v2335 = vld [vmem:[%s201 + $0x1c8] sm:$0xf]
        %v2336 = vld [vmem:[%s201 + $0x1cc] sm:$0xf]
        %v2337 = vld [vmem:[%s201 + $0x1d0] sm:$0xf]
        %v2338 = vld [vmem:[%s201 + $0x1d4] sm:$0xf]
        %v2339 = vld [vmem:[%s201 + $0x1d8] sm:$0xf]
        %v2340 = vld [vmem:[%s201 + $0x1dc] sm:$0xf]
        %v2341 = vld [vmem:[%s201 + $0x1e0] sm:$0xf]
        %v2342 = vld [vmem:[%s201 + $0x1e4] sm:$0xf]
        %v2343 = vld [vmem:[%s201 + $0x1e8] sm:$0xf]
        %v2344 = vld [vmem:[%s201 + $0x1ec] sm:$0xf]
        %v2345 = vld [vmem:[%s201 + $0x1f0] sm:$0xf]
        %v2346 = vld [vmem:[%s201 + $0x1f4] sm:$0xf]
        %v2347 = vld [vmem:[%s201 + $0x1f8] sm:$0xf]
        %v2348 = vld [vmem:[%s201 + $0x1fc] sm:$0xf]
        %v2477 = vunpack.c.l.b16 %v2221
        %v2478 = vunpack.c.l.b16 %v2222
        %v2479 = vunpack.c.l.b16 %v2223
        %v2480 = vunpack.c.l.b16 %v2224
        %v2481 = vunpack.c.l.b16 %v2225
        %v2482 = vunpack.c.l.b16 %v2226
        %v2483 = vunpack.c.l.b16 %v2227
        %v2484 = vunpack.c.l.b16 %v2228
        %v2485 = vunpack.c.l.b16 %v2229
        %v2486 = vunpack.c.l.b16 %v2230
        %v2487 = vunpack.c.l.b16 %v2231
        %v2488 = vunpack.c.l.b16 %v2232
        %v2489 = vunpack.c.l.b16 %v2233
        %v2490 = vunpack.c.l.b16 %v2234
        %v2491 = vunpack.c.l.b16 %v2235
        %v2492 = vunpack.c.l.b16 %v2236
        %v2493 = vunpack.c.l.b16 %v2237
        %v2494 = vunpack.c.l.b16 %v2238
        %v2495 = vunpack.c.l.b16 %v2239
        %v2496 = vunpack.c.l.b16 %v2240
        %v2497 = vunpack.c.l.b16 %v2241
        %v2498 = vunpack.c.l.b16 %v2242
        %v2499 = vunpack.c.l.b16 %v2243
        %v2500 = vunpack.c.l.b16 %v2244
        %v2501 = vunpack.c.l.b16 %v2245
        %v2502 = vunpack.c.l.b16 %v2246
        %v2503 = vunpack.c.l.b16 %v2247
        %v2504 = vunpack.c.l.b16 %v2248
        %v2505 = vunpack.c.l.b16 %v2249
        %v2506 = vunpack.c.l.b16 %v2250
        %v2507 = vunpack.c.l.b16 %v2251
        %v2508 = vunpack.c.l.b16 %v2252
        %v2509 = vunpack.c.l.b16 %v2253
        %v2510 = vunpack.c.l.b16 %v2254
        %v2511 = vunpack.c.l.b16 %v2255
        %v2512 = vunpack.c.l.b16 %v2256
        %v2513 = vunpack.c.l.b16 %v2257
        %v2514 = vunpack.c.l.b16 %v2258
        %v2515 = vunpack.c.l.b16 %v2259
        %v2516 = vunpack.c.l.b16 %v2260
        %v2517 = vunpack.c.l.b16 %v2261
        %v2518 = vunpack.c.l.b16 %v2262
        %v2519 = vunpack.c.l.b16 %v2263
        %v2520 = vunpack.c.l.b16 %v2264
        %v2521 = vunpack.c.l.b16 %v2265
        %v2522 = vunpack.c.l.b16 %v2266
        %v2523 = vunpack.c.l.b16 %v2267
        %v2524 = vunpack.c.l.b16 %v2268
        %v2525 = vunpack.c.l.b16 %v2269
        %v2526 = vunpack.c.l.b16 %v2270
        %v2527 = vunpack.c.l.b16 %v2271
        %v2528 = vunpack.c.l.b16 %v2272
        %v2529 = vunpack.c.l.b16 %v2273
        %v2530 = vunpack.c.l.b16 %v2274
        %v2531 = vunpack.c.l.b16 %v2275
        %v2532 = vunpack.c.l.b16 %v2276
        %v2533 = vunpack.c.l.b16 %v2277
        %v2534 = vunpack.c.l.b16 %v2278
        %v2535 = vunpack.c.l.b16 %v2279
        %v2536 = vunpack.c.l.b16 %v2280
        %v2537 = vunpack.c.l.b16 %v2281
        %v2538 = vunpack.c.l.b16 %v2282
        %v2539 = vunpack.c.l.b16 %v2283
        %v2540 = vunpack.c.l.b16 %v2284
        %v2541 = vunpack.c.l.b16 %v2285
        %v2542 = vunpack.c.l.b16 %v2286
        %v2543 = vunpack.c.l.b16 %v2287
        %v2544 = vunpack.c.l.b16 %v2288
        %v2545 = vunpack.c.l.b16 %v2289
        %v2546 = vunpack.c.l.b16 %v2290
        %v2547 = vunpack.c.l.b16 %v2291
        %v2548 = vunpack.c.l.b16 %v2292
        %v2549 = vunpack.c.l.b16 %v2293
        %v2550 = vunpack.c.l.b16 %v2294
        %v2551 = vunpack.c.l.b16 %v2295
        %v2552 = vunpack.c.l.b16 %v2296
        %v2553 = vunpack.c.l.b16 %v2297
        %v2554 = vunpack.c.l.b16 %v2298
        %v2555 = vunpack.c.l.b16 %v2299
        %v2556 = vunpack.c.l.b16 %v2300
        %v2557 = vunpack.c.l.b16 %v2301
        %v2558 = vunpack.c.l.b16 %v2302
        %v2559 = vunpack.c.l.b16 %v2303
        %v2560 = vunpack.c.l.b16 %v2304
        %v2561 = vunpack.c.l.b16 %v2305
        %v2562 = vunpack.c.l.b16 %v2306
        %v2563 = vunpack.c.l.b16 %v2307
        %v2564 = vunpack.c.l.b16 %v2308
        %v2565 = vunpack.c.l.b16 %v2309
        %v2566 = vunpack.c.l.b16 %v2310
        %v2567 = vunpack.c.l.b16 %v2311
        %v2568 = vunpack.c.l.b16 %v2312
        %v2569 = vunpack.c.l.b16 %v2313
        %v2570 = vunpack.c.l.b16 %v2314
        %v2571 = vunpack.c.l.b16 %v2315
        %v2572 = vunpack.c.l.b16 %v2316
        %v2573 = vunpack.c.l.b16 %v2317
        %v2574 = vunpack.c.l.b16 %v2318
        %v2575 = vunpack.c.l.b16 %v2319
        %v2576 = vunpack.c.l.b16 %v2320
        %v2577 = vunpack.c.l.b16 %v2321
        %v2578 = vunpack.c.l.b16 %v2322
        %v2579 = vunpack.c.l.b16 %v2323
        %v2580 = vunpack.c.l.b16 %v2324
        %v2581 = vunpack.c.l.b16 %v2325
        %v2582 = vunpack.c.l.b16 %v2326
        %v2583 = vunpack.c.l.b16 %v2327
        %v2584 = vunpack.c.l.b16 %v2328
        %v2585 = vunpack.c.l.b16 %v2329
        %v2586 = vunpack.c.l.b16 %v2330
        %v2587 = vunpack.c.l.b16 %v2331
        %v2588 = vunpack.c.l.b16 %v2332
        %v2589 = vunpack.c.l.b16 %v2333
        %v2590 = vunpack.c.l.b16 %v2334
        %v2591 = vunpack.c.l.b16 %v2335
        %v2592 = vunpack.c.l.b16 %v2336
        %v2593 = vunpack.c.l.b16 %v2337
        %v2594 = vunpack.c.l.b16 %v2338
        %v2595 = vunpack.c.l.b16 %v2339
        %v2596 = vunpack.c.l.b16 %v2340
        %v2597 = vunpack.c.l.b16 %v2341
        %v2598 = vunpack.c.l.b16 %v2342
        %v2599 = vunpack.c.l.b16 %v2343
        %v2600 = vunpack.c.l.b16 %v2344
        %v2601 = vunpack.c.l.b16 %v2345
        %v2602 = vunpack.c.l.b16 %v2346
        %v2603 = vunpack.c.l.b16 %v2347
        %v2604 = vunpack.c.l.b16 %v2348
        %v2605 = vpack.c.b16 %v2478, %v2477
        %v2606 = vpack.c.b16 %v2480, %v2479
        %v2607 = vpack.c.b16 %v2482, %v2481
        %v2608 = vpack.c.b16 %v2484, %v2483
        %v2609 = vpack.c.b16 %v2486, %v2485
        %v2610 = vpack.c.b16 %v2488, %v2487
        %v2611 = vpack.c.b16 %v2490, %v2489
        %v2612 = vpack.c.b16 %v2492, %v2491
        %v2613 = vpack.c.b16 %v2494, %v2493
        %v2614 = vpack.c.b16 %v2496, %v2495
        %v2615 = vpack.c.b16 %v2498, %v2497
        %v2616 = vpack.c.b16 %v2500, %v2499
        %v2617 = vpack.c.b16 %v2502, %v2501
        %v2618 = vpack.c.b16 %v2504, %v2503
        %v2619 = vpack.c.b16 %v2506, %v2505
        %v2620 = vpack.c.b16 %v2508, %v2507
        %v2621 = vpack.c.b16 %v2510, %v2509
        %v2622 = vpack.c.b16 %v2512, %v2511
        %v2623 = vpack.c.b16 %v2514, %v2513
        %v2624 = vpack.c.b16 %v2516, %v2515
        %v2625 = vpack.c.b16 %v2518, %v2517
        %v2626 = vpack.c.b16 %v2520, %v2519
        %v2627 = vpack.c.b16 %v2522, %v2521
        %v2628 = vpack.c.b16 %v2524, %v2523
        %v2629 = vpack.c.b16 %v2526, %v2525
        %v2630 = vpack.c.b16 %v2528, %v2527
        %v2631 = vpack.c.b16 %v2530, %v2529
        %v2632 = vpack.c.b16 %v2532, %v2531
        %v2633 = vpack.c.b16 %v2534, %v2533
        %v2634 = vpack.c.b16 %v2536, %v2535
        %v2635 = vpack.c.b16 %v2538, %v2537
        %v2636 = vpack.c.b16 %v2540, %v2539
        %v2637 = vpack.c.b16 %v2542, %v2541
        %v2638 = vpack.c.b16 %v2544, %v2543
        %v2639 = vpack.c.b16 %v2546, %v2545
        %v2640 = vpack.c.b16 %v2548, %v2547
        %v2641 = vpack.c.b16 %v2550, %v2549
        %v2642 = vpack.c.b16 %v2552, %v2551
        %v2643 = vpack.c.b16 %v2554, %v2553
        %v2644 = vpack.c.b16 %v2556, %v2555
        %v2645 = vpack.c.b16 %v2558, %v2557
        %v2646 = vpack.c.b16 %v2560, %v2559
        %v2647 = vpack.c.b16 %v2562, %v2561
        %v2648 = vpack.c.b16 %v2564, %v2563
        %v2649 = vpack.c.b16 %v2566, %v2565
        %v2650 = vpack.c.b16 %v2568, %v2567
        %v2651 = vpack.c.b16 %v2570, %v2569
        %v2652 = vpack.c.b16 %v2572, %v2571
        %v2653 = vpack.c.b16 %v2574, %v2573
        %v2654 = vpack.c.b16 %v2576, %v2575
        %v2655 = vpack.c.b16 %v2578, %v2577
        %v2656 = vpack.c.b16 %v2580, %v2579
        %v2657 = vpack.c.b16 %v2582, %v2581
        %v2658 = vpack.c.b16 %v2584, %v2583
        %v2659 = vpack.c.b16 %v2586, %v2585
        %v2660 = vpack.c.b16 %v2588, %v2587
        %v2661 = vpack.c.b16 %v2590, %v2589
        %v2662 = vpack.c.b16 %v2592, %v2591
        %v2663 = vpack.c.b16 %v2594, %v2593
        %v2664 = vpack.c.b16 %v2596, %v2595
        %v2665 = vpack.c.b16 %v2598, %v2597
        %v2666 = vpack.c.b16 %v2600, %v2599
        %v2667 = vpack.c.b16 %v2602, %v2601
        %v2668 = vpack.c.b16 %v2604, %v2603
        %2733 = vmatpush.bf16.msra.mxu0 %v2612
        %2734 = vmatpush.bf16.msra.mxu0 %v2611
        %2735 = vmatpush.bf16.msra.mxu0 %v2610
        %2736 = vmatpush.bf16.msra.mxu0 %v2609
        %2737 = vmatpush.bf16.msra.mxu0 %v2608
        %2738 = vmatpush.bf16.msra.mxu0 %v2607
        %2739 = vmatpush.bf16.msra.mxu0 %v2606
        %2740 = vmatpush.bf16.msra.mxu0 %v2605
        %2741 = vmatmul.bf16.gmra.mxu0 %v1901
        %v2742 = vpop.f32.mrf.mxu0
        %v2743 = vadd.f32 0.0, %v2742
        %v2744 = vpop.f32.mrf.mxu0
        %v2745 = vadd.f32 0.0, %v2744
        %2746 = vmatmul.bf16.gmra.mxu0 %v1909
        %v2747 = vpop.f32.mrf.mxu0
        %v2748 = vadd.f32 0.0, %v2747
        %v2749 = vpop.f32.mrf.mxu0
        %v2750 = vadd.f32 0.0, %v2749
        %2751 = vmatmul.bf16.gmra.mxu0 %v1917
        %v2752 = vpop.f32.mrf.mxu0
        %v2753 = vadd.f32 0.0, %v2752
        %v2754 = vpop.f32.mrf.mxu0
        %v2755 = vadd.f32 0.0, %v2754
        %2756 = vmatmul.bf16.gmra.mxu0 %v1925
        %v2757 = vpop.f32.mrf.mxu0
        %v2758 = vadd.f32 0.0, %v2757
        %v2759 = vpop.f32.mrf.mxu0
        %v2760 = vadd.f32 0.0, %v2759
        %2761 = vmatmul.bf16.gmra.mxu0 %v1933
        %v2762 = vpop.f32.mrf.mxu0
        %v2763 = vadd.f32 0.0, %v2762
        %v2764 = vpop.f32.mrf.mxu0
        %v2765 = vadd.f32 0.0, %v2764
        %2766 = vmatmul.bf16.gmra.mxu0 %v1941
        %v2767 = vpop.f32.mrf.mxu0
        %v2768 = vadd.f32 0.0, %v2767
        %v2769 = vpop.f32.mrf.mxu0
        %v2770 = vadd.f32 0.0, %v2769
        %2771 = vmatmul.bf16.gmra.mxu0 %v1949
        %v2772 = vpop.f32.mrf.mxu0
        %v2773 = vadd.f32 0.0, %v2772
        %v2774 = vpop.f32.mrf.mxu0
        %v2775 = vadd.f32 0.0, %v2774
        %2776 = vmatmul.bf16.gmra.mxu0 %v1957
        %v2777 = vpop.f32.mrf.mxu0
        %v2778 = vadd.f32 0.0, %v2777
        %v2779 = vpop.f32.mrf.mxu0
        %v2780 = vadd.f32 0.0, %v2779
        %2781 = vmatmul.bf16.gmra.mxu0 %v1965
        %v2782 = vpop.f32.mrf.mxu0
        %v2783 = vadd.f32 0.0, %v2782
        %v2784 = vpop.f32.mrf.mxu0
        %v2785 = vadd.f32 0.0, %v2784
        %2786 = vmatmul.bf16.gmra.mxu0 %v1973
        %v2787 = vpop.f32.mrf.mxu0
        %v2788 = vadd.f32 0.0, %v2787
        %v2789 = vpop.f32.mrf.mxu0
        %v2790 = vadd.f32 0.0, %v2789
        %2791 = vmatmul.bf16.gmra.mxu0 %v1981
        %v2792 = vpop.f32.mrf.mxu0
        %v2793 = vadd.f32 0.0, %v2792
        %v2794 = vpop.f32.mrf.mxu0
        %v2795 = vadd.f32 0.0, %v2794
        %2796 = vmatmul.bf16.gmra.mxu0 %v1989
        %v2797 = vpop.f32.mrf.mxu0
        %v2798 = vadd.f32 0.0, %v2797
        %v2799 = vpop.f32.mrf.mxu0
        %v2800 = vadd.f32 0.0, %v2799
        %2801 = vmatmul.bf16.gmra.mxu0 %v1997
        %v2802 = vpop.f32.mrf.mxu0
        %v2803 = vadd.f32 0.0, %v2802
        %v2804 = vpop.f32.mrf.mxu0
        %v2805 = vadd.f32 0.0, %v2804
        %2806 = vmatmul.bf16.gmra.mxu0 %v2005
        %v2807 = vpop.f32.mrf.mxu0
        %v2808 = vadd.f32 0.0, %v2807
        %v2809 = vpop.f32.mrf.mxu0
        %v2810 = vadd.f32 0.0, %v2809
        %2811 = vmatmul.bf16.gmra.mxu0 %v2013
        %v2812 = vpop.f32.mrf.mxu0
        %v2813 = vadd.f32 0.0, %v2812
        %v2814 = vpop.f32.mrf.mxu0
        %v2815 = vadd.f32 0.0, %v2814
        %2816 = vmatmul.bf16.gmra.mxu0 %v2021
        %v2817 = vpop.f32.mrf.mxu0
        %v2818 = vadd.f32 0.0, %v2817
        %v2819 = vpop.f32.mrf.mxu0
        %v2820 = vadd.f32 0.0, %v2819
        %2821 = vmatmul.bf16.gmra.mxu0 %v2029
        %v2822 = vpop.f32.mrf.mxu0
        %v2823 = vadd.f32 0.0, %v2822
        %v2824 = vpop.f32.mrf.mxu0
        %v2825 = vadd.f32 0.0, %v2824
        %2826 = vmatmul.bf16.gmra.mxu0 %v2037
        %v2827 = vpop.f32.mrf.mxu0
        %v2828 = vadd.f32 0.0, %v2827
        %v2829 = vpop.f32.mrf.mxu0
        %v2830 = vadd.f32 0.0, %v2829
        %2831 = vmatmul.bf16.gmra.mxu0 %v2045
        %v2832 = vpop.f32.mrf.mxu0
        %v2833 = vadd.f32 0.0, %v2832
        %v2834 = vpop.f32.mrf.mxu0
        %v2835 = vadd.f32 0.0, %v2834
        %2836 = vmatmul.bf16.gmra.mxu0 %v2053
        %v2837 = vpop.f32.mrf.mxu0
        %v2838 = vadd.f32 0.0, %v2837
        %v2839 = vpop.f32.mrf.mxu0
        %v2840 = vadd.f32 0.0, %v2839
        %2841 = vmatmul.bf16.gmra.mxu0 %v2061
        %v2842 = vpop.f32.mrf.mxu0
        %v2843 = vadd.f32 0.0, %v2842
        %v2844 = vpop.f32.mrf.mxu0
        %v2845 = vadd.f32 0.0, %v2844
        %2846 = vmatmul.bf16.gmra.mxu0 %v2069
        %v2847 = vpop.f32.mrf.mxu0
        %v2848 = vadd.f32 0.0, %v2847
        %v2849 = vpop.f32.mrf.mxu0
        %v2850 = vadd.f32 0.0, %v2849
        %2851 = vmatmul.bf16.gmra.mxu0 %v2077
        %v2852 = vpop.f32.mrf.mxu0
        %v2853 = vadd.f32 0.0, %v2852
        %v2854 = vpop.f32.mrf.mxu0
        %v2855 = vadd.f32 0.0, %v2854
        %2856 = vmatmul.bf16.gmra.mxu0 %v2085
        %v2857 = vpop.f32.mrf.mxu0
        %v2858 = vadd.f32 0.0, %v2857
        %v2859 = vpop.f32.mrf.mxu0
        %v2860 = vadd.f32 0.0, %v2859
        %2861 = vmatmul.bf16.gmra.mxu0 %v2093
        %v2862 = vpop.f32.mrf.mxu0
        %v2863 = vadd.f32 0.0, %v2862
        %v2864 = vpop.f32.mrf.mxu0
        %v2865 = vadd.f32 0.0, %v2864
        %2866 = vmatmul.bf16.gmra.mxu0 %v2101
        %v2867 = vpop.f32.mrf.mxu0
        %v2868 = vadd.f32 0.0, %v2867
        %v2869 = vpop.f32.mrf.mxu0
        %v2870 = vadd.f32 0.0, %v2869
        %2871 = vmatmul.bf16.gmra.mxu0 %v2109
        %v2872 = vpop.f32.mrf.mxu0
        %v2873 = vadd.f32 0.0, %v2872
        %v2874 = vpop.f32.mrf.mxu0
        %v2875 = vadd.f32 0.0, %v2874
        %2876 = vmatmul.bf16.gmra.mxu0 %v2117
        %v2877 = vpop.f32.mrf.mxu0
        %v2878 = vadd.f32 0.0, %v2877
        %v2879 = vpop.f32.mrf.mxu0
        %v2880 = vadd.f32 0.0, %v2879
        %2881 = vmatmul.bf16.gmra.mxu0 %v2125
        %v2882 = vpop.f32.mrf.mxu0
        %v2883 = vadd.f32 0.0, %v2882
        %v2884 = vpop.f32.mrf.mxu0
        %v2885 = vadd.f32 0.0, %v2884
        %2886 = vmatmul.bf16.gmra.mxu0 %v2133
        %v2887 = vpop.f32.mrf.mxu0
        %v2888 = vadd.f32 0.0, %v2887
        %v2889 = vpop.f32.mrf.mxu0
        %v2890 = vadd.f32 0.0, %v2889
        %2891 = vmatmul.bf16.gmra.mxu0 %v2141
        %v2892 = vpop.f32.mrf.mxu0
        %v2893 = vadd.f32 0.0, %v2892
        %v2894 = vpop.f32.mrf.mxu0
        %v2895 = vadd.f32 0.0, %v2894
        %2896 = vmatmul.bf16.gmra.mxu0 %v2149
        %v2897 = vpop.f32.mrf.mxu0
        %v2898 = vadd.f32 0.0, %v2897
        %v2899 = vpop.f32.mrf.mxu0
        %v2900 = vadd.f32 0.0, %v2899
        %2901 = vdwg.mxu0
        %2902 = vmatpush.bf16.msra.mxu0 %v2620
        %2903 = vmatpush.bf16.msra.mxu0 %v2619
        %2904 = vmatpush.bf16.msra.mxu0 %v2618
        %2905 = vmatpush.bf16.msra.mxu0 %v2617
        %2906 = vmatpush.bf16.msra.mxu0 %v2616
        %2907 = vmatpush.bf16.msra.mxu0 %v2615
        %2908 = vmatpush.bf16.msra.mxu0 %v2614
        %2909 = vmatpush.bf16.msra.mxu0 %v2613
        %2910 = vmatmul.bf16.gmra.mxu0 %v1902
        %v2911 = vpop.f32.mrf.mxu0
        %v2912 = vadd.f32 %v2743, %v2911
        %v2913 = vpop.f32.mrf.mxu0
        %v2914 = vadd.f32 %v2745, %v2913
        %2915 = vmatmul.bf16.gmra.mxu0 %v1910
        %v2916 = vpop.f32.mrf.mxu0
        %v2917 = vadd.f32 %v2748, %v2916
        %v2918 = vpop.f32.mrf.mxu0
        %v2919 = vadd.f32 %v2750, %v2918
        %2920 = vmatmul.bf16.gmra.mxu0 %v1918
        %v2921 = vpop.f32.mrf.mxu0
        %v2922 = vadd.f32 %v2753, %v2921
        %v2923 = vpop.f32.mrf.mxu0
        %v2924 = vadd.f32 %v2755, %v2923
        %2925 = vmatmul.bf16.gmra.mxu0 %v1926
        %v2926 = vpop.f32.mrf.mxu0
        %v2927 = vadd.f32 %v2758, %v2926
        %v2928 = vpop.f32.mrf.mxu0
        %v2929 = vadd.f32 %v2760, %v2928
        %2930 = vmatmul.bf16.gmra.mxu0 %v1934
        %v2931 = vpop.f32.mrf.mxu0
        %v2932 = vadd.f32 %v2763, %v2931
        %v2933 = vpop.f32.mrf.mxu0
        %v2934 = vadd.f32 %v2765, %v2933
        %2935 = vmatmul.bf16.gmra.mxu0 %v1942
        %v2936 = vpop.f32.mrf.mxu0
        %v2937 = vadd.f32 %v2768, %v2936
        %v2938 = vpop.f32.mrf.mxu0
        %v2939 = vadd.f32 %v2770, %v2938
        %2940 = vmatmul.bf16.gmra.mxu0 %v1950
        %v2941 = vpop.f32.mrf.mxu0
        %v2942 = vadd.f32 %v2773, %v2941
        %v2943 = vpop.f32.mrf.mxu0
        %v2944 = vadd.f32 %v2775, %v2943
        %2945 = vmatmul.bf16.gmra.mxu0 %v1958
        %v2946 = vpop.f32.mrf.mxu0
        %v2947 = vadd.f32 %v2778, %v2946
        %v2948 = vpop.f32.mrf.mxu0
        %v2949 = vadd.f32 %v2780, %v2948
        %2950 = vmatmul.bf16.gmra.mxu0 %v1966
        %v2951 = vpop.f32.mrf.mxu0
        %v2952 = vadd.f32 %v2783, %v2951
        %v2953 = vpop.f32.mrf.mxu0
        %v2954 = vadd.f32 %v2785, %v2953
        %2955 = vmatmul.bf16.gmra.mxu0 %v1974
        %v2956 = vpop.f32.mrf.mxu0
        %v2957 = vadd.f32 %v2788, %v2956
        %v2958 = vpop.f32.mrf.mxu0
        %v2959 = vadd.f32 %v2790, %v2958
        %2960 = vmatmul.bf16.gmra.mxu0 %v1982
        %v2961 = vpop.f32.mrf.mxu0
        %v2962 = vadd.f32 %v2793, %v2961
        %v2963 = vpop.f32.mrf.mxu0
        %v2964 = vadd.f32 %v2795, %v2963
        %2965 = vmatmul.bf16.gmra.mxu0 %v1990
        %v2966 = vpop.f32.mrf.mxu0
        %v2967 = vadd.f32 %v2798, %v2966
        %v2968 = vpop.f32.mrf.mxu0
        %v2969 = vadd.f32 %v2800, %v2968
        %2970 = vmatmul.bf16.gmra.mxu0 %v1998
        %v2971 = vpop.f32.mrf.mxu0
        %v2972 = vadd.f32 %v2803, %v2971
        %v2973 = vpop.f32.mrf.mxu0
        %v2974 = vadd.f32 %v2805, %v2973
        %2975 = vmatmul.bf16.gmra.mxu0 %v2006
        %v2976 = vpop.f32.mrf.mxu0
        %v2977 = vadd.f32 %v2808, %v2976
        %v2978 = vpop.f32.mrf.mxu0
        %v2979 = vadd.f32 %v2810, %v2978
        %2980 = vmatmul.bf16.gmra.mxu0 %v2014
        %v2981 = vpop.f32.mrf.mxu0
        %v2982 = vadd.f32 %v2813, %v2981
        %v2983 = vpop.f32.mrf.mxu0
        %v2984 = vadd.f32 %v2815, %v2983
        %2985 = vmatmul.bf16.gmra.mxu0 %v2022
        %v2986 = vpop.f32.mrf.mxu0
        %v2987 = vadd.f32 %v2818, %v2986
        %v2988 = vpop.f32.mrf.mxu0
        %v2989 = vadd.f32 %v2820, %v2988
        %2990 = vmatmul.bf16.gmra.mxu0 %v2030
        %v2991 = vpop.f32.mrf.mxu0
        %v2992 = vadd.f32 %v2823, %v2991
        %v2993 = vpop.f32.mrf.mxu0
        %v2994 = vadd.f32 %v2825, %v2993
        %2995 = vmatmul.bf16.gmra.mxu0 %v2038
        %v2996 = vpop.f32.mrf.mxu0
        %v2997 = vadd.f32 %v2828, %v2996
        %v2998 = vpop.f32.mrf.mxu0
        %v2999 = vadd.f32 %v2830, %v2998
        %3000 = vmatmul.bf16.gmra.mxu0 %v2046
        %v3001 = vpop.f32.mrf.mxu0
        %v3002 = vadd.f32 %v2833, %v3001
        %v3003 = vpop.f32.mrf.mxu0
        %v3004 = vadd.f32 %v2835, %v3003
        %3005 = vmatmul.bf16.gmra.mxu0 %v2054
        %v3006 = vpop.f32.mrf.mxu0
        %v3007 = vadd.f32 %v2838, %v3006
        %v3008 = vpop.f32.mrf.mxu0
        %v3009 = vadd.f32 %v2840, %v3008
        %3010 = vmatmul.bf16.gmra.mxu0 %v2062
        %v3011 = vpop.f32.mrf.mxu0
        %v3012 = vadd.f32 %v2843, %v3011
        %v3013 = vpop.f32.mrf.mxu0
        %v3014 = vadd.f32 %v2845, %v3013
        %3015 = vmatmul.bf16.gmra.mxu0 %v2070
        %v3016 = vpop.f32.mrf.mxu0
        %v3017 = vadd.f32 %v2848, %v3016
        %v3018 = vpop.f32.mrf.mxu0
        %v3019 = vadd.f32 %v2850, %v3018
        %3020 = vmatmul.bf16.gmra.mxu0 %v2078
        %v3021 = vpop.f32.mrf.mxu0
        %v3022 = vadd.f32 %v2853, %v3021
        %v3023 = vpop.f32.mrf.mxu0
        %v3024 = vadd.f32 %v2855, %v3023
        %3025 = vmatmul.bf16.gmra.mxu0 %v2086
        %v3026 = vpop.f32.mrf.mxu0
        %v3027 = vadd.f32 %v2858, %v3026
        %v3028 = vpop.f32.mrf.mxu0
        %v3029 = vadd.f32 %v2860, %v3028
        %3030 = vmatmul.bf16.gmra.mxu0 %v2094
        %v3031 = vpop.f32.mrf.mxu0
        %v3032 = vadd.f32 %v2863, %v3031
        %v3033 = vpop.f32.mrf.mxu0
        %v3034 = vadd.f32 %v2865, %v3033
        %3035 = vmatmul.bf16.gmra.mxu0 %v2102
        %v3036 = vpop.f32.mrf.mxu0
        %v3037 = vadd.f32 %v2868, %v3036
        %v3038 = vpop.f32.mrf.mxu0
        %v3039 = vadd.f32 %v2870, %v3038
        %3040 = vmatmul.bf16.gmra.mxu0 %v2110
        %v3041 = vpop.f32.mrf.mxu0
        %v3042 = vadd.f32 %v2873, %v3041
        %v3043 = vpop.f32.mrf.mxu0
        %v3044 = vadd.f32 %v2875, %v3043
        %3045 = vmatmul.bf16.gmra.mxu0 %v2118
        %v3046 = vpop.f32.mrf.mxu0
        %v3047 = vadd.f32 %v2878, %v3046
        %v3048 = vpop.f32.mrf.mxu0
        %v3049 = vadd.f32 %v2880, %v3048
        %3050 = vmatmul.bf16.gmra.mxu0 %v2126
        %v3051 = vpop.f32.mrf.mxu0
        %v3052 = vadd.f32 %v2883, %v3051
        %v3053 = vpop.f32.mrf.mxu0
        %v3054 = vadd.f32 %v2885, %v3053
        %3055 = vmatmul.bf16.gmra.mxu0 %v2134
        %v3056 = vpop.f32.mrf.mxu0
        %v3057 = vadd.f32 %v2888, %v3056
        %v3058 = vpop.f32.mrf.mxu0
        %v3059 = vadd.f32 %v2890, %v3058
        %3060 = vmatmul.bf16.gmra.mxu0 %v2142
        %v3061 = vpop.f32.mrf.mxu0
        %v3062 = vadd.f32 %v2893, %v3061
        %v3063 = vpop.f32.mrf.mxu0
        %v3064 = vadd.f32 %v2895, %v3063
        %3065 = vmatmul.bf16.gmra.mxu0 %v2150
        %v3066 = vpop.f32.mrf.mxu0
        %v3067 = vadd.f32 %v2898, %v3066
        %v3068 = vpop.f32.mrf.mxu0
        %v3069 = vadd.f32 %v2900, %v3068
        %3070 = vdwg.mxu0
        %3071 = vmatpush.bf16.msra.mxu0 %v2628
        %3072 = vmatpush.bf16.msra.mxu0 %v2627
        %3073 = vmatpush.bf16.msra.mxu0 %v2626
        %3074 = vmatpush.bf16.msra.mxu0 %v2625
        %3075 = vmatpush.bf16.msra.mxu0 %v2624
        %3076 = vmatpush.bf16.msra.mxu0 %v2623
        %3077 = vmatpush.bf16.msra.mxu0 %v2622
        %3078 = vmatpush.bf16.msra.mxu0 %v2621
        %3079 = vmatmul.bf16.gmra.mxu0 %v1903
        %v3080 = vpop.f32.mrf.mxu0
        %v3081 = vadd.f32 %v2912, %v3080
        %v3082 = vpop.f32.mrf.mxu0
        %v3083 = vadd.f32 %v2914, %v3082
        %3084 = vmatmul.bf16.gmra.mxu0 %v1911
        %v3085 = vpop.f32.mrf.mxu0
        %v3086 = vadd.f32 %v2917, %v3085
        %v3087 = vpop.f32.mrf.mxu0
        %v3088 = vadd.f32 %v2919, %v3087
        %3089 = vmatmul.bf16.gmra.mxu0 %v1919
        %v3090 = vpop.f32.mrf.mxu0
        %v3091 = vadd.f32 %v2922, %v3090
        %v3092 = vpop.f32.mrf.mxu0
        %v3093 = vadd.f32 %v2924, %v3092
        %3094 = vmatmul.bf16.gmra.mxu0 %v1927
        %v3095 = vpop.f32.mrf.mxu0
        %v3096 = vadd.f32 %v2927, %v3095
        %v3097 = vpop.f32.mrf.mxu0
        %v3098 = vadd.f32 %v2929, %v3097
        %3099 = vmatmul.bf16.gmra.mxu0 %v1935
        %v3100 = vpop.f32.mrf.mxu0
        %v3101 = vadd.f32 %v2932, %v3100
        %v3102 = vpop.f32.mrf.mxu0
        %v3103 = vadd.f32 %v2934, %v3102
        %3104 = vmatmul.bf16.gmra.mxu0 %v1943
        %v3105 = vpop.f32.mrf.mxu0
        %v3106 = vadd.f32 %v2937, %v3105
        %v3107 = vpop.f32.mrf.mxu0
        %v3108 = vadd.f32 %v2939, %v3107
        %3109 = vmatmul.bf16.gmra.mxu0 %v1951
        %v3110 = vpop.f32.mrf.mxu0
        %v3111 = vadd.f32 %v2942, %v3110
        %v3112 = vpop.f32.mrf.mxu0
        %v3113 = vadd.f32 %v2944, %v3112
        %3114 = vmatmul.bf16.gmra.mxu0 %v1959
        %v3115 = vpop.f32.mrf.mxu0
        %v3116 = vadd.f32 %v2947, %v3115
        %v3117 = vpop.f32.mrf.mxu0
        %v3118 = vadd.f32 %v2949, %v3117
        %3119 = vmatmul.bf16.gmra.mxu0 %v1967
        %v3120 = vpop.f32.mrf.mxu0
        %v3121 = vadd.f32 %v2952, %v3120
        %v3122 = vpop.f32.mrf.mxu0
        %v3123 = vadd.f32 %v2954, %v3122
        %3124 = vmatmul.bf16.gmra.mxu0 %v1975
        %v3125 = vpop.f32.mrf.mxu0
        %v3126 = vadd.f32 %v2957, %v3125
        %v3127 = vpop.f32.mrf.mxu0
        %v3128 = vadd.f32 %v2959, %v3127
        %3129 = vmatmul.bf16.gmra.mxu0 %v1983
        %v3130 = vpop.f32.mrf.mxu0
        %v3131 = vadd.f32 %v2962, %v3130
        %v3132 = vpop.f32.mrf.mxu0
        %v3133 = vadd.f32 %v2964, %v3132
        %3134 = vmatmul.bf16.gmra.mxu0 %v1991
        %v3135 = vpop.f32.mrf.mxu0
        %v3136 = vadd.f32 %v2967, %v3135
        %v3137 = vpop.f32.mrf.mxu0
        %v3138 = vadd.f32 %v2969, %v3137
        %3139 = vmatmul.bf16.gmra.mxu0 %v1999
        %v3140 = vpop.f32.mrf.mxu0
        %v3141 = vadd.f32 %v2972, %v3140
        %v3142 = vpop.f32.mrf.mxu0
        %v3143 = vadd.f32 %v2974, %v3142
        %3144 = vmatmul.bf16.gmra.mxu0 %v2007
        %v3145 = vpop.f32.mrf.mxu0
        %v3146 = vadd.f32 %v2977, %v3145
        %v3147 = vpop.f32.mrf.mxu0
        %v3148 = vadd.f32 %v2979, %v3147
        %3149 = vmatmul.bf16.gmra.mxu0 %v2015
        %v3150 = vpop.f32.mrf.mxu0
        %v3151 = vadd.f32 %v2982, %v3150
        %v3152 = vpop.f32.mrf.mxu0
        %v3153 = vadd.f32 %v2984, %v3152
        %3154 = vmatmul.bf16.gmra.mxu0 %v2023
        %v3155 = vpop.f32.mrf.mxu0
        %v3156 = vadd.f32 %v2987, %v3155
        %v3157 = vpop.f32.mrf.mxu0
        %v3158 = vadd.f32 %v2989, %v3157
        %3159 = vmatmul.bf16.gmra.mxu0 %v2031
        %v3160 = vpop.f32.mrf.mxu0
        %v3161 = vadd.f32 %v2992, %v3160
        %v3162 = vpop.f32.mrf.mxu0
        %v3163 = vadd.f32 %v2994, %v3162
        %3164 = vmatmul.bf16.gmra.mxu0 %v2039
        %v3165 = vpop.f32.mrf.mxu0
        %v3166 = vadd.f32 %v2997, %v3165
        %v3167 = vpop.f32.mrf.mxu0
        %v3168 = vadd.f32 %v2999, %v3167
        %3169 = vmatmul.bf16.gmra.mxu0 %v2047
        %v3170 = vpop.f32.mrf.mxu0
        %v3171 = vadd.f32 %v3002, %v3170
        %v3172 = vpop.f32.mrf.mxu0
        %v3173 = vadd.f32 %v3004, %v3172
        %3174 = vmatmul.bf16.gmra.mxu0 %v2055
        %v3175 = vpop.f32.mrf.mxu0
        %v3176 = vadd.f32 %v3007, %v3175
        %v3177 = vpop.f32.mrf.mxu0
        %v3178 = vadd.f32 %v3009, %v3177
        %3179 = vmatmul.bf16.gmra.mxu0 %v2063
        %v3180 = vpop.f32.mrf.mxu0
        %v3181 = vadd.f32 %v3012, %v3180
        %v3182 = vpop.f32.mrf.mxu0
        %v3183 = vadd.f32 %v3014, %v3182
        %3184 = vmatmul.bf16.gmra.mxu0 %v2071
        %v3185 = vpop.f32.mrf.mxu0
        %v3186 = vadd.f32 %v3017, %v3185
        %v3187 = vpop.f32.mrf.mxu0
        %v3188 = vadd.f32 %v3019, %v3187
        %3189 = vmatmul.bf16.gmra.mxu0 %v2079
        %v3190 = vpop.f32.mrf.mxu0
        %v3191 = vadd.f32 %v3022, %v3190
        %v3192 = vpop.f32.mrf.mxu0
        %v3193 = vadd.f32 %v3024, %v3192
        %3194 = vmatmul.bf16.gmra.mxu0 %v2087
        %v3195 = vpop.f32.mrf.mxu0
        %v3196 = vadd.f32 %v3027, %v3195
        %v3197 = vpop.f32.mrf.mxu0
        %v3198 = vadd.f32 %v3029, %v3197
        %3199 = vmatmul.bf16.gmra.mxu0 %v2095
        %v3200 = vpop.f32.mrf.mxu0
        %v3201 = vadd.f32 %v3032, %v3200
        %v3202 = vpop.f32.mrf.mxu0
        %v3203 = vadd.f32 %v3034, %v3202
        %3204 = vmatmul.bf16.gmra.mxu0 %v2103
        %v3205 = vpop.f32.mrf.mxu0
        %v3206 = vadd.f32 %v3037, %v3205
        %v3207 = vpop.f32.mrf.mxu0
        %v3208 = vadd.f32 %v3039, %v3207
        %3209 = vmatmul.bf16.gmra.mxu0 %v2111
        %v3210 = vpop.f32.mrf.mxu0
        %v3211 = vadd.f32 %v3042, %v3210
        %v3212 = vpop.f32.mrf.mxu0
        %v3213 = vadd.f32 %v3044, %v3212
        %3214 = vmatmul.bf16.gmra.mxu0 %v2119
        %v3215 = vpop.f32.mrf.mxu0
        %v3216 = vadd.f32 %v3047, %v3215
        %v3217 = vpop.f32.mrf.mxu0
        %v3218 = vadd.f32 %v3049, %v3217
        %3219 = vmatmul.bf16.gmra.mxu0 %v2127
        %v3220 = vpop.f32.mrf.mxu0
        %v3221 = vadd.f32 %v3052, %v3220
        %v3222 = vpop.f32.mrf.mxu0
        %v3223 = vadd.f32 %v3054, %v3222
        %3224 = vmatmul.bf16.gmra.mxu0 %v2135
        %v3225 = vpop.f32.mrf.mxu0
        %v3226 = vadd.f32 %v3057, %v3225
        %v3227 = vpop.f32.mrf.mxu0
        %v3228 = vadd.f32 %v3059, %v3227
        %3229 = vmatmul.bf16.gmra.mxu0 %v2143
        %v3230 = vpop.f32.mrf.mxu0
        %v3231 = vadd.f32 %v3062, %v3230
        %v3232 = vpop.f32.mrf.mxu0
        %v3233 = vadd.f32 %v3064, %v3232
        %3234 = vmatmul.bf16.gmra.mxu0 %v2151
        %v3235 = vpop.f32.mrf.mxu0
        %v3236 = vadd.f32 %v3067, %v3235
        %v3237 = vpop.f32.mrf.mxu0
        %v3238 = vadd.f32 %v3069, %v3237
        %3239 = vdwg.mxu0
        %3240 = vmatpush.bf16.msra.mxu0 %v2636
        %3241 = vmatpush.bf16.msra.mxu0 %v2635
        %3242 = vmatpush.bf16.msra.mxu0 %v2634
        %3243 = vmatpush.bf16.msra.mxu0 %v2633
        %3244 = vmatpush.bf16.msra.mxu0 %v2632
        %3245 = vmatpush.bf16.msra.mxu0 %v2631
        %3246 = vmatpush.bf16.msra.mxu0 %v2630
        %3247 = vmatpush.bf16.msra.mxu0 %v2629
        %3248 = vmatmul.bf16.gmra.mxu0 %v1904
        %v3249 = vpop.f32.mrf.mxu0
        %v3250 = vadd.f32 %v3081, %v3249
        %v3251 = vpop.f32.mrf.mxu0
        %v3252 = vadd.f32 %v3083, %v3251
        %3253 = vmatmul.bf16.gmra.mxu0 %v1912
        %v3254 = vpop.f32.mrf.mxu0
        %v3255 = vadd.f32 %v3086, %v3254
        %v3256 = vpop.f32.mrf.mxu0
        %v3257 = vadd.f32 %v3088, %v3256
        %3258 = vmatmul.bf16.gmra.mxu0 %v1920
        %v3259 = vpop.f32.mrf.mxu0
        %v3260 = vadd.f32 %v3091, %v3259
        %v3261 = vpop.f32.mrf.mxu0
        %v3262 = vadd.f32 %v3093, %v3261
        %3263 = vmatmul.bf16.gmra.mxu0 %v1928
        %v3264 = vpop.f32.mrf.mxu0
        %v3265 = vadd.f32 %v3096, %v3264
        %v3266 = vpop.f32.mrf.mxu0
        %v3267 = vadd.f32 %v3098, %v3266
        %3268 = vmatmul.bf16.gmra.mxu0 %v1936
        %v3269 = vpop.f32.mrf.mxu0
        %v3270 = vadd.f32 %v3101, %v3269
        %v3271 = vpop.f32.mrf.mxu0
        %v3272 = vadd.f32 %v3103, %v3271
        %3273 = vmatmul.bf16.gmra.mxu0 %v1944
        %v3274 = vpop.f32.mrf.mxu0
        %v3275 = vadd.f32 %v3106, %v3274
        %v3276 = vpop.f32.mrf.mxu0
        %v3277 = vadd.f32 %v3108, %v3276
        %3278 = vmatmul.bf16.gmra.mxu0 %v1952
        %v3279 = vpop.f32.mrf.mxu0
        %v3280 = vadd.f32 %v3111, %v3279
        %v3281 = vpop.f32.mrf.mxu0
        %v3282 = vadd.f32 %v3113, %v3281
        %3283 = vmatmul.bf16.gmra.mxu0 %v1960
        %v3284 = vpop.f32.mrf.mxu0
        %v3285 = vadd.f32 %v3116, %v3284
        %v3286 = vpop.f32.mrf.mxu0
        %v3287 = vadd.f32 %v3118, %v3286
        %3288 = vmatmul.bf16.gmra.mxu0 %v1968
        %v3289 = vpop.f32.mrf.mxu0
        %v3290 = vadd.f32 %v3121, %v3289
        %v3291 = vpop.f32.mrf.mxu0
        %v3292 = vadd.f32 %v3123, %v3291
        %3293 = vmatmul.bf16.gmra.mxu0 %v1976
        %v3294 = vpop.f32.mrf.mxu0
        %v3295 = vadd.f32 %v3126, %v3294
        %v3296 = vpop.f32.mrf.mxu0
        %v3297 = vadd.f32 %v3128, %v3296
        %3298 = vmatmul.bf16.gmra.mxu0 %v1984
        %v3299 = vpop.f32.mrf.mxu0
        %v3300 = vadd.f32 %v3131, %v3299
        %v3301 = vpop.f32.mrf.mxu0
        %v3302 = vadd.f32 %v3133, %v3301
        %3303 = vmatmul.bf16.gmra.mxu0 %v1992
        %v3304 = vpop.f32.mrf.mxu0
        %v3305 = vadd.f32 %v3136, %v3304
        %v3306 = vpop.f32.mrf.mxu0
        %v3307 = vadd.f32 %v3138, %v3306
        %3308 = vmatmul.bf16.gmra.mxu0 %v2000
        %v3309 = vpop.f32.mrf.mxu0
        %v3310 = vadd.f32 %v3141, %v3309
        %v3311 = vpop.f32.mrf.mxu0
        %v3312 = vadd.f32 %v3143, %v3311
        %3313 = vmatmul.bf16.gmra.mxu0 %v2008
        %v3314 = vpop.f32.mrf.mxu0
        %v3315 = vadd.f32 %v3146, %v3314
        %v3316 = vpop.f32.mrf.mxu0
        %v3317 = vadd.f32 %v3148, %v3316
        %3318 = vmatmul.bf16.gmra.mxu0 %v2016
        %v3319 = vpop.f32.mrf.mxu0
        %v3320 = vadd.f32 %v3151, %v3319
        %v3321 = vpop.f32.mrf.mxu0
        %v3322 = vadd.f32 %v3153, %v3321
        %3323 = vmatmul.bf16.gmra.mxu0 %v2024
        %v3324 = vpop.f32.mrf.mxu0
        %v3325 = vadd.f32 %v3156, %v3324
        %v3326 = vpop.f32.mrf.mxu0
        %v3327 = vadd.f32 %v3158, %v3326
        %3328 = vmatmul.bf16.gmra.mxu0 %v2032
        %v3329 = vpop.f32.mrf.mxu0
        %v3330 = vadd.f32 %v3161, %v3329
        %v3331 = vpop.f32.mrf.mxu0
        %v3332 = vadd.f32 %v3163, %v3331
        %3333 = vmatmul.bf16.gmra.mxu0 %v2040
        %v3334 = vpop.f32.mrf.mxu0
        %v3335 = vadd.f32 %v3166, %v3334
        %v3336 = vpop.f32.mrf.mxu0
        %v3337 = vadd.f32 %v3168, %v3336
        %3338 = vmatmul.bf16.gmra.mxu0 %v2048
        %v3339 = vpop.f32.mrf.mxu0
        %v3340 = vadd.f32 %v3171, %v3339
        %v3341 = vpop.f32.mrf.mxu0
        %v3342 = vadd.f32 %v3173, %v3341
        %3343 = vmatmul.bf16.gmra.mxu0 %v2056
        %v3344 = vpop.f32.mrf.mxu0
        %v3345 = vadd.f32 %v3176, %v3344
        %v3346 = vpop.f32.mrf.mxu0
        %v3347 = vadd.f32 %v3178, %v3346
        %3348 = vmatmul.bf16.gmra.mxu0 %v2064
        %v3349 = vpop.f32.mrf.mxu0
        %v3350 = vadd.f32 %v3181, %v3349
        %v3351 = vpop.f32.mrf.mxu0
        %v3352 = vadd.f32 %v3183, %v3351
        %3353 = vmatmul.bf16.gmra.mxu0 %v2072
        %v3354 = vpop.f32.mrf.mxu0
        %v3355 = vadd.f32 %v3186, %v3354
        %v3356 = vpop.f32.mrf.mxu0
        %v3357 = vadd.f32 %v3188, %v3356
        %3358 = vmatmul.bf16.gmra.mxu0 %v2080
        %v3359 = vpop.f32.mrf.mxu0
        %v3360 = vadd.f32 %v3191, %v3359
        %v3361 = vpop.f32.mrf.mxu0
        %v3362 = vadd.f32 %v3193, %v3361
        %3363 = vmatmul.bf16.gmra.mxu0 %v2088
        %v3364 = vpop.f32.mrf.mxu0
        %v3365 = vadd.f32 %v3196, %v3364
        %v3366 = vpop.f32.mrf.mxu0
        %v3367 = vadd.f32 %v3198, %v3366
        %3368 = vmatmul.bf16.gmra.mxu0 %v2096
        %v3369 = vpop.f32.mrf.mxu0
        %v3370 = vadd.f32 %v3201, %v3369
        %v3371 = vpop.f32.mrf.mxu0
        %v3372 = vadd.f32 %v3203, %v3371
        %3373 = vmatmul.bf16.gmra.mxu0 %v2104
        %v3374 = vpop.f32.mrf.mxu0
        %v3375 = vadd.f32 %v3206, %v3374
        %v3376 = vpop.f32.mrf.mxu0
        %v3377 = vadd.f32 %v3208, %v3376
        %3378 = vmatmul.bf16.gmra.mxu0 %v2112
        %v3379 = vpop.f32.mrf.mxu0
        %v3380 = vadd.f32 %v3211, %v3379
        %v3381 = vpop.f32.mrf.mxu0
        %v3382 = vadd.f32 %v3213, %v3381
        %3383 = vmatmul.bf16.gmra.mxu0 %v2120
        %v3384 = vpop.f32.mrf.mxu0
        %v3385 = vadd.f32 %v3216, %v3384
        %v3386 = vpop.f32.mrf.mxu0
        %v3387 = vadd.f32 %v3218, %v3386
        %3388 = vmatmul.bf16.gmra.mxu0 %v2128
        %v3389 = vpop.f32.mrf.mxu0
        %v3390 = vadd.f32 %v3221, %v3389
        %v3391 = vpop.f32.mrf.mxu0
        %v3392 = vadd.f32 %v3223, %v3391
        %3393 = vmatmul.bf16.gmra.mxu0 %v2136
        %v3394 = vpop.f32.mrf.mxu0
        %v3395 = vadd.f32 %v3226, %v3394
        %v3396 = vpop.f32.mrf.mxu0
        %v3397 = vadd.f32 %v3228, %v3396
        %3398 = vmatmul.bf16.gmra.mxu0 %v2144
        %v3399 = vpop.f32.mrf.mxu0
        %v3400 = vadd.f32 %v3231, %v3399
        %v3401 = vpop.f32.mrf.mxu0
        %v3402 = vadd.f32 %v3233, %v3401
        %3403 = vmatmul.bf16.gmra.mxu0 %v2152
        %v3404 = vpop.f32.mrf.mxu0
        %v3405 = vadd.f32 %v3236, %v3404
        %v3406 = vpop.f32.mrf.mxu0
        %v3407 = vadd.f32 %v3238, %v3406
        %3408 = vdwg.mxu0
        %3409 = vmatpush.bf16.msra.mxu0 %v2644
        %3410 = vmatpush.bf16.msra.mxu0 %v2643
        %3411 = vmatpush.bf16.msra.mxu0 %v2642
        %3412 = vmatpush.bf16.msra.mxu0 %v2641
        %3413 = vmatpush.bf16.msra.mxu0 %v2640
        %3414 = vmatpush.bf16.msra.mxu0 %v2639
        %3415 = vmatpush.bf16.msra.mxu0 %v2638
        %3416 = vmatpush.bf16.msra.mxu0 %v2637
        %3417 = vmatmul.bf16.gmra.mxu0 %v1905
        %v3418 = vpop.f32.mrf.mxu0
        %v3419 = vadd.f32 %v3250, %v3418
        %v3420 = vpop.f32.mrf.mxu0
        %v3421 = vadd.f32 %v3252, %v3420
        %3422 = vmatmul.bf16.gmra.mxu0 %v1913
        %v3423 = vpop.f32.mrf.mxu0
        %v3424 = vadd.f32 %v3255, %v3423
        %v3425 = vpop.f32.mrf.mxu0
        %v3426 = vadd.f32 %v3257, %v3425
        %3427 = vmatmul.bf16.gmra.mxu0 %v1921
        %v3428 = vpop.f32.mrf.mxu0
        %v3429 = vadd.f32 %v3260, %v3428
        %v3430 = vpop.f32.mrf.mxu0
        %v3431 = vadd.f32 %v3262, %v3430
        %3432 = vmatmul.bf16.gmra.mxu0 %v1929
        %v3433 = vpop.f32.mrf.mxu0
        %v3434 = vadd.f32 %v3265, %v3433
        %v3435 = vpop.f32.mrf.mxu0
        %v3436 = vadd.f32 %v3267, %v3435
        %3437 = vmatmul.bf16.gmra.mxu0 %v1937
        %v3438 = vpop.f32.mrf.mxu0
        %v3439 = vadd.f32 %v3270, %v3438
        %v3440 = vpop.f32.mrf.mxu0
        %v3441 = vadd.f32 %v3272, %v3440
        %3442 = vmatmul.bf16.gmra.mxu0 %v1945
        %v3443 = vpop.f32.mrf.mxu0
        %v3444 = vadd.f32 %v3275, %v3443
        %v3445 = vpop.f32.mrf.mxu0
        %v3446 = vadd.f32 %v3277, %v3445
        %3447 = vmatmul.bf16.gmra.mxu0 %v1953
        %v3448 = vpop.f32.mrf.mxu0
        %v3449 = vadd.f32 %v3280, %v3448
        %v3450 = vpop.f32.mrf.mxu0
        %v3451 = vadd.f32 %v3282, %v3450
        %3452 = vmatmul.bf16.gmra.mxu0 %v1961
        %v3453 = vpop.f32.mrf.mxu0
        %v3454 = vadd.f32 %v3285, %v3453
        %v3455 = vpop.f32.mrf.mxu0
        %v3456 = vadd.f32 %v3287, %v3455
        %3457 = vmatmul.bf16.gmra.mxu0 %v1969
        %v3458 = vpop.f32.mrf.mxu0
        %v3459 = vadd.f32 %v3290, %v3458
        %v3460 = vpop.f32.mrf.mxu0
        %v3461 = vadd.f32 %v3292, %v3460
        %3462 = vmatmul.bf16.gmra.mxu0 %v1977
        %v3463 = vpop.f32.mrf.mxu0
        %v3464 = vadd.f32 %v3295, %v3463
        %v3465 = vpop.f32.mrf.mxu0
        %v3466 = vadd.f32 %v3297, %v3465
        %3467 = vmatmul.bf16.gmra.mxu0 %v1985
        %v3468 = vpop.f32.mrf.mxu0
        %v3469 = vadd.f32 %v3300, %v3468
        %v3470 = vpop.f32.mrf.mxu0
        %v3471 = vadd.f32 %v3302, %v3470
        %3472 = vmatmul.bf16.gmra.mxu0 %v1993
        %v3473 = vpop.f32.mrf.mxu0
        %v3474 = vadd.f32 %v3305, %v3473
        %v3475 = vpop.f32.mrf.mxu0
        %v3476 = vadd.f32 %v3307, %v3475
        %3477 = vmatmul.bf16.gmra.mxu0 %v2001
        %v3478 = vpop.f32.mrf.mxu0
        %v3479 = vadd.f32 %v3310, %v3478
        %v3480 = vpop.f32.mrf.mxu0
        %v3481 = vadd.f32 %v3312, %v3480
        %3482 = vmatmul.bf16.gmra.mxu0 %v2009
        %v3483 = vpop.f32.mrf.mxu0
        %v3484 = vadd.f32 %v3315, %v3483
        %v3485 = vpop.f32.mrf.mxu0
        %v3486 = vadd.f32 %v3317, %v3485
        %3487 = vmatmul.bf16.gmra.mxu0 %v2017
        %v3488 = vpop.f32.mrf.mxu0
        %v3489 = vadd.f32 %v3320, %v3488
        %v3490 = vpop.f32.mrf.mxu0
        %v3491 = vadd.f32 %v3322, %v3490
        %3492 = vmatmul.bf16.gmra.mxu0 %v2025
        %v3493 = vpop.f32.mrf.mxu0
        %v3494 = vadd.f32 %v3325, %v3493
        %v3495 = vpop.f32.mrf.mxu0
        %v3496 = vadd.f32 %v3327, %v3495
        %3497 = vmatmul.bf16.gmra.mxu0 %v2033
        %v3498 = vpop.f32.mrf.mxu0
        %v3499 = vadd.f32 %v3330, %v3498
        %v3500 = vpop.f32.mrf.mxu0
        %v3501 = vadd.f32 %v3332, %v3500
        %3502 = vmatmul.bf16.gmra.mxu0 %v2041
        %v3503 = vpop.f32.mrf.mxu0
        %v3504 = vadd.f32 %v3335, %v3503
        %v3505 = vpop.f32.mrf.mxu0
        %v3506 = vadd.f32 %v3337, %v3505
        %3507 = vmatmul.bf16.gmra.mxu0 %v2049
        %v3508 = vpop.f32.mrf.mxu0
        %v3509 = vadd.f32 %v3340, %v3508
        %v3510 = vpop.f32.mrf.mxu0
        %v3511 = vadd.f32 %v3342, %v3510
        %3512 = vmatmul.bf16.gmra.mxu0 %v2057
        %v3513 = vpop.f32.mrf.mxu0
        %v3514 = vadd.f32 %v3345, %v3513
        %v3515 = vpop.f32.mrf.mxu0
        %v3516 = vadd.f32 %v3347, %v3515
        %3517 = vmatmul.bf16.gmra.mxu0 %v2065
        %v3518 = vpop.f32.mrf.mxu0
        %v3519 = vadd.f32 %v3350, %v3518
        %v3520 = vpop.f32.mrf.mxu0
        %v3521 = vadd.f32 %v3352, %v3520
        %3522 = vmatmul.bf16.gmra.mxu0 %v2073
        %v3523 = vpop.f32.mrf.mxu0
        %v3524 = vadd.f32 %v3355, %v3523
        %v3525 = vpop.f32.mrf.mxu0
        %v3526 = vadd.f32 %v3357, %v3525
        %3527 = vmatmul.bf16.gmra.mxu0 %v2081
        %v3528 = vpop.f32.mrf.mxu0
        %v3529 = vadd.f32 %v3360, %v3528
        %v3530 = vpop.f32.mrf.mxu0
        %v3531 = vadd.f32 %v3362, %v3530
        %3532 = vmatmul.bf16.gmra.mxu0 %v2089
        %v3533 = vpop.f32.mrf.mxu0
        %v3534 = vadd.f32 %v3365, %v3533
        %v3535 = vpop.f32.mrf.mxu0
        %v3536 = vadd.f32 %v3367, %v3535
        %3537 = vmatmul.bf16.gmra.mxu0 %v2097
        %v3538 = vpop.f32.mrf.mxu0
        %v3539 = vadd.f32 %v3370, %v3538
        %v3540 = vpop.f32.mrf.mxu0
        %v3541 = vadd.f32 %v3372, %v3540
        %3542 = vmatmul.bf16.gmra.mxu0 %v2105
        %v3543 = vpop.f32.mrf.mxu0
        %v3544 = vadd.f32 %v3375, %v3543
        %v3545 = vpop.f32.mrf.mxu0
        %v3546 = vadd.f32 %v3377, %v3545
        %3547 = vmatmul.bf16.gmra.mxu0 %v2113
        %v3548 = vpop.f32.mrf.mxu0
        %v3549 = vadd.f32 %v3380, %v3548
        %v3550 = vpop.f32.mrf.mxu0
        %v3551 = vadd.f32 %v3382, %v3550
        %3552 = vmatmul.bf16.gmra.mxu0 %v2121
        %v3553 = vpop.f32.mrf.mxu0
        %v3554 = vadd.f32 %v3385, %v3553
        %v3555 = vpop.f32.mrf.mxu0
        %v3556 = vadd.f32 %v3387, %v3555
        %3557 = vmatmul.bf16.gmra.mxu0 %v2129
        %v3558 = vpop.f32.mrf.mxu0
        %v3559 = vadd.f32 %v3390, %v3558
        %v3560 = vpop.f32.mrf.mxu0
        %v3561 = vadd.f32 %v3392, %v3560
        %3562 = vmatmul.bf16.gmra.mxu0 %v2137
        %v3563 = vpop.f32.mrf.mxu0
        %v3564 = vadd.f32 %v3395, %v3563
        %v3565 = vpop.f32.mrf.mxu0
        %v3566 = vadd.f32 %v3397, %v3565
        %3567 = vmatmul.bf16.gmra.mxu0 %v2145
        %v3568 = vpop.f32.mrf.mxu0
        %v3569 = vadd.f32 %v3400, %v3568
        %v3570 = vpop.f32.mrf.mxu0
        %v3571 = vadd.f32 %v3402, %v3570
        %3572 = vmatmul.bf16.gmra.mxu0 %v2153
        %v3573 = vpop.f32.mrf.mxu0
        %v3574 = vadd.f32 %v3405, %v3573
        %v3575 = vpop.f32.mrf.mxu0
        %v3576 = vadd.f32 %v3407, %v3575
        %3577 = vdwg.mxu0
        %3578 = vmatpush.bf16.msra.mxu0 %v2652
        %3579 = vmatpush.bf16.msra.mxu0 %v2651
        %3580 = vmatpush.bf16.msra.mxu0 %v2650
        %3581 = vmatpush.bf16.msra.mxu0 %v2649
        %3582 = vmatpush.bf16.msra.mxu0 %v2648
        %3583 = vmatpush.bf16.msra.mxu0 %v2647
        %3584 = vmatpush.bf16.msra.mxu0 %v2646
        %3585 = vmatpush.bf16.msra.mxu0 %v2645
        %3586 = vmatmul.bf16.gmra.mxu0 %v1906
        %v3587 = vpop.f32.mrf.mxu0
        %v3588 = vadd.f32 %v3419, %v3587
        %v3589 = vpop.f32.mrf.mxu0
        %v3590 = vadd.f32 %v3421, %v3589
        %3591 = vmatmul.bf16.gmra.mxu0 %v1914
        %v3592 = vpop.f32.mrf.mxu0
        %v3593 = vadd.f32 %v3424, %v3592
        %v3594 = vpop.f32.mrf.mxu0
        %v3595 = vadd.f32 %v3426, %v3594
        %3596 = vmatmul.bf16.gmra.mxu0 %v1922
        %v3597 = vpop.f32.mrf.mxu0
        %v3598 = vadd.f32 %v3429, %v3597
        %v3599 = vpop.f32.mrf.mxu0
        %v3600 = vadd.f32 %v3431, %v3599
        %3601 = vmatmul.bf16.gmra.mxu0 %v1930
        %v3602 = vpop.f32.mrf.mxu0
        %v3603 = vadd.f32 %v3434, %v3602
        %v3604 = vpop.f32.mrf.mxu0
        %v3605 = vadd.f32 %v3436, %v3604
        %3606 = vmatmul.bf16.gmra.mxu0 %v1938
        %v3607 = vpop.f32.mrf.mxu0
        %v3608 = vadd.f32 %v3439, %v3607
        %v3609 = vpop.f32.mrf.mxu0
        %v3610 = vadd.f32 %v3441, %v3609
        %3611 = vmatmul.bf16.gmra.mxu0 %v1946
        %v3612 = vpop.f32.mrf.mxu0
        %v3613 = vadd.f32 %v3444, %v3612
        %v3614 = vpop.f32.mrf.mxu0
        %v3615 = vadd.f32 %v3446, %v3614
        %3616 = vmatmul.bf16.gmra.mxu0 %v1954
        %v3617 = vpop.f32.mrf.mxu0
        %v3618 = vadd.f32 %v3449, %v3617
        %v3619 = vpop.f32.mrf.mxu0
        %v3620 = vadd.f32 %v3451, %v3619
        %3621 = vmatmul.bf16.gmra.mxu0 %v1962
        %v3622 = vpop.f32.mrf.mxu0
        %v3623 = vadd.f32 %v3454, %v3622
        %v3624 = vpop.f32.mrf.mxu0
        %v3625 = vadd.f32 %v3456, %v3624
        %3626 = vmatmul.bf16.gmra.mxu0 %v1970
        %v3627 = vpop.f32.mrf.mxu0
        %v3628 = vadd.f32 %v3459, %v3627
        %v3629 = vpop.f32.mrf.mxu0
        %v3630 = vadd.f32 %v3461, %v3629
        %3631 = vmatmul.bf16.gmra.mxu0 %v1978
        %v3632 = vpop.f32.mrf.mxu0
        %v3633 = vadd.f32 %v3464, %v3632
        %v3634 = vpop.f32.mrf.mxu0
        %v3635 = vadd.f32 %v3466, %v3634
        %3636 = vmatmul.bf16.gmra.mxu0 %v1986
        %v3637 = vpop.f32.mrf.mxu0
        %v3638 = vadd.f32 %v3469, %v3637
        %v3639 = vpop.f32.mrf.mxu0
        %v3640 = vadd.f32 %v3471, %v3639
        %3641 = vmatmul.bf16.gmra.mxu0 %v1994
        %v3642 = vpop.f32.mrf.mxu0
        %v3643 = vadd.f32 %v3474, %v3642
        %v3644 = vpop.f32.mrf.mxu0
        %v3645 = vadd.f32 %v3476, %v3644
        %3646 = vmatmul.bf16.gmra.mxu0 %v2002
        %v3647 = vpop.f32.mrf.mxu0
        %v3648 = vadd.f32 %v3479, %v3647
        %v3649 = vpop.f32.mrf.mxu0
        %v3650 = vadd.f32 %v3481, %v3649
        %3651 = vmatmul.bf16.gmra.mxu0 %v2010
        %v3652 = vpop.f32.mrf.mxu0
        %v3653 = vadd.f32 %v3484, %v3652
        %v3654 = vpop.f32.mrf.mxu0
        %v3655 = vadd.f32 %v3486, %v3654
        %3656 = vmatmul.bf16.gmra.mxu0 %v2018
        %v3657 = vpop.f32.mrf.mxu0
        %v3658 = vadd.f32 %v3489, %v3657
        %v3659 = vpop.f32.mrf.mxu0
        %v3660 = vadd.f32 %v3491, %v3659
        %3661 = vmatmul.bf16.gmra.mxu0 %v2026
        %v3662 = vpop.f32.mrf.mxu0
        %v3663 = vadd.f32 %v3494, %v3662
        %v3664 = vpop.f32.mrf.mxu0
        %v3665 = vadd.f32 %v3496, %v3664
        %3666 = vmatmul.bf16.gmra.mxu0 %v2034
        %v3667 = vpop.f32.mrf.mxu0
        %v3668 = vadd.f32 %v3499, %v3667
        %v3669 = vpop.f32.mrf.mxu0
        %v3670 = vadd.f32 %v3501, %v3669
        %3671 = vmatmul.bf16.gmra.mxu0 %v2042
        %v3672 = vpop.f32.mrf.mxu0
        %v3673 = vadd.f32 %v3504, %v3672
        %v3674 = vpop.f32.mrf.mxu0
        %v3675 = vadd.f32 %v3506, %v3674
        %3676 = vmatmul.bf16.gmra.mxu0 %v2050
        %v3677 = vpop.f32.mrf.mxu0
        %v3678 = vadd.f32 %v3509, %v3677
        %v3679 = vpop.f32.mrf.mxu0
        %v3680 = vadd.f32 %v3511, %v3679
        %3681 = vmatmul.bf16.gmra.mxu0 %v2058
        %v3682 = vpop.f32.mrf.mxu0
        %v3683 = vadd.f32 %v3514, %v3682
        %v3684 = vpop.f32.mrf.mxu0
        %v3685 = vadd.f32 %v3516, %v3684
        %3686 = vmatmul.bf16.gmra.mxu0 %v2066
        %v3687 = vpop.f32.mrf.mxu0
        %v3688 = vadd.f32 %v3519, %v3687
        %v3689 = vpop.f32.mrf.mxu0
        %v3690 = vadd.f32 %v3521, %v3689
        %3691 = vmatmul.bf16.gmra.mxu0 %v2074
        %v3692 = vpop.f32.mrf.mxu0
        %v3693 = vadd.f32 %v3524, %v3692
        %v3694 = vpop.f32.mrf.mxu0
        %v3695 = vadd.f32 %v3526, %v3694
        %3696 = vmatmul.bf16.gmra.mxu0 %v2082
        %v3697 = vpop.f32.mrf.mxu0
        %v3698 = vadd.f32 %v3529, %v3697
        %v3699 = vpop.f32.mrf.mxu0
        %v3700 = vadd.f32 %v3531, %v3699
        %3701 = vmatmul.bf16.gmra.mxu0 %v2090
        %v3702 = vpop.f32.mrf.mxu0
        %v3703 = vadd.f32 %v3534, %v3702
        %v3704 = vpop.f32.mrf.mxu0
        %v3705 = vadd.f32 %v3536, %v3704
        %3706 = vmatmul.bf16.gmra.mxu0 %v2098
        %v3707 = vpop.f32.mrf.mxu0
        %v3708 = vadd.f32 %v3539, %v3707
        %v3709 = vpop.f32.mrf.mxu0
        %v3710 = vadd.f32 %v3541, %v3709
        %3711 = vmatmul.bf16.gmra.mxu0 %v2106
        %v3712 = vpop.f32.mrf.mxu0
        %v3713 = vadd.f32 %v3544, %v3712
        %v3714 = vpop.f32.mrf.mxu0
        %v3715 = vadd.f32 %v3546, %v3714
        %3716 = vmatmul.bf16.gmra.mxu0 %v2114
        %v3717 = vpop.f32.mrf.mxu0
        %v3718 = vadd.f32 %v3549, %v3717
        %v3719 = vpop.f32.mrf.mxu0
        %v3720 = vadd.f32 %v3551, %v3719
        %3721 = vmatmul.bf16.gmra.mxu0 %v2122
        %v3722 = vpop.f32.mrf.mxu0
        %v3723 = vadd.f32 %v3554, %v3722
        %v3724 = vpop.f32.mrf.mxu0
        %v3725 = vadd.f32 %v3556, %v3724
        %3726 = vmatmul.bf16.gmra.mxu0 %v2130
        %v3727 = vpop.f32.mrf.mxu0
        %v3728 = vadd.f32 %v3559, %v3727
        %v3729 = vpop.f32.mrf.mxu0
        %v3730 = vadd.f32 %v3561, %v3729
        %3731 = vmatmul.bf16.gmra.mxu0 %v2138
        %v3732 = vpop.f32.mrf.mxu0
        %v3733 = vadd.f32 %v3564, %v3732
        %v3734 = vpop.f32.mrf.mxu0
        %v3735 = vadd.f32 %v3566, %v3734
        %3736 = vmatmul.bf16.gmra.mxu0 %v2146
        %v3737 = vpop.f32.mrf.mxu0
        %v3738 = vadd.f32 %v3569, %v3737
        %v3739 = vpop.f32.mrf.mxu0
        %v3740 = vadd.f32 %v3571, %v3739
        %3741 = vmatmul.bf16.gmra.mxu0 %v2154
        %v3742 = vpop.f32.mrf.mxu0
        %v3743 = vadd.f32 %v3574, %v3742
        %v3744 = vpop.f32.mrf.mxu0
        %v3745 = vadd.f32 %v3576, %v3744
        %3746 = vdwg.mxu0
        %3747 = vmatpush.bf16.msra.mxu0 %v2660
        %3748 = vmatpush.bf16.msra.mxu0 %v2659
        %3749 = vmatpush.bf16.msra.mxu0 %v2658
        %3750 = vmatpush.bf16.msra.mxu0 %v2657
        %3751 = vmatpush.bf16.msra.mxu0 %v2656
        %3752 = vmatpush.bf16.msra.mxu0 %v2655
        %3753 = vmatpush.bf16.msra.mxu0 %v2654
        %3754 = vmatpush.bf16.msra.mxu0 %v2653
        %3755 = vmatmul.bf16.gmra.mxu0 %v1907
        %v3756 = vpop.f32.mrf.mxu0
        %v3757 = vadd.f32 %v3588, %v3756
        %v3758 = vpop.f32.mrf.mxu0
        %v3759 = vadd.f32 %v3590, %v3758
        %3760 = vmatmul.bf16.gmra.mxu0 %v1915
        %v3761 = vpop.f32.mrf.mxu0
        %v3762 = vadd.f32 %v3593, %v3761
        %v3763 = vpop.f32.mrf.mxu0
        %v3764 = vadd.f32 %v3595, %v3763
        %3765 = vmatmul.bf16.gmra.mxu0 %v1923
        %v3766 = vpop.f32.mrf.mxu0
        %v3767 = vadd.f32 %v3598, %v3766
        %v3768 = vpop.f32.mrf.mxu0
        %v3769 = vadd.f32 %v3600, %v3768
        %3770 = vmatmul.bf16.gmra.mxu0 %v1931
        %v3771 = vpop.f32.mrf.mxu0
        %v3772 = vadd.f32 %v3603, %v3771
        %v3773 = vpop.f32.mrf.mxu0
        %v3774 = vadd.f32 %v3605, %v3773
        %3775 = vmatmul.bf16.gmra.mxu0 %v1939
        %v3776 = vpop.f32.mrf.mxu0
        %v3777 = vadd.f32 %v3608, %v3776
        %v3778 = vpop.f32.mrf.mxu0
        %v3779 = vadd.f32 %v3610, %v3778
        %3780 = vmatmul.bf16.gmra.mxu0 %v1947
        %v3781 = vpop.f32.mrf.mxu0
        %v3782 = vadd.f32 %v3613, %v3781
        %v3783 = vpop.f32.mrf.mxu0
        %v3784 = vadd.f32 %v3615, %v3783
        %3785 = vmatmul.bf16.gmra.mxu0 %v1955
        %v3786 = vpop.f32.mrf.mxu0
        %v3787 = vadd.f32 %v3618, %v3786
        %v3788 = vpop.f32.mrf.mxu0
        %v3789 = vadd.f32 %v3620, %v3788
        %3790 = vmatmul.bf16.gmra.mxu0 %v1963
        %v3791 = vpop.f32.mrf.mxu0
        %v3792 = vadd.f32 %v3623, %v3791
        %v3793 = vpop.f32.mrf.mxu0
        %v3794 = vadd.f32 %v3625, %v3793
        %3795 = vmatmul.bf16.gmra.mxu0 %v1971
        %v3796 = vpop.f32.mrf.mxu0
        %v3797 = vadd.f32 %v3628, %v3796
        %v3798 = vpop.f32.mrf.mxu0
        %v3799 = vadd.f32 %v3630, %v3798
        %3800 = vmatmul.bf16.gmra.mxu0 %v1979
        %v3801 = vpop.f32.mrf.mxu0
        %v3802 = vadd.f32 %v3633, %v3801
        %v3803 = vpop.f32.mrf.mxu0
        %v3804 = vadd.f32 %v3635, %v3803
        %3805 = vmatmul.bf16.gmra.mxu0 %v1987
        %v3806 = vpop.f32.mrf.mxu0
        %v3807 = vadd.f32 %v3638, %v3806
        %v3808 = vpop.f32.mrf.mxu0
        %v3809 = vadd.f32 %v3640, %v3808
        %3810 = vmatmul.bf16.gmra.mxu0 %v1995
        %v3811 = vpop.f32.mrf.mxu0
        %v3812 = vadd.f32 %v3643, %v3811
        %v3813 = vpop.f32.mrf.mxu0
        %v3814 = vadd.f32 %v3645, %v3813
        %3815 = vmatmul.bf16.gmra.mxu0 %v2003
        %v3816 = vpop.f32.mrf.mxu0
        %v3817 = vadd.f32 %v3648, %v3816
        %v3818 = vpop.f32.mrf.mxu0
        %v3819 = vadd.f32 %v3650, %v3818
        %3820 = vmatmul.bf16.gmra.mxu0 %v2011
        %v3821 = vpop.f32.mrf.mxu0
        %v3822 = vadd.f32 %v3653, %v3821
        %v3823 = vpop.f32.mrf.mxu0
        %v3824 = vadd.f32 %v3655, %v3823
        %3825 = vmatmul.bf16.gmra.mxu0 %v2019
        %v3826 = vpop.f32.mrf.mxu0
        %v3827 = vadd.f32 %v3658, %v3826
        %v3828 = vpop.f32.mrf.mxu0
        %v3829 = vadd.f32 %v3660, %v3828
        %3830 = vmatmul.bf16.gmra.mxu0 %v2027
        %v3831 = vpop.f32.mrf.mxu0
        %v3832 = vadd.f32 %v3663, %v3831
        %v3833 = vpop.f32.mrf.mxu0
        %v3834 = vadd.f32 %v3665, %v3833
        %3835 = vmatmul.bf16.gmra.mxu0 %v2035
        %v3836 = vpop.f32.mrf.mxu0
        %v3837 = vadd.f32 %v3668, %v3836
        %v3838 = vpop.f32.mrf.mxu0
        %v3839 = vadd.f32 %v3670, %v3838
        %3840 = vmatmul.bf16.gmra.mxu0 %v2043
        %v3841 = vpop.f32.mrf.mxu0
        %v3842 = vadd.f32 %v3673, %v3841
        %v3843 = vpop.f32.mrf.mxu0
        %v3844 = vadd.f32 %v3675, %v3843
        %3845 = vmatmul.bf16.gmra.mxu0 %v2051
        %v3846 = vpop.f32.mrf.mxu0
        %v3847 = vadd.f32 %v3678, %v3846
        %v3848 = vpop.f32.mrf.mxu0
        %v3849 = vadd.f32 %v3680, %v3848
        %3850 = vmatmul.bf16.gmra.mxu0 %v2059
        %v3851 = vpop.f32.mrf.mxu0
        %v3852 = vadd.f32 %v3683, %v3851
        %v3853 = vpop.f32.mrf.mxu0
        %v3854 = vadd.f32 %v3685, %v3853
        %3855 = vmatmul.bf16.gmra.mxu0 %v2067
        %v3856 = vpop.f32.mrf.mxu0
        %v3857 = vadd.f32 %v3688, %v3856
        %v3858 = vpop.f32.mrf.mxu0
        %v3859 = vadd.f32 %v3690, %v3858
        %3860 = vmatmul.bf16.gmra.mxu0 %v2075
        %v3861 = vpop.f32.mrf.mxu0
        %v3862 = vadd.f32 %v3693, %v3861
        %v3863 = vpop.f32.mrf.mxu0
        %v3864 = vadd.f32 %v3695, %v3863
        %3865 = vmatmul.bf16.gmra.mxu0 %v2083
        %v3866 = vpop.f32.mrf.mxu0
        %v3867 = vadd.f32 %v3698, %v3866
        %v3868 = vpop.f32.mrf.mxu0
        %v3869 = vadd.f32 %v3700, %v3868
        %3870 = vmatmul.bf16.gmra.mxu0 %v2091
        %v3871 = vpop.f32.mrf.mxu0
        %v3872 = vadd.f32 %v3703, %v3871
        %v3873 = vpop.f32.mrf.mxu0
        %v3874 = vadd.f32 %v3705, %v3873
        %3875 = vmatmul.bf16.gmra.mxu0 %v2099
        %v3876 = vpop.f32.mrf.mxu0
        %v3877 = vadd.f32 %v3708, %v3876
        %v3878 = vpop.f32.mrf.mxu0
        %v3879 = vadd.f32 %v3710, %v3878
        %3880 = vmatmul.bf16.gmra.mxu0 %v2107
        %v3881 = vpop.f32.mrf.mxu0
        %v3882 = vadd.f32 %v3713, %v3881
        %v3883 = vpop.f32.mrf.mxu0
        %v3884 = vadd.f32 %v3715, %v3883
        %3885 = vmatmul.bf16.gmra.mxu0 %v2115
        %v3886 = vpop.f32.mrf.mxu0
        %v3887 = vadd.f32 %v3718, %v3886
        %v3888 = vpop.f32.mrf.mxu0
        %v3889 = vadd.f32 %v3720, %v3888
        %3890 = vmatmul.bf16.gmra.mxu0 %v2123
        %v3891 = vpop.f32.mrf.mxu0
        %v3892 = vadd.f32 %v3723, %v3891
        %v3893 = vpop.f32.mrf.mxu0
        %v3894 = vadd.f32 %v3725, %v3893
        %3895 = vmatmul.bf16.gmra.mxu0 %v2131
        %v3896 = vpop.f32.mrf.mxu0
        %v3897 = vadd.f32 %v3728, %v3896
        %v3898 = vpop.f32.mrf.mxu0
        %v3899 = vadd.f32 %v3730, %v3898
        %3900 = vmatmul.bf16.gmra.mxu0 %v2139
        %v3901 = vpop.f32.mrf.mxu0
        %v3902 = vadd.f32 %v3733, %v3901
        %v3903 = vpop.f32.mrf.mxu0
        %v3904 = vadd.f32 %v3735, %v3903
        %3905 = vmatmul.bf16.gmra.mxu0 %v2147
        %v3906 = vpop.f32.mrf.mxu0
        %v3907 = vadd.f32 %v3738, %v3906
        %v3908 = vpop.f32.mrf.mxu0
        %v3909 = vadd.f32 %v3740, %v3908
        %3910 = vmatmul.bf16.gmra.mxu0 %v2155
        %v3911 = vpop.f32.mrf.mxu0
        %v3912 = vadd.f32 %v3743, %v3911
        %v3913 = vpop.f32.mrf.mxu0
        %v3914 = vadd.f32 %v3745, %v3913
        %3915 = vdwg.mxu0
        %3916 = vmatpush.bf16.msra.mxu0 %v2668
        %3917 = vmatpush.bf16.msra.mxu0 %v2667
        %3918 = vmatpush.bf16.msra.mxu0 %v2666
        %3919 = vmatpush.bf16.msra.mxu0 %v2665
        %3920 = vmatpush.bf16.msra.mxu0 %v2664
        %3921 = vmatpush.bf16.msra.mxu0 %v2663
        %3922 = vmatpush.bf16.msra.mxu0 %v2662
        %3923 = vmatpush.bf16.msra.mxu0 %v2661
        %3924 = vmatmul.bf16.gmra.mxu0 %v1908
        %v3925 = vpop.f32.mrf.mxu0
        %v3926 = vadd.f32 %v3757, %v3925
        %v3927 = vpop.f32.mrf.mxu0
        %v3928 = vadd.f32 %v3759, %v3927
        %3929 = vmatmul.bf16.gmra.mxu0 %v1916
        %v3930 = vpop.f32.mrf.mxu0
        %v3931 = vadd.f32 %v3762, %v3930
        %v3932 = vpop.f32.mrf.mxu0
        %v3933 = vadd.f32 %v3764, %v3932
        %3934 = vmatmul.bf16.gmra.mxu0 %v1924
        %v3935 = vpop.f32.mrf.mxu0
        %v3936 = vadd.f32 %v3767, %v3935
        %v3937 = vpop.f32.mrf.mxu0
        %v3938 = vadd.f32 %v3769, %v3937
        %3939 = vmatmul.bf16.gmra.mxu0 %v1932
        %v3940 = vpop.f32.mrf.mxu0
        %v3941 = vadd.f32 %v3772, %v3940
        %v3942 = vpop.f32.mrf.mxu0
        %v3943 = vadd.f32 %v3774, %v3942
        %3944 = vmatmul.bf16.gmra.mxu0 %v1940
        %v3945 = vpop.f32.mrf.mxu0
        %v3946 = vadd.f32 %v3777, %v3945
        %v3947 = vpop.f32.mrf.mxu0
        %v3948 = vadd.f32 %v3779, %v3947
        %3949 = vmatmul.bf16.gmra.mxu0 %v1948
        %v3950 = vpop.f32.mrf.mxu0
        %v3951 = vadd.f32 %v3782, %v3950
        %v3952 = vpop.f32.mrf.mxu0
        %v3953 = vadd.f32 %v3784, %v3952
        %3954 = vmatmul.bf16.gmra.mxu0 %v1956
        %v3955 = vpop.f32.mrf.mxu0
        %v3956 = vadd.f32 %v3787, %v3955
        %v3957 = vpop.f32.mrf.mxu0
        %v3958 = vadd.f32 %v3789, %v3957
        %3959 = vmatmul.bf16.gmra.mxu0 %v1964
        %v3960 = vpop.f32.mrf.mxu0
        %v3961 = vadd.f32 %v3792, %v3960
        %v3962 = vpop.f32.mrf.mxu0
        %v3963 = vadd.f32 %v3794, %v3962
        %3964 = vmatmul.bf16.gmra.mxu0 %v1972
        %v3965 = vpop.f32.mrf.mxu0
        %v3966 = vadd.f32 %v3797, %v3965
        %v3967 = vpop.f32.mrf.mxu0
        %v3968 = vadd.f32 %v3799, %v3967
        %3969 = vmatmul.bf16.gmra.mxu0 %v1980
        %v3970 = vpop.f32.mrf.mxu0
        %v3971 = vadd.f32 %v3802, %v3970
        %v3972 = vpop.f32.mrf.mxu0
        %v3973 = vadd.f32 %v3804, %v3972
        %3974 = vmatmul.bf16.gmra.mxu0 %v1988
        %v3975 = vpop.f32.mrf.mxu0
        %v3976 = vadd.f32 %v3807, %v3975
        %v3977 = vpop.f32.mrf.mxu0
        %v3978 = vadd.f32 %v3809, %v3977
        %3979 = vmatmul.bf16.gmra.mxu0 %v1996
        %v3980 = vpop.f32.mrf.mxu0
        %v3981 = vadd.f32 %v3812, %v3980
        %v3982 = vpop.f32.mrf.mxu0
        %v3983 = vadd.f32 %v3814, %v3982
        %3984 = vmatmul.bf16.gmra.mxu0 %v2004
        %v3985 = vpop.f32.mrf.mxu0
        %v3986 = vadd.f32 %v3817, %v3985
        %v3987 = vpop.f32.mrf.mxu0
        %v3988 = vadd.f32 %v3819, %v3987
        %3989 = vmatmul.bf16.gmra.mxu0 %v2012
        %v3990 = vpop.f32.mrf.mxu0
        %v3991 = vadd.f32 %v3822, %v3990
        %v3992 = vpop.f32.mrf.mxu0
        %v3993 = vadd.f32 %v3824, %v3992
        %3994 = vmatmul.bf16.gmra.mxu0 %v2020
        %v3995 = vpop.f32.mrf.mxu0
        %v3996 = vadd.f32 %v3827, %v3995
        %v3997 = vpop.f32.mrf.mxu0
        %v3998 = vadd.f32 %v3829, %v3997
        %3999 = vmatmul.bf16.gmra.mxu0 %v2028
        %v4000 = vpop.f32.mrf.mxu0
        %v4001 = vadd.f32 %v3832, %v4000
        %v4002 = vpop.f32.mrf.mxu0
        %v4003 = vadd.f32 %v3834, %v4002
        %4004 = vmatmul.bf16.gmra.mxu0 %v2036
        %v4005 = vpop.f32.mrf.mxu0
        %v4006 = vadd.f32 %v3837, %v4005
        %v4007 = vpop.f32.mrf.mxu0
        %v4008 = vadd.f32 %v3839, %v4007
        %4009 = vmatmul.bf16.gmra.mxu0 %v2044
        %v4010 = vpop.f32.mrf.mxu0
        %v4011 = vadd.f32 %v3842, %v4010
        %v4012 = vpop.f32.mrf.mxu0
        %v4013 = vadd.f32 %v3844, %v4012
        %4014 = vmatmul.bf16.gmra.mxu0 %v2052
        %v4015 = vpop.f32.mrf.mxu0
        %v4016 = vadd.f32 %v3847, %v4015
        %v4017 = vpop.f32.mrf.mxu0
        %v4018 = vadd.f32 %v3849, %v4017
        %4019 = vmatmul.bf16.gmra.mxu0 %v2060
        %v4020 = vpop.f32.mrf.mxu0
        %v4021 = vadd.f32 %v3852, %v4020
        %v4022 = vpop.f32.mrf.mxu0
        %v4023 = vadd.f32 %v3854, %v4022
        %4024 = vmatmul.bf16.gmra.mxu0 %v2068
        %v4025 = vpop.f32.mrf.mxu0
        %v4026 = vadd.f32 %v3857, %v4025
        %v4027 = vpop.f32.mrf.mxu0
        %v4028 = vadd.f32 %v3859, %v4027
        %4029 = vmatmul.bf16.gmra.mxu0 %v2076
        %v4030 = vpop.f32.mrf.mxu0
        %v4031 = vadd.f32 %v3862, %v4030
        %v4032 = vpop.f32.mrf.mxu0
        %v4033 = vadd.f32 %v3864, %v4032
        %4034 = vmatmul.bf16.gmra.mxu0 %v2084
        %v4035 = vpop.f32.mrf.mxu0
        %v4036 = vadd.f32 %v3867, %v4035
        %v4037 = vpop.f32.mrf.mxu0
        %v4038 = vadd.f32 %v3869, %v4037
        %4039 = vmatmul.bf16.gmra.mxu0 %v2092
        %v4040 = vpop.f32.mrf.mxu0
        %v4041 = vadd.f32 %v3872, %v4040
        %v4042 = vpop.f32.mrf.mxu0
        %v4043 = vadd.f32 %v3874, %v4042
        %4044 = vmatmul.bf16.gmra.mxu0 %v2100
        %v4045 = vpop.f32.mrf.mxu0
        %v4046 = vadd.f32 %v3877, %v4045
        %v4047 = vpop.f32.mrf.mxu0
        %v4048 = vadd.f32 %v3879, %v4047
        %4049 = vmatmul.bf16.gmra.mxu0 %v2108
        %v4050 = vpop.f32.mrf.mxu0
        %v4051 = vadd.f32 %v3882, %v4050
        %v4052 = vpop.f32.mrf.mxu0
        %v4053 = vadd.f32 %v3884, %v4052
        %4054 = vmatmul.bf16.gmra.mxu0 %v2116
        %v4055 = vpop.f32.mrf.mxu0
        %v4056 = vadd.f32 %v3887, %v4055
        %v4057 = vpop.f32.mrf.mxu0
        %v4058 = vadd.f32 %v3889, %v4057
        %4059 = vmatmul.bf16.gmra.mxu0 %v2124
        %v4060 = vpop.f32.mrf.mxu0
        %v4061 = vadd.f32 %v3892, %v4060
        %v4062 = vpop.f32.mrf.mxu0
        %v4063 = vadd.f32 %v3894, %v4062
        %4064 = vmatmul.bf16.gmra.mxu0 %v2132
        %v4065 = vpop.f32.mrf.mxu0
        %v4066 = vadd.f32 %v3897, %v4065
        %v4067 = vpop.f32.mrf.mxu0
        %v4068 = vadd.f32 %v3899, %v4067
        %4069 = vmatmul.bf16.gmra.mxu0 %v2140
        %v4070 = vpop.f32.mrf.mxu0
        %v4071 = vadd.f32 %v3902, %v4070
        %v4072 = vpop.f32.mrf.mxu0
        %v4073 = vadd.f32 %v3904, %v4072
        %4074 = vmatmul.bf16.gmra.mxu0 %v2148
        %v4075 = vpop.f32.mrf.mxu0
        %v4076 = vadd.f32 %v3907, %v4075
        %v4077 = vpop.f32.mrf.mxu0
        %v4078 = vadd.f32 %v3909, %v4077
        %4079 = vmatmul.bf16.gmra.mxu0 %v2156
        %v4080 = vpop.f32.mrf.mxu0
        %v4081 = vadd.f32 %v3912, %v4080
        %v4082 = vpop.f32.mrf.mxu0
        %v4083 = vadd.f32 %v3914, %v4082
        %4084 = vdwg.mxu0
        %v4085 = vadd.f32 %v2157, %v3926
        %v4086 = vadd.f32 %v2158, %v3928
        %v4087 = vadd.f32 %v2159, %v3931
        %v4088 = vadd.f32 %v2160, %v3933
        %v4089 = vadd.f32 %v2161, %v3936
        %v4090 = vadd.f32 %v2162, %v3938
        %v4091 = vadd.f32 %v2163, %v3941
        %v4092 = vadd.f32 %v2164, %v3943
        %v4093 = vadd.f32 %v2165, %v3946
        %v4094 = vadd.f32 %v2166, %v3948
        %v4095 = vadd.f32 %v2167, %v3951
        %v4096 = vadd.f32 %v2168, %v3953
        %v4097 = vadd.f32 %v2169, %v3956
        %v4098 = vadd.f32 %v2170, %v3958
        %v4099 = vadd.f32 %v2171, %v3961
        %v4100 = vadd.f32 %v2172, %v3963
        %v4101 = vadd.f32 %v2173, %v3966
        %v4102 = vadd.f32 %v2174, %v3968
        %v4103 = vadd.f32 %v2175, %v3971
        %v4104 = vadd.f32 %v2176, %v3973
        %v4105 = vadd.f32 %v2177, %v3976
        %v4106 = vadd.f32 %v2178, %v3978
        %v4107 = vadd.f32 %v2179, %v3981
        %v4108 = vadd.f32 %v2180, %v3983
        %v4109 = vadd.f32 %v2181, %v3986
        %v4110 = vadd.f32 %v2182, %v3988
        %v4111 = vadd.f32 %v2183, %v3991
        %v4112 = vadd.f32 %v2184, %v3993
        %v4113 = vadd.f32 %v2185, %v3996
        %v4114 = vadd.f32 %v2186, %v3998
        %v4115 = vadd.f32 %v2187, %v4001
        %v4116 = vadd.f32 %v2188, %v4003
        %v4117 = vadd.f32 %v2189, %v4006
        %v4118 = vadd.f32 %v2190, %v4008
        %v4119 = vadd.f32 %v2191, %v4011
        %v4120 = vadd.f32 %v2192, %v4013
        %v4121 = vadd.f32 %v2193, %v4016
        %v4122 = vadd.f32 %v2194, %v4018
        %v4123 = vadd.f32 %v2195, %v4021
        %v4124 = vadd.f32 %v2196, %v4023
        %v4125 = vadd.f32 %v2197, %v4026
        %v4126 = vadd.f32 %v2198, %v4028
        %v4127 = vadd.f32 %v2199, %v4031
        %v4128 = vadd.f32 %v2200, %v4033
        %v4129 = vadd.f32 %v2201, %v4036
        %v4130 = vadd.f32 %v2202, %v4038
        %v4131 = vadd.f32 %v2203, %v4041
        %v4132 = vadd.f32 %v2204, %v4043
        %v4133 = vadd.f32 %v2205, %v4046
        %v4134 = vadd.f32 %v2206, %v4048
        %v4135 = vadd.f32 %v2207, %v4051
        %v4136 = vadd.f32 %v2208, %v4053
        %v4137 = vadd.f32 %v2209, %v4056
        %v4138 = vadd.f32 %v2210, %v4058
        %v4139 = vadd.f32 %v2211, %v4061
        %v4140 = vadd.f32 %v2212, %v4063
        %v4141 = vadd.f32 %v2213, %v4066
        %v4142 = vadd.f32 %v2214, %v4068
        %v4143 = vadd.f32 %v2215, %v4071
        %v4144 = vadd.f32 %v2216, %v4073
        %v4145 = vadd.f32 %v2217, %v4076
        %v4146 = vadd.f32 %v2218, %v4078
        %v4147 = vadd.f32 %v2219, %v4081
        %v4148 = vadd.f32 %v2220, %v4083
        %vm4149 = vcmask 523264
        %4150 = vst.msk [vmem:[%s209] sm:$0xff] %vm4149, %v4085
        %4151 = vst.msk [vmem:[%s209 + $0x8] sm:$0xff] %vm4149, %v4086
        %4152 = vst.msk [vmem:[%s209 + $0x10] sm:$0xff] %vm4149, %v4087
        %4153 = vst.msk [vmem:[%s209 + $0x18] sm:$0xff] %vm4149, %v4088
        %4154 = vst.msk [vmem:[%s209 + $0x20] sm:$0xff] %vm4149, %v4089
        %4155 = vst.msk [vmem:[%s209 + $0x28] sm:$0xff] %vm4149, %v4090
        %4156 = vst.msk [vmem:[%s209 + $0x30] sm:$0xff] %vm4149, %v4091
        %4157 = vst.msk [vmem:[%s209 + $0x38] sm:$0xff] %vm4149, %v4092
        %4158 = vst.msk [vmem:[%s209 + $0x40] sm:$0xff] %vm4149, %v4093
        %4159 = vst.msk [vmem:[%s209 + $0x48] sm:$0xff] %vm4149, %v4094
        %4160 = vst.msk [vmem:[%s209 + $0x50] sm:$0xff] %vm4149, %v4095
        %4161 = vst.msk [vmem:[%s209 + $0x58] sm:$0xff] %vm4149, %v4096
        %4162 = vst.msk [vmem:[%s209 + $0x60] sm:$0xff] %vm4149, %v4097
        %4163 = vst.msk [vmem:[%s209 + $0x68] sm:$0xff] %vm4149, %v4098
        %4164 = vst.msk [vmem:[%s209 + $0x70] sm:$0xff] %vm4149, %v4099
        %4165 = vst.msk [vmem:[%s209 + $0x78] sm:$0xff] %vm4149, %v4100
        %4166 = vst.msk [vmem:[%s209 + $0x80] sm:$0xff] %vm4149, %v4101
        %4167 = vst.msk [vmem:[%s209 + $0x88] sm:$0xff] %vm4149, %v4102
        %4168 = vst.msk [vmem:[%s209 + $0x90] sm:$0xff] %vm4149, %v4103
        %4169 = vst.msk [vmem:[%s209 + $0x98] sm:$0xff] %vm4149, %v4104
        %4170 = vst.msk [vmem:[%s209 + $0xa0] sm:$0xff] %vm4149, %v4105
        %4171 = vst.msk [vmem:[%s209 + $0xa8] sm:$0xff] %vm4149, %v4106
        %4172 = vst.msk [vmem:[%s209 + $0xb0] sm:$0xff] %vm4149, %v4107
        %4173 = vst.msk [vmem:[%s209 + $0xb8] sm:$0xff] %vm4149, %v4108
        %4174 = vst.msk [vmem:[%s209 + $0xc0] sm:$0xff] %vm4149, %v4109
        %4175 = vst.msk [vmem:[%s209 + $0xc8] sm:$0xff] %vm4149, %v4110
        %4176 = vst.msk [vmem:[%s209 + $0xd0] sm:$0xff] %vm4149, %v4111
        %4177 = vst.msk [vmem:[%s209 + $0xd8] sm:$0xff] %vm4149, %v4112
        %4178 = vst.msk [vmem:[%s209 + $0xe0] sm:$0xff] %vm4149, %v4113
        %4179 = vst.msk [vmem:[%s209 + $0xe8] sm:$0xff] %vm4149, %v4114
        %4180 = vst.msk [vmem:[%s209 + $0xf0] sm:$0xff] %vm4149, %v4115
        %4181 = vst.msk [vmem:[%s209 + $0xf8] sm:$0xff] %vm4149, %v4116
        %4182 = vst.msk [vmem:[%s209 + $0x100] sm:$0xff] %vm4149, %v4117
        %4183 = vst.msk [vmem:[%s209 + $0x108] sm:$0xff] %vm4149, %v4118
        %4184 = vst.msk [vmem:[%s209 + $0x110] sm:$0xff] %vm4149, %v4119
        %4185 = vst.msk [vmem:[%s209 + $0x118] sm:$0xff] %vm4149, %v4120
        %4186 = vst.msk [vmem:[%s209 + $0x120] sm:$0xff] %vm4149, %v4121
        %4187 = vst.msk [vmem:[%s209 + $0x128] sm:$0xff] %vm4149, %v4122
        %4188 = vst.msk [vmem:[%s209 + $0x130] sm:$0xff] %vm4149, %v4123
        %4189 = vst.msk [vmem:[%s209 + $0x138] sm:$0xff] %vm4149, %v4124
        %4190 = vst.msk [vmem:[%s209 + $0x140] sm:$0xff] %vm4149, %v4125
        %4191 = vst.msk [vmem:[%s209 + $0x148] sm:$0xff] %vm4149, %v4126
        %4192 = vst.msk [vmem:[%s209 + $0x150] sm:$0xff] %vm4149, %v4127
        %4193 = vst.msk [vmem:[%s209 + $0x158] sm:$0xff] %vm4149, %v4128
        %4194 = vst.msk [vmem:[%s209 + $0x160] sm:$0xff] %vm4149, %v4129
        %4195 = vst.msk [vmem:[%s209 + $0x168] sm:$0xff] %vm4149, %v4130
        %4196 = vst.msk [vmem:[%s209 + $0x170] sm:$0xff] %vm4149, %v4131
        %4197 = vst.msk [vmem:[%s209 + $0x178] sm:$0xff] %vm4149, %v4132
        %4198 = vst.msk [vmem:[%s209 + $0x180] sm:$0xff] %vm4149, %v4133
        %4199 = vst.msk [vmem:[%s209 + $0x188] sm:$0xff] %vm4149, %v4134
        %4200 = vst.msk [vmem:[%s209 + $0x190] sm:$0xff] %vm4149, %v4135
        %4201 = vst.msk [vmem:[%s209 + $0x198] sm:$0xff] %vm4149, %v4136
        %4202 = vst.msk [vmem:[%s209 + $0x1a0] sm:$0xff] %vm4149, %v4137
        %4203 = vst.msk [vmem:[%s209 + $0x1a8] sm:$0xff] %vm4149, %v4138
        %4204 = vst.msk [vmem:[%s209 + $0x1b0] sm:$0xff] %vm4149, %v4139
        %4205 = vst.msk [vmem:[%s209 + $0x1b8] sm:$0xff] %vm4149, %v4140
        %4206 = vst.msk [vmem:[%s209 + $0x1c0] sm:$0xff] %vm4149, %v4141
        %4207 = vst.msk [vmem:[%s209 + $0x1c8] sm:$0xff] %vm4149, %v4142
        %4208 = vst.msk [vmem:[%s209 + $0x1d0] sm:$0xff] %vm4149, %v4143
        %4209 = vst.msk [vmem:[%s209 + $0x1d8] sm:$0xff] %vm4149, %v4144
        %4210 = vst.msk [vmem:[%s209 + $0x1e0] sm:$0xff] %vm4149, %v4145
        %4211 = vst.msk [vmem:[%s209 + $0x1e8] sm:$0xff] %vm4149, %v4146
        %4212 = vst.msk [vmem:[%s209 + $0x1f0] sm:$0xff] %vm4149, %v4147
        %4213 = vst.msk [vmem:[%s209 + $0x1f8] sm:$0xff] %vm4149, %v4148
      $region36: #{a_call__.1} parent=27 // pred_fallthru
        _
      %s4214 = sld [smem:[#allocation3 + %s40]]
      %s4215 = smul.u32 64, %s4214
      %p4216 = scmp.lt.s32.totalorder %s4215, 127
      %s4217 = scalar_select %p4216, %s4215, 127
      %s4218 = smul.addr %s4217, 8
      %s4219 = scalar_lea.vmem %s6, %s4218
      // Predicated region
      $region37: #{a_call__.1} parent=27 // pred_check
        %p4220 = pneg %p116
      $region38: #{a_call__.1} parent=27 // pred_check_branch
        %4222 = sbr.rel (%p4220) target = $region40
      $region39: #{a_call__.1} parent=27 // pred_region
        %s4223 = sld [smem:[#allocation3 + %s40]]
        %s4224 = smul.u32 64, %s4223
      $region40: #{a_call__.1} parent=27 // pred_fallthru
        _
    $region28: #{a_call__.1} parent=5 // pred_fallthru
      _
    %p4225 = scmp.le.s32.totalorder 2, %s35
    // Predicated region
    $region41: #{a_call__.1} parent=5 // pred_check
      %p4226 = pneg %p4225
    $region42: #{a_call__.1} parent=5 // pred_check_branch
      %4228 = sbr.rel (%p4226) target = $region44
    $region43: #{a_call__.1} parent=5 // pred_region
      %s4229 = ssub.s32 %s35, 2
      // Predicated region
      $region45: #{a_call__.1} parent=43 // pred_check
        %p4230 = pneg %p122
      $region46: #{a_call__.1} parent=43 // pred_check_branch
        %4232 = sbr.rel (%p4230) target = $region48
      $region47: #{a_call__.1} parent=43 // pred_region
        %s4233 = sld [smem:[#allocation3 + %s41]]
        %s4234 = smul.u32 64, %s4233
        %p4235 = scmp.lt.s32.totalorder %s4234, 127
        %s4236 = scalar_select %p4235, %s4234, 127
        %s4237 = smul.addr %s4236, 8
        %s4238 = scalar_lea.vmem %s6, %s4237
      $region48: #{a_call__.1} parent=43 // pred_fallthru
        _
    $region44: #{a_call__.1} parent=5 // pred_fallthru
      _
  $region6: #{a_call__.1} parent=0 // loop_footer
    %s39 = sadd.s32 1, %s35
  $region7: #{a_call__.1} parent=0 // loop_footer_branch
    %34 = sbr.rel target = $region3
  $region8: #{a_call__.1} parent=0 // loop_exit
    _

</llo_original>
